<compile_context>
chip_gen: v7x
topology: tpu7x:2x2x1
jax: 0.10.0
libtpu: 0.0.40
codegen_flags: <defaults>
</compile_context>

<pallas_src>
import jax
import jax.numpy as jnp
from jax.experimental import pallas as pl
from jax.experimental.pallas import tpu as pltpu

EPS = 1e-5  # nn.InstanceNorm2d default eps, affine=False, biased variance


def residual_chain_kernel(x_ref,
                          w1a_ref, w1b_ref, w2a_ref, w2b_ref,
                          b1b_ref, b2b_ref, alpha_ref, o_ref):
    B = x_ref.shape[0]            # images per grid step
    K = w1a_ref.shape[0]          # number of fused residual blocks
    inv_hw = 1.0 / x_ref.shape[2]

    def inorm(h):
        # Two-pass (subtract-mean) variance: f32 stats, reduce over the lane axis.
        mean = jnp.sum(h, axis=1, keepdims=True) * inv_hw          # (C, 1)
        c = h - mean
        var = jnp.sum(c * c, axis=1, keepdims=True) * inv_hw       # (C, 1)
        return c * jax.lax.rsqrt(var + EPS)

    def one_block(k, x):
        # x: (C, HW) f32 residual stream.
        # ---------------- ConvBlock 1 (use_act=True) ----------------
        # Bias b1a dropped: a per-channel constant is cancelled by the IN mean.
        h = jnp.dot(w1a_ref[k], x.astype(jnp.bfloat16),
                    preferred_element_type=jnp.float32)
        h = jnp.maximum(inorm(h), 0.0).astype(jnp.bfloat16)        # IN -> ReLU -> bf16
        h = jnp.dot(w1b_ref[k], h,
                    preferred_element_type=jnp.float32) + b1b_ref[k]
        a1 = alpha_ref[k, 0]                                       # SMEM scalar
        h = jnp.where(h >= 0.0, h, h * a1)                         # PReLU (1 param)
        # ---------------- ConvBlock 2 (use_act=False) ----------------
        g = jnp.dot(w2a_ref[k], h.astype(jnp.bfloat16),            # bias b2a dropped
                    preferred_element_type=jnp.float32)
        g = inorm(g).astype(jnp.bfloat16)                          # Identity activation
        g = jnp.dot(w2b_ref[k], g,
                    preferred_element_type=jnp.float32) + b2b_ref[k]
        a2 = alpha_ref[k, 1]
        g = jnp.where(g >= 0.0, g, g * a2)                         # PReLU (1 param)
        return x + g                                               # residual add (f32)

    def one_image(b, carry):
        x = x_ref[b]                                               # (C, HW) f32
        o_ref[b] = jax.lax.fori_loop(0, K, one_block, x)
        return carry

    jax.lax.fori_loop(0, B, one_image, 0)


def residual_chain(x_nchw, params, *, images_per_step=1):
    """Apply K fused ResidualBlocks. x_nchw: (N, C, H, W) f32. params: see init_params."""
    N, C, H, W = x_nchw.shape
    HW = H * W
    K = params["w1a"].shape[0]

    B = int(max(1, min(images_per_step, N)))
    n_steps = -(-N // B)
    N_pad = n_steps * B

    # Reshape only — no NCHW<->NHWC transposes, no extra HBM round-trips.
    x = x_nchw.reshape(N, C, HW).astype(jnp.float32)
    if N_pad != N:
        x = jnp.concatenate(
            [x, jnp.zeros((N_pad - N, C, HW), jnp.float32)], axis=0)

    # 1x1 conv weights stored as (K, C_out, C_in); bf16 operands, f32 MXU accumulate.
    w1a = params["w1a"].astype(jnp.bfloat16)
    w1b = params["w1b"].astype(jnp.bfloat16)
    w2a = params["w2a"].astype(jnp.bfloat16)
    w2b = params["w2b"].astype(jnp.bfloat16)
    # Only the post-IN conv biases are needed (pre-IN biases cancel); (K, C, 1) f32.
    b1b = params["b1b"].reshape(K, C, 1).astype(jnp.float32)
    b2b = params["b2b"].reshape(K, C, 1).astype(jnp.float32)
    # PReLU scalars -> SMEM scalar path.
    alpha = params["alpha"].astype(jnp.float32)                    # (K, 2)

    # VMEM budget: double-buffered in/out blocks + (double-buffered) weights
    # + live f32/bf16 temporaries + headroom; capped at 48 MiB for v7x safety.
    blk_bytes = B * C * HW * 4
    w_bytes = 4 * K * C * C * 2 + 2 * K * C * 4 + K * 2 * 4
    temp_bytes = 4 * C * HW * 4
    need = 4 * blk_bytes + 2 * w_bytes + temp_bytes + (2 << 20)
    vmem_limit = int(min(max(need, 16 << 20), 48 << 20))

    flops = 8 * N_pad * K * C * C * HW              # 4 matmuls/block, 2 flops/MAC
    transcendentals = 2 * N_pad * K * C             # rsqrt per channel per IN
    bytes_accessed = 2 * N_pad * C * HW * 4 + w_bytes

    def wspec():
        return pl.BlockSpec((K, C, C), lambda n: (0, 0, 0))

    def bspec():
        return pl.BlockSpec((K, C, 1), lambda n: (0, 0, 0))

    out = pl.pallas_call(
        residual_chain_kernel,
        out_shape=jax.ShapeDtypeStruct((N_pad, C, HW), jnp.float32),
        grid=(n_steps,),
        in_specs=[
            pl.BlockSpec((B, C, HW), lambda n: (n, 0, 0)),        # x, B images/step
            wspec(), wspec(), wspec(), wspec(),                   # w1a, w1b, w2a, w2b
            bspec(), bspec(),                                     # b1b, b2b
            pl.BlockSpec(memory_space=pltpu.MemorySpace.SMEM),    # PReLU alphas
        ],
        out_specs=pl.BlockSpec((B, C, HW), lambda n: (n, 0, 0)),
        compiler_params=pltpu.CompilerParams(
            dimension_semantics=("parallel",),
            vmem_limit_bytes=vmem_limit,
        ),
        cost_estimate=pl.CostEstimate(
            flops=int(flops),
            transcendentals=int(transcendentals),
            bytes_accessed=int(bytes_accessed),
        ),
    )(x, w1a, w1b, w2a, w2b, b1b, b2b, alpha)

    return out[:N].reshape(N, C, H, W)


def init_params(key, C, K):
    ks = jax.random.split(key, 8)
    s = float(C) ** -0.5
    def w(k): return s * jax.random.normal(k, (K, C, C), jnp.float32)
    def b(k): return 0.05 * jax.random.normal(k, (K, C), jnp.float32)
    return {
        "w1a": w(ks[0]), "b1a": b(ks[1]),
        "w1b": w(ks[2]), "b1b": b(ks[3]),
        "w2a": w(ks[4]), "b2a": b(ks[5]),
        "w2b": w(ks[6]), "b2b": b(ks[7]),
        "alpha": jnp.full((K, 2), 0.25, jnp.float32),   # PReLU default init
    }


def residual_chain_ref(x_nchw, p):
    """Plain-JAX NCHW reference mirroring the PyTorch forward in exact f32
    (includes the pre-IN biases b1a/b2a, which the kernel drops as they are
    mathematically cancelled by the InstanceNorm mean subtraction)."""
    hi = jax.lax.Precision.HIGHEST

    def conv1x1(x, w, b):
        y = jnp.einsum("oc,nchw->nohw", w, x, precision=hi)
        return y + b[None, :, None, None]

    def inorm(x):
        mean = jnp.mean(x, axis=(2, 3), keepdims=True)
        var = jnp.mean(jnp.square(x - mean), axis=(2, 3), keepdims=True)
        return (x - mean) * jax.lax.rsqrt(var + EPS)

    def prelu(x, a):
        return jnp.where(x >= 0.0, x, a * x)

    out = x_nchw.astype(jnp.float32)
    K = p["w1a"].shape[0]
    for k in range(K):
        h = conv1x1(out, p["w1a"][k], p["b1a"][k])
        h = jnp.maximum(inorm(h), 0.0)
        h = conv1x1(h, p["w1b"][k], p["b1b"][k])
        h = prelu(h, p["alpha"][k, 0])

        g = conv1x1(h, p["w2a"][k], p["b2a"][k])
        g = inorm(g)
        g = conv1x1(g, p["w2b"][k], p["b2b"][k])
        g = prelu(g, p["alpha"][k, 1])
        out = out + g
    return out


if __name__ == "__main__":
    root = jax.random.PRNGKey(0)

    def run_case(case_key, *, N, C, H, W, K, images_per_step):
        kx, kp = jax.random.split(case_key)
        x = jax.random.normal(kx, (N, C, H, W), jnp.float32)
        params = init_params(kp, C, K)

        out = jax.block_until_ready(
            residual_chain(x, params, images_per_step=images_per_step))
        assert out.shape == (N, C, H, W)
        assert bool(jnp.all(jnp.isfinite(out)))

        # bf16 MXU operands are an intentional precision policy; bound the error
        # relative to the output magnitude against the exact-f32 reference.
        ref = residual_chain_ref(x, params)
        err = float(jnp.max(jnp.abs(out - ref)))
        scale = float(jnp.max(jnp.abs(ref)))
        assert err <= 1e-2 + 3e-2 * scale, \
            f"max abs err {err} vs f32 ref (max |ref| = {scale})"

    k1, k2 = jax.random.split(root)
    # Real ResidualBlock(256) width, 3 fused blocks, 2 images per grid step.
    run_case(k1, N=2, C=256, H=16, W=16, K=3, images_per_step=2)
    # Smaller aligned case; odd batch exercises the N-padding path.
    run_case(k2, N=3, C=128, H=8, W=16, K=2, images_per_step=2)

    print("KERNEL_OK")
</pallas_src>

<mosaic_0001>
module attributes {stable_mosaic.version = 11 : i64} {
  func.func @residual_chain_kernel(%arg0: i32, %arg1: memref<2x256x256xf32, #tpu.memory_space<vmem>>, %arg2: memref<3x256x256xbf16, #tpu.memory_space<vmem>>, %arg3: memref<3x256x256xbf16, #tpu.memory_space<vmem>>, %arg4: memref<3x256x256xbf16, #tpu.memory_space<vmem>>, %arg5: memref<3x256x256xbf16, #tpu.memory_space<vmem>>, %arg6: memref<3x256x1xf32, #tpu.memory_space<vmem>>, %arg7: memref<3x256x1xf32, #tpu.memory_space<vmem>>, %arg8: memref<3x2xf32, #tpu.memory_space<smem>>, %arg9: memref<2x256x256xf32, #tpu.memory_space<vmem>>) attributes {dimension_semantics = [#tpu.dimension_semantics<parallel>], iteration_bounds = array<i64: 1>, scalar_prefetch = 0 : i64, scratch_operands = 0 : i64, tpu.core_type = #tpu.core_type<tc>, window_params = [{transform_indices = @transform_0, window_bounds = array<i64: 2, 256, 256>}, {pipeline_mode = #tpu.pipeline_mode<synchronous>, transform_indices = @transform_1, window_bounds = array<i64: 3, 256, 256>}, {pipeline_mode = #tpu.pipeline_mode<synchronous>, transform_indices = @transform_2, window_bounds = array<i64: 3, 256, 256>}, {pipeline_mode = #tpu.pipeline_mode<synchronous>, transform_indices = @transform_3, window_bounds = array<i64: 3, 256, 256>}, {pipeline_mode = #tpu.pipeline_mode<synchronous>, transform_indices = @transform_4, window_bounds = array<i64: 3, 256, 256>}, {pipeline_mode = #tpu.pipeline_mode<synchronous>, transform_indices = @transform_5, window_bounds = array<i64: 3, 256, 1>}, {pipeline_mode = #tpu.pipeline_mode<synchronous>, transform_indices = @transform_6, window_bounds = array<i64: 3, 256, 1>}, {transform_indices = @transform_7, window_bounds = array<i64: 3, 2>}, {transform_indices = @transform_8, window_bounds = array<i64: 2, 256, 256>}]} {
    %c0_i32 = arith.constant 0 : i32
    %c2_i32 = arith.constant 2 : i32
    %0 = arith.addi %c0_i32, %c2_i32 : i32
    %c1_i32 = arith.constant 1 : i32
    scf.for %arg10 = %c0_i32 to %0 step %c1_i32  : i32 {
      %1 = arith.index_cast %arg10 : i32 to index
      %c0 = arith.constant 0 : index
      %c0_1 = arith.constant 0 : index
      %2 = vector.load %arg1[%1, %c0, %c0_1] : memref<2x256x256xf32, #tpu.memory_space<vmem>>, vector<1x256x256xf32>
      %3 = vector.shape_cast %2 : vector<1x256x256xf32> to vector<256x256xf32>
      %c0_i32_2 = arith.constant 0 : i32
      %c3_i32 = arith.constant 3 : i32
      %4 = arith.addi %c0_i32_2, %c3_i32 : i32
      %c1_i32_3 = arith.constant 1 : i32
      %5 = scf.for %arg11 = %c0_i32_2 to %4 step %c1_i32_3 iter_args(%arg12 = %3) -> (vector<256x256xf32>)  : i32 {
        %10 = arith.index_cast %arg11 : i32 to index
        %c0_7 = arith.constant 0 : index
        %c0_8 = arith.constant 0 : index
        %11 = vector.load %arg2[%10, %c0_7, %c0_8] : memref<3x256x256xbf16, #tpu.memory_space<vmem>>, vector<1x256x256xbf16>
        %12 = vector.shape_cast %11 : vector<1x256x256xbf16> to vector<256x256xbf16>
        %13 = arith.truncf %arg12 : vector<256x256xf32> to vector<256x256xbf16>
        %cst = arith.constant dense<0.000000e+00> : vector<256x256xf32>
        %14 = tpu.matmul %12, %13, %cst {dimension_numbers = #tpu.dot_dimension_numbers<[1], [0], [0], [1], [0, 0, 1, 1], [], []>} : vector<256x256xbf16>, vector<256x256xbf16>, vector<256x256xf32> -> vector<256x256xf32>
        %cst_9 = arith.constant dense<0.000000e+00> : vector<256xf32>
        %15 = vector.multi_reduction <add>, %14, %cst_9 [1] : vector<256x256xf32> to vector<256xf32>
        %16 = vector.shape_cast %15 : vector<256xf32> to vector<256x1xf32>
        %cst_10 = arith.constant 3.906250e-03 : f32
        %17 = vector.broadcast %cst_10 : f32 to vector<256x1xf32>
        %18 = arith.mulf %16, %17 : vector<256x1xf32>
        %19 = vector.broadcast %18 : vector<256x1xf32> to vector<256x256xf32>
        %20 = arith.subf %14, %19 : vector<256x256xf32>
        %21 = arith.mulf %20, %20 : vector<256x256xf32>
        %cst_11 = arith.constant dense<0.000000e+00> : vector<256xf32>
        %22 = vector.multi_reduction <add>, %21, %cst_11 [1] : vector<256x256xf32> to vector<256xf32>
        %23 = vector.shape_cast %22 : vector<256xf32> to vector<256x1xf32>
        %cst_12 = arith.constant 3.906250e-03 : f32
        %24 = vector.broadcast %cst_12 : f32 to vector<256x1xf32>
        %25 = arith.mulf %23, %24 : vector<256x1xf32>
        %cst_13 = arith.constant 9.99999974E-6 : f32
        %26 = vector.broadcast %cst_13 : f32 to vector<256x1xf32>
        %27 = arith.addf %25, %26 : vector<256x1xf32>
        %28 = math.rsqrt %27 : vector<256x1xf32>
        %29 = vector.broadcast %28 : vector<256x1xf32> to vector<256x256xf32>
        %30 = arith.mulf %20, %29 : vector<256x256xf32>
        %cst_14 = arith.constant 0.000000e+00 : f32
        %31 = vector.broadcast %cst_14 : f32 to vector<256x256xf32>
        %32 = arith.maximumf %30, %31 : vector<256x256xf32>
        %33 = arith.truncf %32 : vector<256x256xf32> to vector<256x256xbf16>
        %34 = arith.index_cast %arg11 : i32 to index
        %c0_15 = arith.constant 0 : index
        %c0_16 = arith.constant 0 : index
        %35 = vector.load %arg3[%34, %c0_15, %c0_16] : memref<3x256x256xbf16, #tpu.memory_space<vmem>>, vector<1x256x256xbf16>
        %36 = vector.shape_cast %35 : vector<1x256x256xbf16> to vector<256x256xbf16>
        %cst_17 = arith.constant dense<0.000000e+00> : vector<256x256xf32>
        %37 = tpu.matmul %36, %33, %cst_17 {dimension_numbers = #tpu.dot_dimension_numbers<[1], [0], [0], [1], [0, 0, 1, 1], [], []>} : vector<256x256xbf16>, vector<256x256xbf16>, vector<256x256xf32> -> vector<256x256xf32>
        %38 = arith.index_cast %arg11 : i32 to index
        %c0_18 = arith.constant 0 : index
        %c0_19 = arith.constant 0 : index
        %39 = vector.load %arg6[%38, %c0_18, %c0_19] : memref<3x256x1xf32, #tpu.memory_space<vmem>>, vector<1x256x1xf32>
        %40 = vector.shape_cast %39 : vector<1x256x1xf32> to vector<256x1xf32>
        %41 = vector.broadcast %40 : vector<256x1xf32> to vector<256x256xf32>
        %42 = arith.addf %37, %41 : vector<256x256xf32>
        %43 = arith.index_cast %arg11 : i32 to index
        %c0_20 = arith.constant 0 : index
        %44 = memref.load %arg8[%43, %c0_20] : memref<3x2xf32, #tpu.memory_space<smem>>
        %cst_21 = arith.constant 0.000000e+00 : f32
        %45 = vector.broadcast %cst_21 : f32 to vector<256x256xf32>
        %46 = arith.cmpf oge, %42, %45 : vector<256x256xf32>
        %47 = vector.broadcast %44 : f32 to vector<256x256xf32>
        %48 = arith.mulf %42, %47 : vector<256x256xf32>
        %49 = arith.select %46, %42, %48 : vector<256x256xi1>, vector<256x256xf32>
        %50 = arith.index_cast %arg11 : i32 to index
        %c0_22 = arith.constant 0 : index
        %c0_23 = arith.constant 0 : index
        %51 = vector.load %arg4[%50, %c0_22, %c0_23] : memref<3x256x256xbf16, #tpu.memory_space<vmem>>, vector<1x256x256xbf16>
        %52 = vector.shape_cast %51 : vector<1x256x256xbf16> to vector<256x256xbf16>
        %53 = arith.truncf %49 : vector<256x256xf32> to vector<256x256xbf16>
        %cst_24 = arith.constant dense<0.000000e+00> : vector<256x256xf32>
        %54 = tpu.matmul %52, %53, %cst_24 {dimension_numbers = #tpu.dot_dimension_numbers<[1], [0], [0], [1], [0, 0, 1, 1], [], []>} : vector<256x256xbf16>, vector<256x256xbf16>, vector<256x256xf32> -> vector<256x256xf32>
        %cst_25 = arith.constant dense<0.000000e+00> : vector<256xf32>
        %55 = vector.multi_reduction <add>, %54, %cst_25 [1] : vector<256x256xf32> to vector<256xf32>
        %56 = vector.shape_cast %55 : vector<256xf32> to vector<256x1xf32>
        %cst_26 = arith.constant 3.906250e-03 : f32
        %57 = vector.broadcast %cst_26 : f32 to vector<256x1xf32>
        %58 = arith.mulf %56, %57 : vector<256x1xf32>
        %59 = vector.broadcast %58 : vector<256x1xf32> to vector<256x256xf32>
        %60 = arith.subf %54, %59 : vector<256x256xf32>
        %61 = arith.mulf %60, %60 : vector<256x256xf32>
        %cst_27 = arith.constant dense<0.000000e+00> : vector<256xf32>
        %62 = vector.multi_reduction <add>, %61, %cst_27 [1] : vector<256x256xf32> to vector<256xf32>
        %63 = vector.shape_cast %62 : vector<256xf32> to vector<256x1xf32>
        %cst_28 = arith.constant 3.906250e-03 : f32
        %64 = vector.broadcast %cst_28 : f32 to vector<256x1xf32>
        %65 = arith.mulf %63, %64 : vector<256x1xf32>
        %cst_29 = arith.constant 9.99999974E-6 : f32
        %66 = vector.broadcast %cst_29 : f32 to vector<256x1xf32>
        %67 = arith.addf %65, %66 : vector<256x1xf32>
        %68 = math.rsqrt %67 : vector<256x1xf32>
        %69 = vector.broadcast %68 : vector<256x1xf32> to vector<256x256xf32>
        %70 = arith.mulf %60, %69 : vector<256x256xf32>
        %71 = arith.truncf %70 : vector<256x256xf32> to vector<256x256xbf16>
        %72 = arith.index_cast %arg11 : i32 to index
        %c0_30 = arith.constant 0 : index
        %c0_31 = arith.constant 0 : index
        %73 = vector.load %arg5[%72, %c0_30, %c0_31] : memref<3x256x256xbf16, #tpu.memory_space<vmem>>, vector<1x256x256xbf16>
        %74 = vector.shape_cast %73 : vector<1x256x256xbf16> to vector<256x256xbf16>
        %cst_32 = arith.constant dense<0.000000e+00> : vector<256x256xf32>
        %75 = tpu.matmul %74, %71, %cst_32 {dimension_numbers = #tpu.dot_dimension_numbers<[1], [0], [0], [1], [0, 0, 1, 1], [], []>} : vector<256x256xbf16>, vector<256x256xbf16>, vector<256x256xf32> -> vector<256x256xf32>
        %76 = arith.index_cast %arg11 : i32 to index
        %c0_33 = arith.constant 0 : index
        %c0_34 = arith.constant 0 : index
        %77 = vector.load %arg7[%76, %c0_33, %c0_34] : memref<3x256x1xf32, #tpu.memory_space<vmem>>, vector<1x256x1xf32>
        %78 = vector.shape_cast %77 : vector<1x256x1xf32> to vector<256x1xf32>
        %79 = vector.broadcast %78 : vector<256x1xf32> to vector<256x256xf32>
        %80 = arith.addf %75, %79 : vector<256x256xf32>
        %81 = arith.index_cast %arg11 : i32 to index
        %c1 = arith.constant 1 : index
        %82 = memref.load %arg8[%81, %c1] : memref<3x2xf32, #tpu.memory_space<smem>>
        %cst_35 = arith.constant 0.000000e+00 : f32
        %83 = vector.broadcast %cst_35 : f32 to vector<256x256xf32>
        %84 = arith.cmpf oge, %80, %83 : vector<256x256xf32>
        %85 = vector.broadcast %82 : f32 to vector<256x256xf32>
        %86 = arith.mulf %80, %85 : vector<256x256xf32>
        %87 = arith.select %84, %80, %86 : vector<256x256xi1>, vector<256x256xf32>
        %88 = arith.addf %arg12, %87 : vector<256x256xf32>
        scf.yield %88 : vector<256x256xf32>
      }
      %c3_i32_4 = arith.constant 3 : i32
      %6 = arith.index_cast %arg10 : i32 to index
      %c0_5 = arith.constant 0 : index
      %c0_6 = arith.constant 0 : index
      %7 = vector.load %arg9[%6, %c0_5, %c0_6] : memref<2x256x256xf32, #tpu.memory_space<vmem>>, vector<1x256x256xf32>
      %8 = vector.shape_cast %7 : vector<1x256x256xf32> to vector<256x256xf32>
      %9 = vector.shape_cast %5 : vector<256x256xf32> to vector<1x256x256xf32>
      tpu.vector_store %arg9[%6, %c0_5, %c0_6], %9 {strides = array<i32>} : memref<2x256x256xf32, #tpu.memory_space<vmem>>, vector<1x256x256xf32>,
    }
    %c2_i32_0 = arith.constant 2 : i32
    return
  }
  func.func @transform_0(%arg0: i32) -> (i32, i32, i32) {
    %c0_i32 = arith.constant 0 : i32
    %c0_i32_0 = arith.constant 0 : i32
    %c0_i32_1 = arith.constant 0 : i32
    return %arg0, %c0_i32, %c0_i32_0 : i32, i32, i32
  }
  func.func @transform_1(%arg0: i32) -> (i32, i32, i32) {
    %c0_i32 = arith.constant 0 : i32
    %c0_i32_0 = arith.constant 0 : i32
    %c0_i32_1 = arith.constant 0 : i32
    %c0_i32_2 = arith.constant 0 : i32
    return %c0_i32, %c0_i32_0, %c0_i32_1 : i32, i32, i32
  }
  func.func @transform_2(%arg0: i32) -> (i32, i32, i32) {
    %c0_i32 = arith.constant 0 : i32
    %c0_i32_0 = arith.constant 0 : i32
    %c0_i32_1 = arith.constant 0 : i32
    %c0_i32_2 = arith.constant 0 : i32
    return %c0_i32, %c0_i32_0, %c0_i32_1 : i32, i32, i32
  }
  func.func @transform_3(%arg0: i32) -> (i32, i32, i32) {
    %c0_i32 = arith.constant 0 : i32
    %c0_i32_0 = arith.constant 0 : i32
    %c0_i32_1 = arith.constant 0 : i32
    %c0_i32_2 = arith.constant 0 : i32
    return %c0_i32, %c0_i32_0, %c0_i32_1 : i32, i32, i32
  }
  func.func @transform_4(%arg0: i32) -> (i32, i32, i32) {
    %c0_i32 = arith.constant 0 : i32
    %c0_i32_0 = arith.constant 0 : i32
    %c0_i32_1 = arith.constant 0 : i32
    %c0_i32_2 = arith.constant 0 : i32
    return %c0_i32, %c0_i32_0, %c0_i32_1 : i32, i32, i32
  }
  func.func @transform_5(%arg0: i32) -> (i32, i32, i32) {
    %c0_i32 = arith.constant 0 : i32
    %c0_i32_0 = arith.constant 0 : i32
    %c0_i32_1 = arith.constant 0 : i32
    %c0_i32_2 = arith.constant 0 : i32
    return %c0_i32, %c0_i32_0, %c0_i32_1 : i32, i32, i32
  }
  func.func @transform_6(%arg0: i32) -> (i32, i32, i32) {
    %c0_i32 = arith.constant 0 : i32
    %c0_i32_0 = arith.constant 0 : i32
    %c0_i32_1 = arith.constant 0 : i32
    %c0_i32_2 = arith.constant 0 : i32
    return %c0_i32, %c0_i32_0, %c0_i32_1 : i32, i32, i32
  }
  func.func @transform_7(%arg0: i32) -> (i32, i32) {
    %c0_i32 = arith.constant 0 : i32
    %c0_i32_0 = arith.constant 0 : i32
    %c0_i32_1 = arith.constant 0 : i32
    return %c0_i32, %c0_i32_0 : i32, i32
  }
  func.func @transform_8(%arg0: i32) -> (i32, i32, i32) {
    %c0_i32 = arith.constant 0 : i32
    %c0_i32_0 = arith.constant 0 : i32
    %c0_i32_1 = arith.constant 0 : i32
    return %arg0, %c0_i32, %c0_i32_0 : i32, i32, i32
  }
}

</mosaic_0001>

<llo_original>
// kernel: tpu_custom_call.1
$region0: #{tpu_custom_call.1}
  #allocation0 [shape = 'u32[]', space=smem, size = 0x4, offset = 0x4, fixed_abs, tag = 'smem constant byte address 0x4 - core index']
  #allocation1 [shape = 'u32[144,128]{1,0:T(1,128)}', space=vmem, size = 0x12000, scoped, tag = 'internal scratch']
  %s0 = inlined_call_operand.vmem [shape: f32[2,256,256], index: 0, kind: input, shape index: {}]
  %s1 = inlined_call_operand.hbm [shape: bf16[3,256,256], index: 1, kind: input, shape index: {}]
  %s2 = inlined_call_operand.hbm [shape: bf16[3,256,256], index: 2, kind: input, shape index: {}]
  %s3 = inlined_call_operand.hbm [shape: bf16[3,256,256], index: 3, kind: input, shape index: {}]
  %s4 = inlined_call_operand.hbm [shape: bf16[3,256,256], index: 4, kind: input, shape index: {}]
  %s5 = inlined_call_operand.vmem [shape: f32[3,256,1], index: 5, kind: input, shape index: {}]
  %s6 = inlined_call_operand.vmem [shape: f32[3,256,1], index: 6, kind: input, shape index: {}]
  %s7 = inlined_call_operand.vmem [shape: f32[3,2], index: 7, kind: input, shape index: {}]
  %s8 = inlined_call_operand.hbm [shape: f32[2,256,256], index: 8, kind: output, shape index: {}]
  %s9 = sld [smem:[#allocation0]]
  $region76: #{tpu_custom_call.1} parent=0
    _
  %s11 = ssub.s32 1, %s9
  %s12 = scalar_select 0, %s11, %s9
  $region1: #{tpu_custom_call.1} parent=0
    #allocation2 [shape = 'u8[393216]{0}', space=vmem, size = 0x60000, scoped, tag = 'input window, operand 1, single buffered']
    #allocation3 [shape = 's32[1]{0}', space=sflag, size = 0x4, scoped, tag = 'scoped memory for tpu_custom_call.1']
    #allocation4 [shape = 's32[1]{0}', space=sflag, size = 0x4, scoped, tag = 'scoped memory for tpu_custom_call.1']
    #allocation5 [shape = 's32[1]{0}', space=sflag, size = 0x4, scoped, tag = 'scoped memory for tpu_custom_call.1']
    #allocation6 [shape = 'u8[393216]{0}', space=vmem, size = 0x60000, scoped, tag = 'input window, operand 2, single buffered']
    #allocation7 [shape = 's32[1]{0}', space=sflag, size = 0x4, scoped, tag = 'scoped memory for tpu_custom_call.1']
    #allocation8 [shape = 'u8[393216]{0}', space=vmem, size = 0x60000, scoped, tag = 'input window, operand 3, single buffered']
    #allocation9 [shape = 'u8[393216]{0}', space=vmem, size = 0x60000, scoped, tag = 'input window, operand 4, single buffered']
    #allocation10 [shape = 's32[1]{0}', space=sflag, size = 0x4, scoped, tag = 'scoped memory for tpu_custom_call.1']
    #allocation11 [shape = 'u8[2048]{0}', space=smem, size = 0x800, scoped, tag = 'input window, operand 7, single buffered']
    #allocation12 [shape = 'u8[524288]{0}', space=vmem, size = 0x80000, scoped, tag = 'output window, operand 0, single buffered']
    %13 = vsyncpa [#allocation3], 0
    %14 = vsyncpa [#allocation7], 0
    %15 = vsyncpa [#allocation10], 0
    %16 = vsyncpa [#allocation5], 0
    %17 = vsyncpa [#allocation4], 0
    // Predicated region
    $region2: #{tpu_custom_call.1} parent=1 // pred_check
      _
    $region3: #{tpu_custom_call.1} parent=1 // pred_check_branch
      %19 = sbr.rel (0) target = $region5
    $region4: #{tpu_custom_call.1} parent=1 // pred_region
      _
    $region5: #{tpu_custom_call.1} parent=1 // pred_fallthru
      _
    // Predicated region
    $region6: #{tpu_custom_call.1} parent=1 // pred_check
      _
    $region7: #{tpu_custom_call.1} parent=1 // pred_check_branch
      %21 = sbr.rel (0) target = $region9
    $region8: #{tpu_custom_call.1} parent=1 // pred_region
      %s23 = ssub.s32 12288, 12288
      %24 = vsyncadd [#allocation3], %s23
      %s25 = sshll.u32 [#allocation2], 4
      %s26 = int_to_ptr.vmem [resolvable:$true] %s25
      %31 = dma.hbm_to_vmem [thread:$0]  %s1, 12288, %s26, [#allocation3], 128, 128, 8
    $region9: #{tpu_custom_call.1} parent=1 // pred_fallthru
      _
    // Predicated region
    $region10: #{tpu_custom_call.1} parent=1 // pred_check
      _
    $region11: #{tpu_custom_call.1} parent=1 // pred_check_branch
      %33 = sbr.rel (0) target = $region13
    $region12: #{tpu_custom_call.1} parent=1 // pred_region
      %s35 = ssub.s32 12288, 12288
      %36 = vsyncadd [#allocation7], %s35
      %s37 = sshll.u32 [#allocation6], 4
      %s38 = int_to_ptr.vmem [resolvable:$true] %s37
      %43 = dma.hbm_to_vmem [thread:$0]  %s2, 12288, %s38, [#allocation7], 128, 128, 8
    $region13: #{tpu_custom_call.1} parent=1 // pred_fallthru
      _
    // Predicated region
    $region14: #{tpu_custom_call.1} parent=1 // pred_check
      _
    $region15: #{tpu_custom_call.1} parent=1 // pred_check_branch
      %45 = sbr.rel (0) target = $region17
    $region16: #{tpu_custom_call.1} parent=1 // pred_region
      %s47 = ssub.s32 12288, 12288
      %48 = vsyncadd [#allocation7], %s47
      %s49 = sshll.u32 [#allocation8], 4
      %s50 = int_to_ptr.vmem [resolvable:$true] %s49
      %55 = dma.hbm_to_vmem [thread:$0]  %s3, 12288, %s50, [#allocation7], 128, 128, 8
    $region17: #{tpu_custom_call.1} parent=1 // pred_fallthru
      _
    // Predicated region
    $region18: #{tpu_custom_call.1} parent=1 // pred_check
      _
    $region19: #{tpu_custom_call.1} parent=1 // pred_check_branch
      %57 = sbr.rel (0) target = $region21
    $region20: #{tpu_custom_call.1} parent=1 // pred_region
      %s59 = ssub.s32 12288, 12288
      %60 = vsyncadd [#allocation10], %s59
      %s61 = sshll.u32 [#allocation9], 4
      %s62 = int_to_ptr.vmem [resolvable:$true] %s61
      %67 = dma.hbm_to_vmem [thread:$0]  %s4, 12288, %s62, [#allocation10], 128, 128, 8
    $region21: #{tpu_custom_call.1} parent=1 // pred_fallthru
      _
    // Predicated region
    $region22: #{tpu_custom_call.1} parent=1 // pred_check
      _
    $region23: #{tpu_custom_call.1} parent=1 // pred_check_branch
      %69 = sbr.rel (0) target = $region25
    $region24: #{tpu_custom_call.1} parent=1 // pred_region
      _
    $region25: #{tpu_custom_call.1} parent=1 // pred_fallthru
      _
    // Predicated region
    $region26: #{tpu_custom_call.1} parent=1 // pred_check
      _
    $region27: #{tpu_custom_call.1} parent=1 // pred_check_branch
      %71 = sbr.rel (0) target = $region29
    $region28: #{tpu_custom_call.1} parent=1 // pred_region
      _
    $region29: #{tpu_custom_call.1} parent=1 // pred_fallthru
      _
    // Predicated region
    $region30: #{tpu_custom_call.1} parent=1 // pred_check
      _
    $region31: #{tpu_custom_call.1} parent=1 // pred_check_branch
      %73 = sbr.rel (0) target = $region33
    $region32: #{tpu_custom_call.1} parent=1 // pred_region
      %s75 = ssub.s32 64, 64
      %76 = vsyncadd [#allocation5], %s75
      %s78 = sshll.u32 %s7, 4
      %s79 = int_to_ptr.vmem [resolvable:$true] %s78
      %81 = dma.vmem_to_smem %s79, 64, [#allocation11], [#allocation5]
    $region33: #{tpu_custom_call.1} parent=1 // pred_fallthru
      _
    // Predicated region
    $region34: #{tpu_custom_call.1} parent=1 // pred_check
      _
    $region35: #{tpu_custom_call.1} parent=1 // pred_check_branch
      %83 = sbr.rel (0) target = $region37
    $region36: #{tpu_custom_call.1} parent=1 // pred_region
      %84 = dma.done [#allocation3], 12288
    $region37: #{tpu_custom_call.1} parent=1 // pred_fallthru
      _
    // Predicated region
    $region38: #{tpu_custom_call.1} parent=1 // pred_check
      _
    $region39: #{tpu_custom_call.1} parent=1 // pred_check_branch
      %86 = sbr.rel (0) target = $region41
    $region40: #{tpu_custom_call.1} parent=1 // pred_region
      %87 = dma.done [#allocation7], 12288
    $region41: #{tpu_custom_call.1} parent=1 // pred_fallthru
      _
    // Predicated region
    $region42: #{tpu_custom_call.1} parent=1 // pred_check
      _
    $region43: #{tpu_custom_call.1} parent=1 // pred_check_branch
      %89 = sbr.rel (0) target = $region45
    $region44: #{tpu_custom_call.1} parent=1 // pred_region
      %90 = dma.done [#allocation7], 12288
    $region45: #{tpu_custom_call.1} parent=1 // pred_fallthru
      _
    // Predicated region
    $region46: #{tpu_custom_call.1} parent=1 // pred_check
      _
    $region47: #{tpu_custom_call.1} parent=1 // pred_check_branch
      %92 = sbr.rel (0) target = $region49
    $region48: #{tpu_custom_call.1} parent=1 // pred_region
      %93 = dma.done [#allocation10], 12288
    $region49: #{tpu_custom_call.1} parent=1 // pred_fallthru
      _
    // Predicated region
    $region50: #{tpu_custom_call.1} parent=1 // pred_check
      _
    $region51: #{tpu_custom_call.1} parent=1 // pred_check_branch
      %95 = sbr.rel (0) target = $region53
    $region52: #{tpu_custom_call.1} parent=1 // pred_region
      %96 = dma.done [#allocation5], 64
    $region53: #{tpu_custom_call.1} parent=1 // pred_fallthru
      _
    %97 = sfence
    loop: start=0, step=1, limit=2
    $region54: #{tpu_custom_call.1} parent=1 // loop_pre_header
      _
    $region55: #{tpu_custom_call.1} parent=1 // loop_header
      %s99 = sphi 0, %s103
      %p100 = scmp.ge.s32.totalorder %s99, 2
    $region56: #{tpu_custom_call.1} parent=1 // loop_header_branch
      %102 = sbr.rel (%p100) target = $region60
    $region57: #{tpu_custom_call.1} parent=1 // loop_body
      %s104 = smul.u32 %s99, 64
      %s105 = smul.addr %s104, 8
      %s106 = scalar_lea.vmem %s0, %s105
      %v107 = vld [vmem:[%s106] sm:$0xff]
      %v108 = vld [vmem:[%s106 + $0x8] sm:$0xff]
      %v109 = vld [vmem:[%s106 + $0x10] sm:$0xff]
      %v110 = vld [vmem:[%s106 + $0x18] sm:$0xff]
      %v111 = vld [vmem:[%s106 + $0x20] sm:$0xff]
      %v112 = vld [vmem:[%s106 + $0x28] sm:$0xff]
      %v113 = vld [vmem:[%s106 + $0x30] sm:$0xff]
      %v114 = vld [vmem:[%s106 + $0x38] sm:$0xff]
      %v115 = vld [vmem:[%s106 + $0x40] sm:$0xff]
      %v116 = vld [vmem:[%s106 + $0x48] sm:$0xff]
      %v117 = vld [vmem:[%s106 + $0x50] sm:$0xff]
      %v118 = vld [vmem:[%s106 + $0x58] sm:$0xff]
      %v119 = vld [vmem:[%s106 + $0x60] sm:$0xff]
      %v120 = vld [vmem:[%s106 + $0x68] sm:$0xff]
      %v121 = vld [vmem:[%s106 + $0x70] sm:$0xff]
      %v122 = vld [vmem:[%s106 + $0x78] sm:$0xff]
      %v123 = vld [vmem:[%s106 + $0x80] sm:$0xff]
      %v124 = vld [vmem:[%s106 + $0x88] sm:$0xff]
      %v125 = vld [vmem:[%s106 + $0x90] sm:$0xff]
      %v126 = vld [vmem:[%s106 + $0x98] sm:$0xff]
      %v127 = vld [vmem:[%s106 + $0xa0] sm:$0xff]
      %v128 = vld [vmem:[%s106 + $0xa8] sm:$0xff]
      %v129 = vld [vmem:[%s106 + $0xb0] sm:$0xff]
      %v130 = vld [vmem:[%s106 + $0xb8] sm:$0xff]
      %v131 = vld [vmem:[%s106 + $0xc0] sm:$0xff]
      %v132 = vld [vmem:[%s106 + $0xc8] sm:$0xff]
      %v133 = vld [vmem:[%s106 + $0xd0] sm:$0xff]
      %v134 = vld [vmem:[%s106 + $0xd8] sm:$0xff]
      %v135 = vld [vmem:[%s106 + $0xe0] sm:$0xff]
      %v136 = vld [vmem:[%s106 + $0xe8] sm:$0xff]
      %v137 = vld [vmem:[%s106 + $0xf0] sm:$0xff]
      %v138 = vld [vmem:[%s106 + $0xf8] sm:$0xff]
      %v139 = vld [vmem:[%s106 + $0x100] sm:$0xff]
      %v140 = vld [vmem:[%s106 + $0x108] sm:$0xff]
      %v141 = vld [vmem:[%s106 + $0x110] sm:$0xff]
      %v142 = vld [vmem:[%s106 + $0x118] sm:$0xff]
      %v143 = vld [vmem:[%s106 + $0x120] sm:$0xff]
      %v144 = vld [vmem:[%s106 + $0x128] sm:$0xff]
      %v145 = vld [vmem:[%s106 + $0x130] sm:$0xff]
      %v146 = vld [vmem:[%s106 + $0x138] sm:$0xff]
      %v147 = vld [vmem:[%s106 + $0x140] sm:$0xff]
      %v148 = vld [vmem:[%s106 + $0x148] sm:$0xff]
      %v149 = vld [vmem:[%s106 + $0x150] sm:$0xff]
      %v150 = vld [vmem:[%s106 + $0x158] sm:$0xff]
      %v151 = vld [vmem:[%s106 + $0x160] sm:$0xff]
      %v152 = vld [vmem:[%s106 + $0x168] sm:$0xff]
      %v153 = vld [vmem:[%s106 + $0x170] sm:$0xff]
      %v154 = vld [vmem:[%s106 + $0x178] sm:$0xff]
      %v155 = vld [vmem:[%s106 + $0x180] sm:$0xff]
      %v156 = vld [vmem:[%s106 + $0x188] sm:$0xff]
      %v157 = vld [vmem:[%s106 + $0x190] sm:$0xff]
      %v158 = vld [vmem:[%s106 + $0x198] sm:$0xff]
      %v159 = vld [vmem:[%s106 + $0x1a0] sm:$0xff]
      %v160 = vld [vmem:[%s106 + $0x1a8] sm:$0xff]
      %v161 = vld [vmem:[%s106 + $0x1b0] sm:$0xff]
      %v162 = vld [vmem:[%s106 + $0x1b8] sm:$0xff]
      %v163 = vld [vmem:[%s106 + $0x1c0] sm:$0xff]
      %v164 = vld [vmem:[%s106 + $0x1c8] sm:$0xff]
      %v165 = vld [vmem:[%s106 + $0x1d0] sm:$0xff]
      %v166 = vld [vmem:[%s106 + $0x1d8] sm:$0xff]
      %v167 = vld [vmem:[%s106 + $0x1e0] sm:$0xff]
      %v168 = vld [vmem:[%s106 + $0x1e8] sm:$0xff]
      %v169 = vld [vmem:[%s106 + $0x1f0] sm:$0xff]
      %v170 = vld [vmem:[%s106 + $0x1f8] sm:$0xff]
      loop: start=0, step=1, limit=3
      $region61: #{tpu_custom_call.1} parent=57 // loop_pre_header
        _
      $region62: #{tpu_custom_call.1} parent=57 // loop_header
        %s172 = sphi 0, %s176
        %p173 = scmp.ge.s32.totalorder %s172, 3
        %v177 = vphi %v107, %v3783
        %v178 = vphi %v108, %v3784
        %v179 = vphi %v109, %v3785
        %v180 = vphi %v110, %v3786
        %v181 = vphi %v111, %v3787
        %v182 = vphi %v112, %v3788
        %v183 = vphi %v113, %v3789
        %v184 = vphi %v114, %v3790
        %v185 = vphi %v115, %v3791
        %v186 = vphi %v116, %v3792
        %v187 = vphi %v117, %v3793
        %v188 = vphi %v118, %v3794
        %v189 = vphi %v119, %v3795
        %v190 = vphi %v120, %v3796
        %v191 = vphi %v121, %v3797
        %v192 = vphi %v122, %v3798
        %v193 = vphi %v123, %v3799
        %v194 = vphi %v124, %v3800
        %v195 = vphi %v125, %v3801
        %v196 = vphi %v126, %v3802
        %v197 = vphi %v127, %v3803
        %v198 = vphi %v128, %v3804
        %v199 = vphi %v129, %v3805
        %v200 = vphi %v130, %v3806
        %v201 = vphi %v131, %v3807
        %v202 = vphi %v132, %v3808
        %v203 = vphi %v133, %v3809
        %v204 = vphi %v134, %v3810
        %v205 = vphi %v135, %v3811
        %v206 = vphi %v136, %v3812
        %v207 = vphi %v137, %v3813
        %v208 = vphi %v138, %v3814
        %v209 = vphi %v139, %v3815
        %v210 = vphi %v140, %v3816
        %v211 = vphi %v141, %v3817
        %v212 = vphi %v142, %v3818
        %v213 = vphi %v143, %v3819
        %v214 = vphi %v144, %v3820
        %v215 = vphi %v145, %v3821
        %v216 = vphi %v146, %v3822
        %v217 = vphi %v147, %v3823
        %v218 = vphi %v148, %v3824
        %v219 = vphi %v149, %v3825
        %v220 = vphi %v150, %v3826
        %v221 = vphi %v151, %v3827
        %v222 = vphi %v152, %v3828
        %v223 = vphi %v153, %v3829
        %v224 = vphi %v154, %v3830
        %v225 = vphi %v155, %v3831
        %v226 = vphi %v156, %v3832
        %v227 = vphi %v157, %v3833
        %v228 = vphi %v158, %v3834
        %v229 = vphi %v159, %v3835
        %v230 = vphi %v160, %v3836
        %v231 = vphi %v161, %v3837
        %v232 = vphi %v162, %v3838
        %v233 = vphi %v163, %v3839
        %v234 = vphi %v164, %v3840
        %v235 = vphi %v165, %v3841
        %v236 = vphi %v166, %v3842
        %v237 = vphi %v167, %v3843
        %v238 = vphi %v168, %v3844
        %v239 = vphi %v169, %v3845
        %v240 = vphi %v170, %v3846
      $region63: #{tpu_custom_call.1} parent=57 // loop_header_branch
        %175 = sbr.rel (%p173) target = $region67
      $region64: #{tpu_custom_call.1} parent=57 // loop_body
        %s241 = smul.u32 %s172, 64
        %s242 = smul.addr %s241, 4
        %s243 = scalar_lea.vmem [#allocation2], %s242
        %v244 = vld [vmem:[%s243] sm:$0xff]
        %v245 = vld [vmem:[%s243 + $0x8] sm:$0xff]
        %v246 = vld [vmem:[%s243 + $0x10] sm:$0xff]
        %v247 = vld [vmem:[%s243 + $0x18] sm:$0xff]
        %v248 = vld [vmem:[%s243 + $0x20] sm:$0xff]
        %v249 = vld [vmem:[%s243 + $0x28] sm:$0xff]
        %v250 = vld [vmem:[%s243 + $0x30] sm:$0xff]
        %v251 = vld [vmem:[%s243 + $0x38] sm:$0xff]
        %v252 = vld [vmem:[%s243 + $0x40] sm:$0xff]
        %v253 = vld [vmem:[%s243 + $0x48] sm:$0xff]
        %v254 = vld [vmem:[%s243 + $0x50] sm:$0xff]
        %v255 = vld [vmem:[%s243 + $0x58] sm:$0xff]
        %v256 = vld [vmem:[%s243 + $0x60] sm:$0xff]
        %v257 = vld [vmem:[%s243 + $0x68] sm:$0xff]
        %v258 = vld [vmem:[%s243 + $0x70] sm:$0xff]
        %v259 = vld [vmem:[%s243 + $0x78] sm:$0xff]
        %v260 = vld [vmem:[%s243 + $0x80] sm:$0xff]
        %v261 = vld [vmem:[%s243 + $0x88] sm:$0xff]
        %v262 = vld [vmem:[%s243 + $0x90] sm:$0xff]
        %v263 = vld [vmem:[%s243 + $0x98] sm:$0xff]
        %v264 = vld [vmem:[%s243 + $0xa0] sm:$0xff]
        %v265 = vld [vmem:[%s243 + $0xa8] sm:$0xff]
        %v266 = vld [vmem:[%s243 + $0xb0] sm:$0xff]
        %v267 = vld [vmem:[%s243 + $0xb8] sm:$0xff]
        %v268 = vld [vmem:[%s243 + $0xc0] sm:$0xff]
        %v269 = vld [vmem:[%s243 + $0xc8] sm:$0xff]
        %v270 = vld [vmem:[%s243 + $0xd0] sm:$0xff]
        %v271 = vld [vmem:[%s243 + $0xd8] sm:$0xff]
        %v272 = vld [vmem:[%s243 + $0xe0] sm:$0xff]
        %v273 = vld [vmem:[%s243 + $0xe8] sm:$0xff]
        %v274 = vld [vmem:[%s243 + $0xf0] sm:$0xff]
        %v275 = vld [vmem:[%s243 + $0xf8] sm:$0xff]
        %v276 = vpack.c.bf16 %v179, %v177
        %v277 = vpack.c.bf16 %v180, %v178
        %v278 = vpack.c.bf16 %v183, %v181
        %v279 = vpack.c.bf16 %v184, %v182
        %v280 = vpack.c.bf16 %v187, %v185
        %v281 = vpack.c.bf16 %v188, %v186
        %v282 = vpack.c.bf16 %v191, %v189
        %v283 = vpack.c.bf16 %v192, %v190
        %v284 = vpack.c.bf16 %v195, %v193
        %v285 = vpack.c.bf16 %v196, %v194
        %v286 = vpack.c.bf16 %v199, %v197
        %v287 = vpack.c.bf16 %v200, %v198
        %v288 = vpack.c.bf16 %v203, %v201
        %v289 = vpack.c.bf16 %v204, %v202
        %v290 = vpack.c.bf16 %v207, %v205
        %v291 = vpack.c.bf16 %v208, %v206
        %v292 = vpack.c.bf16 %v211, %v209
        %v293 = vpack.c.bf16 %v212, %v210
        %v294 = vpack.c.bf16 %v215, %v213
        %v295 = vpack.c.bf16 %v216, %v214
        %v296 = vpack.c.bf16 %v219, %v217
        %v297 = vpack.c.bf16 %v220, %v218
        %v298 = vpack.c.bf16 %v223, %v221
        %v299 = vpack.c.bf16 %v224, %v222
        %v300 = vpack.c.bf16 %v227, %v225
        %v301 = vpack.c.bf16 %v228, %v226
        %v302 = vpack.c.bf16 %v231, %v229
        %v303 = vpack.c.bf16 %v232, %v230
        %v304 = vpack.c.bf16 %v235, %v233
        %v305 = vpack.c.bf16 %v236, %v234
        %v306 = vpack.c.bf16 %v239, %v237
        %v307 = vpack.c.bf16 %v240, %v238
        %v340 = vunpack.c.l.b16 %v244
        %v341 = vunpack.c.h.b16 %v244
        %v342 = vunpack.c.l.b16 %v245
        %v343 = vunpack.c.h.b16 %v245
        %v344 = vunpack.c.l.b16 %v246
        %v345 = vunpack.c.h.b16 %v246
        %v346 = vunpack.c.l.b16 %v247
        %v347 = vunpack.c.h.b16 %v247
        %v348 = vunpack.c.l.b16 %v248
        %v349 = vunpack.c.h.b16 %v248
        %v350 = vunpack.c.l.b16 %v249
        %v351 = vunpack.c.h.b16 %v249
        %v352 = vunpack.c.l.b16 %v250
        %v353 = vunpack.c.h.b16 %v250
        %v354 = vunpack.c.l.b16 %v251
        %v355 = vunpack.c.h.b16 %v251
        %v356 = vunpack.c.l.b16 %v252
        %v357 = vunpack.c.h.b16 %v252
        %v358 = vunpack.c.l.b16 %v253
        %v359 = vunpack.c.h.b16 %v253
        %v360 = vunpack.c.l.b16 %v254
        %v361 = vunpack.c.h.b16 %v254
        %v362 = vunpack.c.l.b16 %v255
        %v363 = vunpack.c.h.b16 %v255
        %v364 = vunpack.c.l.b16 %v256
        %v365 = vunpack.c.h.b16 %v256
        %v366 = vunpack.c.l.b16 %v257
        %v367 = vunpack.c.h.b16 %v257
        %v368 = vunpack.c.l.b16 %v258
        %v369 = vunpack.c.h.b16 %v258
        %v370 = vunpack.c.l.b16 %v259
        %v371 = vunpack.c.h.b16 %v259
        %v372 = vunpack.c.l.b16 %v260
        %v373 = vunpack.c.h.b16 %v260
        %v374 = vunpack.c.l.b16 %v261
        %v375 = vunpack.c.h.b16 %v261
        %v376 = vunpack.c.l.b16 %v262
        %v377 = vunpack.c.h.b16 %v262
        %v378 = vunpack.c.l.b16 %v263
        %v379 = vunpack.c.h.b16 %v263
        %v380 = vunpack.c.l.b16 %v264
        %v381 = vunpack.c.h.b16 %v264
        %v382 = vunpack.c.l.b16 %v265
        %v383 = vunpack.c.h.b16 %v265
        %v384 = vunpack.c.l.b16 %v266
        %v385 = vunpack.c.h.b16 %v266
        %v386 = vunpack.c.l.b16 %v267
        %v387 = vunpack.c.h.b16 %v267
        %v388 = vunpack.c.l.b16 %v268
        %v389 = vunpack.c.h.b16 %v268
        %v390 = vunpack.c.l.b16 %v269
        %v391 = vunpack.c.h.b16 %v269
        %v392 = vunpack.c.l.b16 %v270
        %v393 = vunpack.c.h.b16 %v270
        %v394 = vunpack.c.l.b16 %v271
        %v395 = vunpack.c.h.b16 %v271
        %v396 = vunpack.c.l.b16 %v272
        %v397 = vunpack.c.h.b16 %v272
        %v398 = vunpack.c.l.b16 %v273
        %v399 = vunpack.c.h.b16 %v273
        %v400 = vunpack.c.l.b16 %v274
        %v401 = vunpack.c.h.b16 %v274
        %v402 = vunpack.c.l.b16 %v275
        %v403 = vunpack.c.h.b16 %v275
        %v404 = vpack.c.b16 %v342, %v340
        %v405 = vpack.c.b16 %v343, %v341
        %v406 = vpack.c.b16 %v346, %v344
        %v407 = vpack.c.b16 %v347, %v345
        %v408 = vpack.c.b16 %v350, %v348
        %v409 = vpack.c.b16 %v351, %v349
        %v410 = vpack.c.b16 %v354, %v352
        %v411 = vpack.c.b16 %v355, %v353
        %v412 = vpack.c.b16 %v358, %v356
        %v413 = vpack.c.b16 %v359, %v357
        %v414 = vpack.c.b16 %v362, %v360
        %v415 = vpack.c.b16 %v363, %v361
        %v416 = vpack.c.b16 %v366, %v364
        %v417 = vpack.c.b16 %v367, %v365
        %v418 = vpack.c.b16 %v370, %v368
        %v419 = vpack.c.b16 %v371, %v369
        %v420 = vpack.c.b16 %v374, %v372
        %v421 = vpack.c.b16 %v375, %v373
        %v422 = vpack.c.b16 %v378, %v376
        %v423 = vpack.c.b16 %v379, %v377
        %v424 = vpack.c.b16 %v382, %v380
        %v425 = vpack.c.b16 %v383, %v381
        %v426 = vpack.c.b16 %v386, %v384
        %v427 = vpack.c.b16 %v387, %v385
        %v428 = vpack.c.b16 %v390, %v388
        %v429 = vpack.c.b16 %v391, %v389
        %v430 = vpack.c.b16 %v394, %v392
        %v431 = vpack.c.b16 %v395, %v393
        %v432 = vpack.c.b16 %v398, %v396
        %v433 = vpack.c.b16 %v399, %v397
        %v434 = vpack.c.b16 %v402, %v400
        %v435 = vpack.c.b16 %v403, %v401
        %468 = vmatprep.subr.bf16.mxu0 %v277
        %469 = vmatpush1.bf16.msra.mxu0 %v276
        %470 = vmatprep.subr.bf16.mxu0 %v279
        %471 = vmatpush1.bf16.msra.mxu0 %v278
        %472 = vmatprep.subr.bf16.mxu0 %v281
        %473 = vmatpush1.bf16.msra.mxu0 %v280
        %474 = vmatprep.subr.bf16.mxu0 %v283
        %475 = vmatpush1.bf16.msra.mxu0 %v282
        %476 = vmatprep.subr.bf16.mxu0 %v285
        %477 = vmatpush1.bf16.msra.mxu0 %v284
        %478 = vmatprep.subr.bf16.mxu0 %v287
        %479 = vmatpush1.bf16.msra.mxu0 %v286
        %480 = vmatprep.subr.bf16.mxu0 %v289
        %481 = vmatpush1.bf16.msra.mxu0 %v288
        %482 = vmatprep.subr.bf16.mxu0 %v291
        %483 = vmatpush1.bf16.msra.mxu0 %v290
        %484 = vmatprep.subr.bf16.mxu0 %v293
        %485 = vmatpush1.bf16.msra.mxu0 %v292
        %486 = vmatprep.subr.bf16.mxu0 %v295
        %487 = vmatpush1.bf16.msra.mxu0 %v294
        %488 = vmatprep.subr.bf16.mxu0 %v297
        %489 = vmatpush1.bf16.msra.mxu0 %v296
        %490 = vmatprep.subr.bf16.mxu0 %v299
        %491 = vmatpush1.bf16.msra.mxu0 %v298
        %492 = vmatprep.subr.bf16.mxu0 %v301
        %493 = vmatpush1.bf16.msra.mxu0 %v300
        %494 = vmatprep.subr.bf16.mxu0 %v303
        %495 = vmatpush1.bf16.msra.mxu0 %v302
        %496 = vmatprep.subr.bf16.mxu0 %v305
        %497 = vmatpush1.bf16.msra.mxu0 %v304
        %498 = vmatprep.subr.bf16.mxu0 %v307
        %499 = vmatpush1.bf16.msra.mxu0 %v306
        %500 = vmatprep.mubr.bf16.mxu0 %v405
        %501 = vmatmul.mubr.bf16.gmra.mrb[0].mxu0 %v404
        %v502 = vpop.f32.mrb[0].mxu0
        %v503 = vadd.f32 0.0, %v502
        %v504 = vpop.f32.mrb[0].mxu0
        %v505 = vadd.f32 0.0, %v504
        %v506 = vpop.f32.mrb[0].mxu0
        %v507 = vadd.f32 0.0, %v506
        %v508 = vpop.f32.mrb[0].mxu0
        %v509 = vadd.f32 0.0, %v508
        %510 = vmatprep.mubr.bf16.mxu0 %v407
        %511 = vmatmul.mubr.bf16.gmra.mrb[0].mxu0 %v406
        %v512 = vpop.f32.mrb[0].mxu0
        %v513 = vadd.f32 0.0, %v512
        %v514 = vpop.f32.mrb[0].mxu0
        %v515 = vadd.f32 0.0, %v514
        %v516 = vpop.f32.mrb[0].mxu0
        %v517 = vadd.f32 0.0, %v516
        %v518 = vpop.f32.mrb[0].mxu0
        %v519 = vadd.f32 0.0, %v518
        %520 = vmatprep.mubr.bf16.mxu0 %v409
        %521 = vmatmul.mubr.bf16.gmra.mrb[0].mxu0 %v408
        %v522 = vpop.f32.mrb[0].mxu0
        %v523 = vadd.f32 0.0, %v522
        %v524 = vpop.f32.mrb[0].mxu0
        %v525 = vadd.f32 0.0, %v524
        %v526 = vpop.f32.mrb[0].mxu0
        %v527 = vadd.f32 0.0, %v526
        %v528 = vpop.f32.mrb[0].mxu0
        %v529 = vadd.f32 0.0, %v528
        %530 = vmatprep.mubr.bf16.mxu0 %v411
        %531 = vmatmul.mubr.bf16.gmra.mrb[0].mxu0 %v410
        %v532 = vpop.f32.mrb[0].mxu0
        %v533 = vadd.f32 0.0, %v532
        %v534 = vpop.f32.mrb[0].mxu0
        %v535 = vadd.f32 0.0, %v534
        %v536 = vpop.f32.mrb[0].mxu0
        %v537 = vadd.f32 0.0, %v536
        %v538 = vpop.f32.mrb[0].mxu0
        %v539 = vadd.f32 0.0, %v538
        %540 = vmatprep.mubr.bf16.mxu0 %v413
        %541 = vmatmul.mubr.bf16.gmra.mrb[0].mxu0 %v412
        %v542 = vpop.f32.mrb[0].mxu0
        %v543 = vadd.f32 0.0, %v542
        %v544 = vpop.f32.mrb[0].mxu0
        %v545 = vadd.f32 0.0, %v544
        %v546 = vpop.f32.mrb[0].mxu0
        %v547 = vadd.f32 0.0, %v546
        %v548 = vpop.f32.mrb[0].mxu0
        %v549 = vadd.f32 0.0, %v548
        %550 = vmatprep.mubr.bf16.mxu0 %v415
        %551 = vmatmul.mubr.bf16.gmra.mrb[0].mxu0 %v414
        %v552 = vpop.f32.mrb[0].mxu0
        %v553 = vadd.f32 0.0, %v552
        %v554 = vpop.f32.mrb[0].mxu0
        %v555 = vadd.f32 0.0, %v554
        %v556 = vpop.f32.mrb[0].mxu0
        %v557 = vadd.f32 0.0, %v556
        %v558 = vpop.f32.mrb[0].mxu0
        %v559 = vadd.f32 0.0, %v558
        %560 = vmatprep.mubr.bf16.mxu0 %v417
        %561 = vmatmul.mubr.bf16.gmra.mrb[0].mxu0 %v416
        %v562 = vpop.f32.mrb[0].mxu0
        %v563 = vadd.f32 0.0, %v562
        %v564 = vpop.f32.mrb[0].mxu0
        %v565 = vadd.f32 0.0, %v564
        %v566 = vpop.f32.mrb[0].mxu0
        %v567 = vadd.f32 0.0, %v566
        %v568 = vpop.f32.mrb[0].mxu0
        %v569 = vadd.f32 0.0, %v568
        %570 = vmatprep.mubr.bf16.mxu0 %v419
        %571 = vmatmul.mubr.bf16.gmra.mrb[0].mxu0 %v418
        %v572 = vpop.f32.mrb[0].mxu0
        %v573 = vadd.f32 0.0, %v572
        %v574 = vpop.f32.mrb[0].mxu0
        %v575 = vadd.f32 0.0, %v574
        %v576 = vpop.f32.mrb[0].mxu0
        %v577 = vadd.f32 0.0, %v576
        %v578 = vpop.f32.mrb[0].mxu0
        %v579 = vadd.f32 0.0, %v578
        %580 = vmatprep.mubr.bf16.mxu0 %v421
        %581 = vmatmul.mubr.bf16.gmra.mrb[0].mxu0 %v420
        %v582 = vpop.f32.mrb[0].mxu0
        %v583 = vadd.f32 0.0, %v582
        %v584 = vpop.f32.mrb[0].mxu0
        %v585 = vadd.f32 0.0, %v584
        %v586 = vpop.f32.mrb[0].mxu0
        %v587 = vadd.f32 0.0, %v586
        %v588 = vpop.f32.mrb[0].mxu0
        %v589 = vadd.f32 0.0, %v588
        %590 = vmatprep.mubr.bf16.mxu0 %v423
        %591 = vmatmul.mubr.bf16.gmra.mrb[0].mxu0 %v422
        %v592 = vpop.f32.mrb[0].mxu0
        %v593 = vadd.f32 0.0, %v592
        %v594 = vpop.f32.mrb[0].mxu0
        %v595 = vadd.f32 0.0, %v594
        %v596 = vpop.f32.mrb[0].mxu0
        %v597 = vadd.f32 0.0, %v596
        %v598 = vpop.f32.mrb[0].mxu0
        %v599 = vadd.f32 0.0, %v598
        %600 = vmatprep.mubr.bf16.mxu0 %v425
        %601 = vmatmul.mubr.bf16.gmra.mrb[0].mxu0 %v424
        %v602 = vpop.f32.mrb[0].mxu0
        %v603 = vadd.f32 0.0, %v602
        %v604 = vpop.f32.mrb[0].mxu0
        %v605 = vadd.f32 0.0, %v604
        %v606 = vpop.f32.mrb[0].mxu0
        %v607 = vadd.f32 0.0, %v606
        %v608 = vpop.f32.mrb[0].mxu0
        %v609 = vadd.f32 0.0, %v608
        %610 = vmatprep.mubr.bf16.mxu0 %v427
        %611 = vmatmul.mubr.bf16.gmra.mrb[0].mxu0 %v426
        %v612 = vpop.f32.mrb[0].mxu0
        %v613 = vadd.f32 0.0, %v612
        %v614 = vpop.f32.mrb[0].mxu0
        %v615 = vadd.f32 0.0, %v614
        %v616 = vpop.f32.mrb[0].mxu0
        %v617 = vadd.f32 0.0, %v616
        %v618 = vpop.f32.mrb[0].mxu0
        %v619 = vadd.f32 0.0, %v618
        %620 = vmatprep.mubr.bf16.mxu0 %v429
        %621 = vmatmul.mubr.bf16.gmra.mrb[0].mxu0 %v428
        %v622 = vpop.f32.mrb[0].mxu0
        %v623 = vadd.f32 0.0, %v622
        %v624 = vpop.f32.mrb[0].mxu0
        %v625 = vadd.f32 0.0, %v624
        %v626 = vpop.f32.mrb[0].mxu0
        %v627 = vadd.f32 0.0, %v626
        %v628 = vpop.f32.mrb[0].mxu0
        %v629 = vadd.f32 0.0, %v628
        %630 = vmatprep.mubr.bf16.mxu0 %v431
        %631 = vmatmul.mubr.bf16.gmra.mrb[0].mxu0 %v430
        %v632 = vpop.f32.mrb[0].mxu0
        %v633 = vadd.f32 0.0, %v632
        %v634 = vpop.f32.mrb[0].mxu0
        %v635 = vadd.f32 0.0, %v634
        %v636 = vpop.f32.mrb[0].mxu0
        %v637 = vadd.f32 0.0, %v636
        %v638 = vpop.f32.mrb[0].mxu0
        %v639 = vadd.f32 0.0, %v638
        %640 = vmatprep.mubr.bf16.mxu0 %v433
        %641 = vmatmul.mubr.bf16.gmra.mrb[0].mxu0 %v432
        %v642 = vpop.f32.mrb[0].mxu0
        %v643 = vadd.f32 0.0, %v642
        %v644 = vpop.f32.mrb[0].mxu0
        %v645 = vadd.f32 0.0, %v644
        %v646 = vpop.f32.mrb[0].mxu0
        %v647 = vadd.f32 0.0, %v646
        %v648 = vpop.f32.mrb[0].mxu0
        %v649 = vadd.f32 0.0, %v648
        %650 = vmatprep.mubr.bf16.mxu0 %v435
        %651 = vmatmul.mubr.bf16.gmra.mrb[0].mxu0 %v434
        %v652 = vpop.f32.mrb[0].mxu0
        %v653 = vadd.f32 0.0, %v652
        %v654 = vpop.f32.mrb[0].mxu0
        %v655 = vadd.f32 0.0, %v654
        %v656 = vpop.f32.mrb[0].mxu0
        %v657 = vadd.f32 0.0, %v656
        %v658 = vpop.f32.mrb[0].mxu0
        %v659 = vadd.f32 0.0, %v658
        %660 = vdwg.mxu0
        %v661 = vadd.f32 %v503, %v505
        %662 = vadd.xlane.f32.xlu0 %v661
        %v663 = vpop.xlane.xlu0 %662
        %v664 = vadd.f32 %v507, %v509
        %665 = vadd.xlane.f32.xlu0 %v664
        %v666 = vpop.xlane.xlu0 %665
        %v667 = vadd.f32 %v513, %v515
        %668 = vadd.xlane.f32.xlu0 %v667
        %v669 = vpop.xlane.xlu0 %668
        %v670 = vadd.f32 %v517, %v519
        %671 = vadd.xlane.f32.xlu0 %v670
        %v672 = vpop.xlane.xlu0 %671
        %v673 = vadd.f32 %v523, %v525
        %674 = vadd.xlane.f32.xlu0 %v673
        %v675 = vpop.xlane.xlu0 %674
        %v676 = vadd.f32 %v527, %v529
        %677 = vadd.xlane.f32.xlu0 %v676
        %v678 = vpop.xlane.xlu0 %677
        %v679 = vadd.f32 %v533, %v535
        %680 = vadd.xlane.f32.xlu0 %v679
        %v681 = vpop.xlane.xlu0 %680
        %v682 = vadd.f32 %v537, %v539
        %683 = vadd.xlane.f32.xlu0 %v682
        %v684 = vpop.xlane.xlu0 %683
        %v685 = vadd.f32 %v543, %v545
        %686 = vadd.xlane.f32.xlu0 %v685
        %v687 = vpop.xlane.xlu0 %686
        %v688 = vadd.f32 %v547, %v549
        %689 = vadd.xlane.f32.xlu0 %v688
        %v690 = vpop.xlane.xlu0 %689
        %v691 = vadd.f32 %v553, %v555
        %692 = vadd.xlane.f32.xlu0 %v691
        %v693 = vpop.xlane.xlu0 %692
        %v694 = vadd.f32 %v557, %v559
        %695 = vadd.xlane.f32.xlu0 %v694
        %v696 = vpop.xlane.xlu0 %695
        %v697 = vadd.f32 %v563, %v565
        %698 = vadd.xlane.f32.xlu0 %v697
        %v699 = vpop.xlane.xlu0 %698
        %v700 = vadd.f32 %v567, %v569
        %701 = vadd.xlane.f32.xlu0 %v700
        %v702 = vpop.xlane.xlu0 %701
        %v703 = vadd.f32 %v573, %v575
        %704 = vadd.xlane.f32.xlu0 %v703
        %v705 = vpop.xlane.xlu0 %704
        %v706 = vadd.f32 %v577, %v579
        %707 = vadd.xlane.f32.xlu0 %v706
        %v708 = vpop.xlane.xlu0 %707
        %v709 = vadd.f32 %v583, %v585
        %710 = vadd.xlane.f32.xlu0 %v709
        %v711 = vpop.xlane.xlu0 %710
        %v712 = vadd.f32 %v587, %v589
        %713 = vadd.xlane.f32.xlu0 %v712
        %v714 = vpop.xlane.xlu0 %713
        %v715 = vadd.f32 %v593, %v595
        %716 = vadd.xlane.f32.xlu0 %v715
        %v717 = vpop.xlane.xlu0 %716
        %v718 = vadd.f32 %v597, %v599
        %719 = vadd.xlane.f32.xlu0 %v718
        %v720 = vpop.xlane.xlu0 %719
        %v721 = vadd.f32 %v603, %v605
        %722 = vadd.xlane.f32.xlu0 %v721
        %v723 = vpop.xlane.xlu0 %722
        %v724 = vadd.f32 %v607, %v609
        %725 = vadd.xlane.f32.xlu0 %v724
        %v726 = vpop.xlane.xlu0 %725
        %v727 = vadd.f32 %v613, %v615
        %728 = vadd.xlane.f32.xlu0 %v727
        %v729 = vpop.xlane.xlu0 %728
        %v730 = vadd.f32 %v617, %v619
        %731 = vadd.xlane.f32.xlu0 %v730
        %v732 = vpop.xlane.xlu0 %731
        %v733 = vadd.f32 %v623, %v625
        %734 = vadd.xlane.f32.xlu0 %v733
        %v735 = vpop.xlane.xlu0 %734
        %v736 = vadd.f32 %v627, %v629
        %737 = vadd.xlane.f32.xlu0 %v736
        %v738 = vpop.xlane.xlu0 %737
        %v739 = vadd.f32 %v633, %v635
        %740 = vadd.xlane.f32.xlu0 %v739
        %v741 = vpop.xlane.xlu0 %740
        %v742 = vadd.f32 %v637, %v639
        %743 = vadd.xlane.f32.xlu0 %v742
        %v744 = vpop.xlane.xlu0 %743
        %v745 = vadd.f32 %v643, %v645
        %746 = vadd.xlane.f32.xlu0 %v745
        %v747 = vpop.xlane.xlu0 %746
        %v748 = vadd.f32 %v647, %v649
        %749 = vadd.xlane.f32.xlu0 %v748
        %v750 = vpop.xlane.xlu0 %749
        %v751 = vadd.f32 %v653, %v655
        %752 = vadd.xlane.f32.xlu0 %v751
        %v753 = vpop.xlane.xlu0 %752
        %v754 = vadd.f32 %v657, %v659
        %755 = vadd.xlane.f32.xlu0 %v754
        %v756 = vpop.xlane.xlu0 %755
        %v757 = vmul.f32 %v663, 0.00390625
        %v758 = vmul.f32 %v666, 0.00390625
        %v759 = vmul.f32 %v669, 0.00390625
        %v760 = vmul.f32 %v672, 0.00390625
        %v761 = vmul.f32 %v675, 0.00390625
        %v762 = vmul.f32 %v678, 0.00390625
        %v763 = vmul.f32 %v681, 0.00390625
        %v764 = vmul.f32 %v684, 0.00390625
        %v765 = vmul.f32 %v687, 0.00390625
        %v766 = vmul.f32 %v690, 0.00390625
        %v767 = vmul.f32 %v693, 0.00390625
        %v768 = vmul.f32 %v696, 0.00390625
        %v769 = vmul.f32 %v699, 0.00390625
        %v770 = vmul.f32 %v702, 0.00390625
        %v771 = vmul.f32 %v705, 0.00390625
        %v772 = vmul.f32 %v708, 0.00390625
        %v773 = vmul.f32 %v711, 0.00390625
        %v774 = vmul.f32 %v714, 0.00390625
        %v775 = vmul.f32 %v717, 0.00390625
        %v776 = vmul.f32 %v720, 0.00390625
        %v777 = vmul.f32 %v723, 0.00390625
        %v778 = vmul.f32 %v726, 0.00390625
        %v779 = vmul.f32 %v729, 0.00390625
        %v780 = vmul.f32 %v732, 0.00390625
        %v781 = vmul.f32 %v735, 0.00390625
        %v782 = vmul.f32 %v738, 0.00390625
        %v783 = vmul.f32 %v741, 0.00390625
        %v784 = vmul.f32 %v744, 0.00390625
        %v785 = vmul.f32 %v747, 0.00390625
        %v786 = vmul.f32 %v750, 0.00390625
        %v787 = vmul.f32 %v753, 0.00390625
        %v788 = vmul.f32 %v756, 0.00390625
        %v789 = vsub.f32 %v503, %v757
        %v790 = vsub.f32 %v505, %v757
        %v791 = vsub.f32 %v507, %v758
        %v792 = vsub.f32 %v509, %v758
        %v793 = vsub.f32 %v513, %v759
        %v794 = vsub.f32 %v515, %v759
        %v795 = vsub.f32 %v517, %v760
        %v796 = vsub.f32 %v519, %v760
        %v797 = vsub.f32 %v523, %v761
        %v798 = vsub.f32 %v525, %v761
        %v799 = vsub.f32 %v527, %v762
        %v800 = vsub.f32 %v529, %v762
        %v801 = vsub.f32 %v533, %v763
        %v802 = vsub.f32 %v535, %v763
        %v803 = vsub.f32 %v537, %v764
        %v804 = vsub.f32 %v539, %v764
        %v805 = vsub.f32 %v543, %v765
        %v806 = vsub.f32 %v545, %v765
        %v807 = vsub.f32 %v547, %v766
        %v808 = vsub.f32 %v549, %v766
        %v809 = vsub.f32 %v553, %v767
        %v810 = vsub.f32 %v555, %v767
        %v811 = vsub.f32 %v557, %v768
        %v812 = vsub.f32 %v559, %v768
        %v813 = vsub.f32 %v563, %v769
        %v814 = vsub.f32 %v565, %v769
        %v815 = vsub.f32 %v567, %v770
        %v816 = vsub.f32 %v569, %v770
        %v817 = vsub.f32 %v573, %v771
        %v818 = vsub.f32 %v575, %v771
        %v819 = vsub.f32 %v577, %v772
        %v820 = vsub.f32 %v579, %v772
        %v821 = vsub.f32 %v583, %v773
        %v822 = vsub.f32 %v585, %v773
        %v823 = vsub.f32 %v587, %v774
        %v824 = vsub.f32 %v589, %v774
        %v825 = vsub.f32 %v593, %v775
        %v826 = vsub.f32 %v595, %v775
        %v827 = vsub.f32 %v597, %v776
        %v828 = vsub.f32 %v599, %v776
        %v829 = vsub.f32 %v603, %v777
        %v830 = vsub.f32 %v605, %v777
        %v831 = vsub.f32 %v607, %v778
        %v832 = vsub.f32 %v609, %v778
        %v833 = vsub.f32 %v613, %v779
        %v834 = vsub.f32 %v615, %v779
        %v835 = vsub.f32 %v617, %v780
        %v836 = vsub.f32 %v619, %v780
        %v837 = vsub.f32 %v623, %v781
        %v838 = vsub.f32 %v625, %v781
        %v839 = vsub.f32 %v627, %v782
        %v840 = vsub.f32 %v629, %v782
        %v841 = vsub.f32 %v633, %v783
        %v842 = vsub.f32 %v635, %v783
        %v843 = vsub.f32 %v637, %v784
        %v844 = vsub.f32 %v639, %v784
        %v845 = vsub.f32 %v643, %v785
        %v846 = vsub.f32 %v645, %v785
        %v847 = vsub.f32 %v647, %v786
        %v848 = vsub.f32 %v649, %v786
        %v849 = vsub.f32 %v653, %v787
        %v850 = vsub.f32 %v655, %v787
        %v851 = vsub.f32 %v657, %v788
        %v852 = vsub.f32 %v659, %v788
        %v853 = vmul.f32 %v789, %v789
        %v854 = vmul.f32 %v790, %v790
        %v855 = vmul.f32 %v791, %v791
        %v856 = vmul.f32 %v792, %v792
        %v857 = vmul.f32 %v793, %v793
        %v858 = vmul.f32 %v794, %v794
        %v859 = vmul.f32 %v795, %v795
        %v860 = vmul.f32 %v796, %v796
        %v861 = vmul.f32 %v797, %v797
        %v862 = vmul.f32 %v798, %v798
        %v863 = vmul.f32 %v799, %v799
        %v864 = vmul.f32 %v800, %v800
        %v865 = vmul.f32 %v801, %v801
        %v866 = vmul.f32 %v802, %v802
        %v867 = vmul.f32 %v803, %v803
        %v868 = vmul.f32 %v804, %v804
        %v869 = vmul.f32 %v805, %v805
        %v870 = vmul.f32 %v806, %v806
        %v871 = vmul.f32 %v807, %v807
        %v872 = vmul.f32 %v808, %v808
        %v873 = vmul.f32 %v809, %v809
        %v874 = vmul.f32 %v810, %v810
        %v875 = vmul.f32 %v811, %v811
        %v876 = vmul.f32 %v812, %v812
        %v877 = vmul.f32 %v813, %v813
        %v878 = vmul.f32 %v814, %v814
        %v879 = vmul.f32 %v815, %v815
        %v880 = vmul.f32 %v816, %v816
        %v881 = vmul.f32 %v817, %v817
        %v882 = vmul.f32 %v818, %v818
        %v883 = vmul.f32 %v819, %v819
        %v884 = vmul.f32 %v820, %v820
        %v885 = vmul.f32 %v821, %v821
        %v886 = vmul.f32 %v822, %v822
        %v887 = vmul.f32 %v823, %v823
        %v888 = vmul.f32 %v824, %v824
        %v889 = vmul.f32 %v825, %v825
        %v890 = vmul.f32 %v826, %v826
        %v891 = vmul.f32 %v827, %v827
        %v892 = vmul.f32 %v828, %v828
        %v893 = vmul.f32 %v829, %v829
        %v894 = vmul.f32 %v830, %v830
        %v895 = vmul.f32 %v831, %v831
        %v896 = vmul.f32 %v832, %v832
        %v897 = vmul.f32 %v833, %v833
        %v898 = vmul.f32 %v834, %v834
        %v899 = vmul.f32 %v835, %v835
        %v900 = vmul.f32 %v836, %v836
        %v901 = vmul.f32 %v837, %v837
        %v902 = vmul.f32 %v838, %v838
        %v903 = vmul.f32 %v839, %v839
        %v904 = vmul.f32 %v840, %v840
        %v905 = vmul.f32 %v841, %v841
        %v906 = vmul.f32 %v842, %v842
        %v907 = vmul.f32 %v843, %v843
        %v908 = vmul.f32 %v844, %v844
        %v909 = vmul.f32 %v845, %v845
        %v910 = vmul.f32 %v846, %v846
        %v911 = vmul.f32 %v847, %v847
        %v912 = vmul.f32 %v848, %v848
        %v913 = vmul.f32 %v849, %v849
        %v914 = vmul.f32 %v850, %v850
        %v915 = vmul.f32 %v851, %v851
        %v916 = vmul.f32 %v852, %v852
        %v917 = vadd.f32 %v853, %v854
        %918 = vadd.xlane.f32.xlu0 %v917
        %v919 = vpop.xlane.xlu0 %918
        %v920 = vadd.f32 %v855, %v856
        %921 = vadd.xlane.f32.xlu0 %v920
        %v922 = vpop.xlane.xlu0 %921
        %v923 = vadd.f32 %v857, %v858
        %924 = vadd.xlane.f32.xlu0 %v923
        %v925 = vpop.xlane.xlu0 %924
        %v926 = vadd.f32 %v859, %v860
        %927 = vadd.xlane.f32.xlu0 %v926
        %v928 = vpop.xlane.xlu0 %927
        %v929 = vadd.f32 %v861, %v862
        %930 = vadd.xlane.f32.xlu0 %v929
        %v931 = vpop.xlane.xlu0 %930
        %v932 = vadd.f32 %v863, %v864
        %933 = vadd.xlane.f32.xlu0 %v932
        %v934 = vpop.xlane.xlu0 %933
        %v935 = vadd.f32 %v865, %v866
        %936 = vadd.xlane.f32.xlu0 %v935
        %v937 = vpop.xlane.xlu0 %936
        %v938 = vadd.f32 %v867, %v868
        %939 = vadd.xlane.f32.xlu0 %v938
        %v940 = vpop.xlane.xlu0 %939
        %v941 = vadd.f32 %v869, %v870
        %942 = vadd.xlane.f32.xlu0 %v941
        %v943 = vpop.xlane.xlu0 %942
        %v944 = vadd.f32 %v871, %v872
        %945 = vadd.xlane.f32.xlu0 %v944
        %v946 = vpop.xlane.xlu0 %945
        %v947 = vadd.f32 %v873, %v874
        %948 = vadd.xlane.f32.xlu0 %v947
        %v949 = vpop.xlane.xlu0 %948
        %v950 = vadd.f32 %v875, %v876
        %951 = vadd.xlane.f32.xlu0 %v950
        %v952 = vpop.xlane.xlu0 %951
        %v953 = vadd.f32 %v877, %v878
        %954 = vadd.xlane.f32.xlu0 %v953
        %v955 = vpop.xlane.xlu0 %954
        %v956 = vadd.f32 %v879, %v880
        %957 = vadd.xlane.f32.xlu0 %v956
        %v958 = vpop.xlane.xlu0 %957
        %v959 = vadd.f32 %v881, %v882
        %960 = vadd.xlane.f32.xlu0 %v959
        %v961 = vpop.xlane.xlu0 %960
        %v962 = vadd.f32 %v883, %v884
        %963 = vadd.xlane.f32.xlu0 %v962
        %v964 = vpop.xlane.xlu0 %963
        %v965 = vadd.f32 %v885, %v886
        %966 = vadd.xlane.f32.xlu0 %v965
        %v967 = vpop.xlane.xlu0 %966
        %v968 = vadd.f32 %v887, %v888
        %969 = vadd.xlane.f32.xlu0 %v968
        %v970 = vpop.xlane.xlu0 %969
        %v971 = vadd.f32 %v889, %v890
        %972 = vadd.xlane.f32.xlu0 %v971
        %v973 = vpop.xlane.xlu0 %972
        %v974 = vadd.f32 %v891, %v892
        %975 = vadd.xlane.f32.xlu0 %v974
        %v976 = vpop.xlane.xlu0 %975
        %v977 = vadd.f32 %v893, %v894
        %978 = vadd.xlane.f32.xlu0 %v977
        %v979 = vpop.xlane.xlu0 %978
        %v980 = vadd.f32 %v895, %v896
        %981 = vadd.xlane.f32.xlu0 %v980
        %v982 = vpop.xlane.xlu0 %981
        %v983 = vadd.f32 %v897, %v898
        %984 = vadd.xlane.f32.xlu0 %v983
        %v985 = vpop.xlane.xlu0 %984
        %v986 = vadd.f32 %v899, %v900
        %987 = vadd.xlane.f32.xlu0 %v986
        %v988 = vpop.xlane.xlu0 %987
        %v989 = vadd.f32 %v901, %v902
        %990 = vadd.xlane.f32.xlu0 %v989
        %v991 = vpop.xlane.xlu0 %990
        %v992 = vadd.f32 %v903, %v904
        %993 = vadd.xlane.f32.xlu0 %v992
        %v994 = vpop.xlane.xlu0 %993
        %v995 = vadd.f32 %v905, %v906
        %996 = vadd.xlane.f32.xlu0 %v995
        %v997 = vpop.xlane.xlu0 %996
        %v998 = vadd.f32 %v907, %v908
        %999 = vadd.xlane.f32.xlu0 %v998
        %v1000 = vpop.xlane.xlu0 %999
        %v1001 = vadd.f32 %v909, %v910
        %1002 = vadd.xlane.f32.xlu0 %v1001
        %v1003 = vpop.xlane.xlu0 %1002
        %v1004 = vadd.f32 %v911, %v912
        %1005 = vadd.xlane.f32.xlu0 %v1004
        %v1006 = vpop.xlane.xlu0 %1005
        %v1007 = vadd.f32 %v913, %v914
        %1008 = vadd.xlane.f32.xlu0 %v1007
        %v1009 = vpop.xlane.xlu0 %1008
        %v1010 = vadd.f32 %v915, %v916
        %1011 = vadd.xlane.f32.xlu0 %v1010
        %v1012 = vpop.xlane.xlu0 %1011
        %v1013 = vmul.f32 %v919, 0.00390625
        %v1014 = vmul.f32 %v922, 0.00390625
        %v1015 = vmul.f32 %v925, 0.00390625
        %v1016 = vmul.f32 %v928, 0.00390625
        %v1017 = vmul.f32 %v931, 0.00390625
        %v1018 = vmul.f32 %v934, 0.00390625
        %v1019 = vmul.f32 %v937, 0.00390625
        %v1020 = vmul.f32 %v940, 0.00390625
        %v1021 = vmul.f32 %v943, 0.00390625
        %v1022 = vmul.f32 %v946, 0.00390625
        %v1023 = vmul.f32 %v949, 0.00390625
        %v1024 = vmul.f32 %v952, 0.00390625
        %v1025 = vmul.f32 %v955, 0.00390625
        %v1026 = vmul.f32 %v958, 0.00390625
        %v1027 = vmul.f32 %v961, 0.00390625
        %v1028 = vmul.f32 %v964, 0.00390625
        %v1029 = vmul.f32 %v967, 0.00390625
        %v1030 = vmul.f32 %v970, 0.00390625
        %v1031 = vmul.f32 %v973, 0.00390625
        %v1032 = vmul.f32 %v976, 0.00390625
        %v1033 = vmul.f32 %v979, 0.00390625
        %v1034 = vmul.f32 %v982, 0.00390625
        %v1035 = vmul.f32 %v985, 0.00390625
        %v1036 = vmul.f32 %v988, 0.00390625
        %v1037 = vmul.f32 %v991, 0.00390625
        %v1038 = vmul.f32 %v994, 0.00390625
        %v1039 = vmul.f32 %v997, 0.00390625
        %v1040 = vmul.f32 %v1000, 0.00390625
        %v1041 = vmul.f32 %v1003, 0.00390625
        %v1042 = vmul.f32 %v1006, 0.00390625
        %v1043 = vmul.f32 %v1009, 0.00390625
        %v1044 = vmul.f32 %v1012, 0.00390625
        %v1045 = vadd.f32 %v1013, 1e-05
        %v1046 = vadd.f32 %v1014, 1e-05
        %v1047 = vadd.f32 %v1015, 1e-05
        %v1048 = vadd.f32 %v1016, 1e-05
        %v1049 = vadd.f32 %v1017, 1e-05
        %v1050 = vadd.f32 %v1018, 1e-05
        %v1051 = vadd.f32 %v1019, 1e-05
        %v1052 = vadd.f32 %v1020, 1e-05
        %v1053 = vadd.f32 %v1021, 1e-05
        %v1054 = vadd.f32 %v1022, 1e-05
        %v1055 = vadd.f32 %v1023, 1e-05
        %v1056 = vadd.f32 %v1024, 1e-05
        %v1057 = vadd.f32 %v1025, 1e-05
        %v1058 = vadd.f32 %v1026, 1e-05
        %v1059 = vadd.f32 %v1027, 1e-05
        %v1060 = vadd.f32 %v1028, 1e-05
        %v1061 = vadd.f32 %v1029, 1e-05
        %v1062 = vadd.f32 %v1030, 1e-05
        %v1063 = vadd.f32 %v1031, 1e-05
        %v1064 = vadd.f32 %v1032, 1e-05
        %v1065 = vadd.f32 %v1033, 1e-05
        %v1066 = vadd.f32 %v1034, 1e-05
        %v1067 = vadd.f32 %v1035, 1e-05
        %v1068 = vadd.f32 %v1036, 1e-05
        %v1069 = vadd.f32 %v1037, 1e-05
        %v1070 = vadd.f32 %v1038, 1e-05
        %v1071 = vadd.f32 %v1039, 1e-05
        %v1072 = vadd.f32 %v1040, 1e-05
        %v1073 = vadd.f32 %v1041, 1e-05
        %v1074 = vadd.f32 %v1042, 1e-05
        %v1075 = vadd.f32 %v1043, 1e-05
        %v1076 = vadd.f32 %v1044, 1e-05
        %v1077 = vrsqrt.pop %v1045
        %v1078 = vrsqrt.pop %v1046
        %v1079 = vrsqrt.pop %v1047
        %v1080 = vrsqrt.pop %v1048
        %v1081 = vrsqrt.pop %v1049
        %v1082 = vrsqrt.pop %v1050
        %v1083 = vrsqrt.pop %v1051
        %v1084 = vrsqrt.pop %v1052
        %v1085 = vrsqrt.pop %v1053
        %v1086 = vrsqrt.pop %v1054
        %v1087 = vrsqrt.pop %v1055
        %v1088 = vrsqrt.pop %v1056
        %v1089 = vrsqrt.pop %v1057
        %v1090 = vrsqrt.pop %v1058
        %v1091 = vrsqrt.pop %v1059
        %v1092 = vrsqrt.pop %v1060
        %v1093 = vrsqrt.pop %v1061
        %v1094 = vrsqrt.pop %v1062
        %v1095 = vrsqrt.pop %v1063
        %v1096 = vrsqrt.pop %v1064
        %v1097 = vrsqrt.pop %v1065
        %v1098 = vrsqrt.pop %v1066
        %v1099 = vrsqrt.pop %v1067
        %v1100 = vrsqrt.pop %v1068
        %v1101 = vrsqrt.pop %v1069
        %v1102 = vrsqrt.pop %v1070
        %v1103 = vrsqrt.pop %v1071
        %v1104 = vrsqrt.pop %v1072
        %v1105 = vrsqrt.pop %v1073
        %v1106 = vrsqrt.pop %v1074
        %v1107 = vrsqrt.pop %v1075
        %v1108 = vrsqrt.pop %v1076
        %v1109 = vmul.f32 %v789, %v1077
        %v1110 = vmul.f32 %v790, %v1077
        %v1111 = vmul.f32 %v791, %v1078
        %v1112 = vmul.f32 %v792, %v1078
        %v1113 = vmul.f32 %v793, %v1079
        %v1114 = vmul.f32 %v794, %v1079
        %v1115 = vmul.f32 %v795, %v1080
        %v1116 = vmul.f32 %v796, %v1080
        %v1117 = vmul.f32 %v797, %v1081
        %v1118 = vmul.f32 %v798, %v1081
        %v1119 = vmul.f32 %v799, %v1082
        %v1120 = vmul.f32 %v800, %v1082
        %v1121 = vmul.f32 %v801, %v1083
        %v1122 = vmul.f32 %v802, %v1083
        %v1123 = vmul.f32 %v803, %v1084
        %v1124 = vmul.f32 %v804, %v1084
        %v1125 = vmul.f32 %v805, %v1085
        %v1126 = vmul.f32 %v806, %v1085
        %v1127 = vmul.f32 %v807, %v1086
        %v1128 = vmul.f32 %v808, %v1086
        %v1129 = vmul.f32 %v809, %v1087
        %v1130 = vmul.f32 %v810, %v1087
        %v1131 = vmul.f32 %v811, %v1088
        %v1132 = vmul.f32 %v812, %v1088
        %v1133 = vmul.f32 %v813, %v1089
        %v1134 = vmul.f32 %v814, %v1089
        %v1135 = vmul.f32 %v815, %v1090
        %v1136 = vmul.f32 %v816, %v1090
        %v1137 = vmul.f32 %v817, %v1091
        %v1138 = vmul.f32 %v818, %v1091
        %v1139 = vmul.f32 %v819, %v1092
        %v1140 = vmul.f32 %v820, %v1092
        %v1141 = vmul.f32 %v821, %v1093
        %v1142 = vmul.f32 %v822, %v1093
        %v1143 = vmul.f32 %v823, %v1094
        %v1144 = vmul.f32 %v824, %v1094
        %v1145 = vmul.f32 %v825, %v1095
        %v1146 = vmul.f32 %v826, %v1095
        %v1147 = vmul.f32 %v827, %v1096
        %v1148 = vmul.f32 %v828, %v1096
        %v1149 = vmul.f32 %v829, %v1097
        %v1150 = vmul.f32 %v830, %v1097
        %v1151 = vmul.f32 %v831, %v1098
        %v1152 = vmul.f32 %v832, %v1098
        %v1153 = vmul.f32 %v833, %v1099
        %v1154 = vmul.f32 %v834, %v1099
        %v1155 = vmul.f32 %v835, %v1100
        %v1156 = vmul.f32 %v836, %v1100
        %v1157 = vmul.f32 %v837, %v1101
        %v1158 = vmul.f32 %v838, %v1101
        %v1159 = vmul.f32 %v839, %v1102
        %v1160 = vmul.f32 %v840, %v1102
        %v1161 = vmul.f32 %v841, %v1103
        %v1162 = vmul.f32 %v842, %v1103
        %v1163 = vmul.f32 %v843, %v1104
        %v1164 = vmul.f32 %v844, %v1104
        %v1165 = vmul.f32 %v845, %v1105
        %v1166 = vmul.f32 %v846, %v1105
        %v1167 = vmul.f32 %v847, %v1106
        %v1168 = vmul.f32 %v848, %v1106
        %v1169 = vmul.f32 %v849, %v1107
        %v1170 = vmul.f32 %v850, %v1107
        %v1171 = vmul.f32 %v851, %v1108
        %v1172 = vmul.f32 %v852, %v1108
        %v1173 = vmax.f32 %v1109, 0.0
        %v1174 = vmax.f32 %v1110, 0.0
        %v1175 = vmax.f32 %v1111, 0.0
        %v1176 = vmax.f32 %v1112, 0.0
        %v1177 = vmax.f32 %v1113, 0.0
        %v1178 = vmax.f32 %v1114, 0.0
        %v1179 = vmax.f32 %v1115, 0.0
        %v1180 = vmax.f32 %v1116, 0.0
        %v1181 = vmax.f32 %v1117, 0.0
        %v1182 = vmax.f32 %v1118, 0.0
        %v1183 = vmax.f32 %v1119, 0.0
        %v1184 = vmax.f32 %v1120, 0.0
        %v1185 = vmax.f32 %v1121, 0.0
        %v1186 = vmax.f32 %v1122, 0.0
        %v1187 = vmax.f32 %v1123, 0.0
        %v1188 = vmax.f32 %v1124, 0.0
        %v1189 = vmax.f32 %v1125, 0.0
        %v1190 = vmax.f32 %v1126, 0.0
        %v1191 = vmax.f32 %v1127, 0.0
        %v1192 = vmax.f32 %v1128, 0.0
        %v1193 = vmax.f32 %v1129, 0.0
        %v1194 = vmax.f32 %v1130, 0.0
        %v1195 = vmax.f32 %v1131, 0.0
        %v1196 = vmax.f32 %v1132, 0.0
        %v1197 = vmax.f32 %v1133, 0.0
        %v1198 = vmax.f32 %v1134, 0.0
        %v1199 = vmax.f32 %v1135, 0.0
        %v1200 = vmax.f32 %v1136, 0.0
        %v1201 = vmax.f32 %v1137, 0.0
        %v1202 = vmax.f32 %v1138, 0.0
        %v1203 = vmax.f32 %v1139, 0.0
        %v1204 = vmax.f32 %v1140, 0.0
        %v1205 = vmax.f32 %v1141, 0.0
        %v1206 = vmax.f32 %v1142, 0.0
        %v1207 = vmax.f32 %v1143, 0.0
        %v1208 = vmax.f32 %v1144, 0.0
        %v1209 = vmax.f32 %v1145, 0.0
        %v1210 = vmax.f32 %v1146, 0.0
        %v1211 = vmax.f32 %v1147, 0.0
        %v1212 = vmax.f32 %v1148, 0.0
        %v1213 = vmax.f32 %v1149, 0.0
        %v1214 = vmax.f32 %v1150, 0.0
        %v1215 = vmax.f32 %v1151, 0.0
        %v1216 = vmax.f32 %v1152, 0.0
        %v1217 = vmax.f32 %v1153, 0.0
        %v1218 = vmax.f32 %v1154, 0.0
        %v1219 = vmax.f32 %v1155, 0.0
        %v1220 = vmax.f32 %v1156, 0.0
        %v1221 = vmax.f32 %v1157, 0.0
        %v1222 = vmax.f32 %v1158, 0.0
        %v1223 = vmax.f32 %v1159, 0.0
        %v1224 = vmax.f32 %v1160, 0.0
        %v1225 = vmax.f32 %v1161, 0.0
        %v1226 = vmax.f32 %v1162, 0.0
        %v1227 = vmax.f32 %v1163, 0.0
        %v1228 = vmax.f32 %v1164, 0.0
        %v1229 = vmax.f32 %v1165, 0.0
        %v1230 = vmax.f32 %v1166, 0.0
        %v1231 = vmax.f32 %v1167, 0.0
        %v1232 = vmax.f32 %v1168, 0.0
        %v1233 = vmax.f32 %v1169, 0.0
        %v1234 = vmax.f32 %v1170, 0.0
        %v1235 = vmax.f32 %v1171, 0.0
        %v1236 = vmax.f32 %v1172, 0.0
        %v1237 = vpack.c.bf16 %v1175, %v1173
        %v1238 = vpack.c.bf16 %v1176, %v1174
        %v1239 = vpack.c.bf16 %v1179, %v1177
        %v1240 = vpack.c.bf16 %v1180, %v1178
        %v1241 = vpack.c.bf16 %v1183, %v1181
        %v1242 = vpack.c.bf16 %v1184, %v1182
        %v1243 = vpack.c.bf16 %v1187, %v1185
        %v1244 = vpack.c.bf16 %v1188, %v1186
        %v1245 = vpack.c.bf16 %v1191, %v1189
        %v1246 = vpack.c.bf16 %v1192, %v1190
        %v1247 = vpack.c.bf16 %v1195, %v1193
        %v1248 = vpack.c.bf16 %v1196, %v1194
        %v1249 = vpack.c.bf16 %v1199, %v1197
        %v1250 = vpack.c.bf16 %v1200, %v1198
        %v1251 = vpack.c.bf16 %v1203, %v1201
        %v1252 = vpack.c.bf16 %v1204, %v1202
        %v1253 = vpack.c.bf16 %v1207, %v1205
        %v1254 = vpack.c.bf16 %v1208, %v1206
        %v1255 = vpack.c.bf16 %v1211, %v1209
        %v1256 = vpack.c.bf16 %v1212, %v1210
        %v1257 = vpack.c.bf16 %v1215, %v1213
        %v1258 = vpack.c.bf16 %v1216, %v1214
        %v1259 = vpack.c.bf16 %v1219, %v1217
        %v1260 = vpack.c.bf16 %v1220, %v1218
        %v1261 = vpack.c.bf16 %v1223, %v1221
        %v1262 = vpack.c.bf16 %v1224, %v1222
        %v1263 = vpack.c.bf16 %v1227, %v1225
        %v1264 = vpack.c.bf16 %v1228, %v1226
        %v1265 = vpack.c.bf16 %v1231, %v1229
        %v1266 = vpack.c.bf16 %v1232, %v1230
        %v1267 = vpack.c.bf16 %v1235, %v1233
        %v1268 = vpack.c.bf16 %v1236, %v1234
        %s1269 = smul.addr %s241, 4
        %s1270 = scalar_lea.vmem [#allocation6], %s1269
        %v1271 = vld [vmem:[%s1270] sm:$0xff]
        %v1272 = vld [vmem:[%s1270 + $0x8] sm:$0xff]
        %v1273 = vld [vmem:[%s1270 + $0x10] sm:$0xff]
        %v1274 = vld [vmem:[%s1270 + $0x18] sm:$0xff]
        %v1275 = vld [vmem:[%s1270 + $0x20] sm:$0xff]
        %v1276 = vld [vmem:[%s1270 + $0x28] sm:$0xff]
        %v1277 = vld [vmem:[%s1270 + $0x30] sm:$0xff]
        %v1278 = vld [vmem:[%s1270 + $0x38] sm:$0xff]
        %v1279 = vld [vmem:[%s1270 + $0x40] sm:$0xff]
        %v1280 = vld [vmem:[%s1270 + $0x48] sm:$0xff]
        %v1281 = vld [vmem:[%s1270 + $0x50] sm:$0xff]
        %v1282 = vld [vmem:[%s1270 + $0x58] sm:$0xff]
        %v1283 = vld [vmem:[%s1270 + $0x60] sm:$0xff]
        %v1284 = vld [vmem:[%s1270 + $0x68] sm:$0xff]
        %v1285 = vld [vmem:[%s1270 + $0x70] sm:$0xff]
        %v1286 = vld [vmem:[%s1270 + $0x78] sm:$0xff]
        %v1287 = vld [vmem:[%s1270 + $0x80] sm:$0xff]
        %v1288 = vld [vmem:[%s1270 + $0x88] sm:$0xff]
        %v1289 = vld [vmem:[%s1270 + $0x90] sm:$0xff]
        %v1290 = vld [vmem:[%s1270 + $0x98] sm:$0xff]
        %v1291 = vld [vmem:[%s1270 + $0xa0] sm:$0xff]
        %v1292 = vld [vmem:[%s1270 + $0xa8] sm:$0xff]
        %v1293 = vld [vmem:[%s1270 + $0xb0] sm:$0xff]
        %v1294 = vld [vmem:[%s1270 + $0xb8] sm:$0xff]
        %v1295 = vld [vmem:[%s1270 + $0xc0] sm:$0xff]
        %v1296 = vld [vmem:[%s1270 + $0xc8] sm:$0xff]
        %v1297 = vld [vmem:[%s1270 + $0xd0] sm:$0xff]
        %v1298 = vld [vmem:[%s1270 + $0xd8] sm:$0xff]
        %v1299 = vld [vmem:[%s1270 + $0xe0] sm:$0xff]
        %v1300 = vld [vmem:[%s1270 + $0xe8] sm:$0xff]
        %v1301 = vld [vmem:[%s1270 + $0xf0] sm:$0xff]
        %v1302 = vld [vmem:[%s1270 + $0xf8] sm:$0xff]
        %s1303 = smul.u32 %s172, 256
        %s1304 = scalar_lea.vmem %s5, %s1303
        %v1305 = vld [vmem:[%s1304] sm:$0xff]
        %v1306 = vld [vmem:[%s1304 + $0x8] sm:$0xff]
        %v1307 = vld [vmem:[%s1304 + $0x10] sm:$0xff]
        %v1308 = vld [vmem:[%s1304 + $0x18] sm:$0xff]
        %v1309 = vld [vmem:[%s1304 + $0x20] sm:$0xff]
        %v1310 = vld [vmem:[%s1304 + $0x28] sm:$0xff]
        %v1311 = vld [vmem:[%s1304 + $0x30] sm:$0xff]
        %v1312 = vld [vmem:[%s1304 + $0x38] sm:$0xff]
        %v1313 = vld [vmem:[%s1304 + $0x40] sm:$0xff]
        %v1314 = vld [vmem:[%s1304 + $0x48] sm:$0xff]
        %v1315 = vld [vmem:[%s1304 + $0x50] sm:$0xff]
        %v1316 = vld [vmem:[%s1304 + $0x58] sm:$0xff]
        %v1317 = vld [vmem:[%s1304 + $0x60] sm:$0xff]
        %v1318 = vld [vmem:[%s1304 + $0x68] sm:$0xff]
        %v1319 = vld [vmem:[%s1304 + $0x70] sm:$0xff]
        %v1320 = vld [vmem:[%s1304 + $0x78] sm:$0xff]
        %v1321 = vld [vmem:[%s1304 + $0x80] sm:$0xff]
        %v1322 = vld [vmem:[%s1304 + $0x88] sm:$0xff]
        %v1323 = vld [vmem:[%s1304 + $0x90] sm:$0xff]
        %v1324 = vld [vmem:[%s1304 + $0x98] sm:$0xff]
        %v1325 = vld [vmem:[%s1304 + $0xa0] sm:$0xff]
        %v1326 = vld [vmem:[%s1304 + $0xa8] sm:$0xff]
        %v1327 = vld [vmem:[%s1304 + $0xb0] sm:$0xff]
        %v1328 = vld [vmem:[%s1304 + $0xb8] sm:$0xff]
        %v1329 = vld [vmem:[%s1304 + $0xc0] sm:$0xff]
        %v1330 = vld [vmem:[%s1304 + $0xc8] sm:$0xff]
        %v1331 = vld [vmem:[%s1304 + $0xd0] sm:$0xff]
        %v1332 = vld [vmem:[%s1304 + $0xd8] sm:$0xff]
        %v1333 = vld [vmem:[%s1304 + $0xe0] sm:$0xff]
        %v1334 = vld [vmem:[%s1304 + $0xe8] sm:$0xff]
        %v1335 = vld [vmem:[%s1304 + $0xf0] sm:$0xff]
        %v1336 = vld [vmem:[%s1304 + $0xf8] sm:$0xff]
        %1338 = vset.pattern.permute.xlu0 0
        %1339 = vperm.xlu0 %1338, %v1305
        %v1340 = vpop.permute.xlu0 %1339
        %1343 = vset.pattern.permute.xlu0 0
        %1344 = vperm.xlu0 %1343, %v1306
        %v1345 = vpop.permute.xlu0 %1344
        %1348 = vset.pattern.permute.xlu0 0
        %1349 = vperm.xlu0 %1348, %v1307
        %v1350 = vpop.permute.xlu0 %1349
        %1353 = vset.pattern.permute.xlu0 0
        %1354 = vperm.xlu0 %1353, %v1308
        %v1355 = vpop.permute.xlu0 %1354
        %1358 = vset.pattern.permute.xlu0 0
        %1359 = vperm.xlu0 %1358, %v1309
        %v1360 = vpop.permute.xlu0 %1359
        %1363 = vset.pattern.permute.xlu0 0
        %1364 = vperm.xlu0 %1363, %v1310
        %v1365 = vpop.permute.xlu0 %1364
        %1368 = vset.pattern.permute.xlu0 0
        %1369 = vperm.xlu0 %1368, %v1311
        %v1370 = vpop.permute.xlu0 %1369
        %1373 = vset.pattern.permute.xlu0 0
        %1374 = vperm.xlu0 %1373, %v1312
        %v1375 = vpop.permute.xlu0 %1374
        %1378 = vset.pattern.permute.xlu0 0
        %1379 = vperm.xlu0 %1378, %v1313
        %v1380 = vpop.permute.xlu0 %1379
        %1383 = vset.pattern.permute.xlu0 0
        %1384 = vperm.xlu0 %1383, %v1314
        %v1385 = vpop.permute.xlu0 %1384
        %1388 = vset.pattern.permute.xlu0 0
        %1389 = vperm.xlu0 %1388, %v1315
        %v1390 = vpop.permute.xlu0 %1389
        %1393 = vset.pattern.permute.xlu0 0
        %1394 = vperm.xlu0 %1393, %v1316
        %v1395 = vpop.permute.xlu0 %1394
        %1398 = vset.pattern.permute.xlu0 0
        %1399 = vperm.xlu0 %1398, %v1317
        %v1400 = vpop.permute.xlu0 %1399
        %1403 = vset.pattern.permute.xlu0 0
        %1404 = vperm.xlu0 %1403, %v1318
        %v1405 = vpop.permute.xlu0 %1404
        %1408 = vset.pattern.permute.xlu0 0
        %1409 = vperm.xlu0 %1408, %v1319
        %v1410 = vpop.permute.xlu0 %1409
        %1413 = vset.pattern.permute.xlu0 0
        %1414 = vperm.xlu0 %1413, %v1320
        %v1415 = vpop.permute.xlu0 %1414
        %1418 = vset.pattern.permute.xlu0 0
        %1419 = vperm.xlu0 %1418, %v1321
        %v1420 = vpop.permute.xlu0 %1419
        %1423 = vset.pattern.permute.xlu0 0
        %1424 = vperm.xlu0 %1423, %v1322
        %v1425 = vpop.permute.xlu0 %1424
        %1428 = vset.pattern.permute.xlu0 0
        %1429 = vperm.xlu0 %1428, %v1323
        %v1430 = vpop.permute.xlu0 %1429
        %1433 = vset.pattern.permute.xlu0 0
        %1434 = vperm.xlu0 %1433, %v1324
        %v1435 = vpop.permute.xlu0 %1434
        %1438 = vset.pattern.permute.xlu0 0
        %1439 = vperm.xlu0 %1438, %v1325
        %v1440 = vpop.permute.xlu0 %1439
        %1443 = vset.pattern.permute.xlu0 0
        %1444 = vperm.xlu0 %1443, %v1326
        %v1445 = vpop.permute.xlu0 %1444
        %1448 = vset.pattern.permute.xlu0 0
        %1449 = vperm.xlu0 %1448, %v1327
        %v1450 = vpop.permute.xlu0 %1449
        %1453 = vset.pattern.permute.xlu0 0
        %1454 = vperm.xlu0 %1453, %v1328
        %v1455 = vpop.permute.xlu0 %1454
        %1458 = vset.pattern.permute.xlu0 0
        %1459 = vperm.xlu0 %1458, %v1329
        %v1460 = vpop.permute.xlu0 %1459
        %1463 = vset.pattern.permute.xlu0 0
        %1464 = vperm.xlu0 %1463, %v1330
        %v1465 = vpop.permute.xlu0 %1464
        %1468 = vset.pattern.permute.xlu0 0
        %1469 = vperm.xlu0 %1468, %v1331
        %v1470 = vpop.permute.xlu0 %1469
        %1473 = vset.pattern.permute.xlu0 0
        %1474 = vperm.xlu0 %1473, %v1332
        %v1475 = vpop.permute.xlu0 %1474
        %1478 = vset.pattern.permute.xlu0 0
        %1479 = vperm.xlu0 %1478, %v1333
        %v1480 = vpop.permute.xlu0 %1479
        %1483 = vset.pattern.permute.xlu0 0
        %1484 = vperm.xlu0 %1483, %v1334
        %v1485 = vpop.permute.xlu0 %1484
        %1488 = vset.pattern.permute.xlu0 0
        %1489 = vperm.xlu0 %1488, %v1335
        %v1490 = vpop.permute.xlu0 %1489
        %1493 = vset.pattern.permute.xlu0 0
        %1494 = vperm.xlu0 %1493, %v1336
        %v1495 = vpop.permute.xlu0 %1494
        %v1529 = vunpack.c.l.b16 %v1271
        %v1530 = vunpack.c.h.b16 %v1271
        %v1531 = vunpack.c.l.b16 %v1272
        %v1532 = vunpack.c.h.b16 %v1272
        %v1533 = vunpack.c.l.b16 %v1273
        %v1534 = vunpack.c.h.b16 %v1273
        %v1535 = vunpack.c.l.b16 %v1274
        %v1536 = vunpack.c.h.b16 %v1274
        %v1537 = vunpack.c.l.b16 %v1275
        %v1538 = vunpack.c.h.b16 %v1275
        %v1539 = vunpack.c.l.b16 %v1276
        %v1540 = vunpack.c.h.b16 %v1276
        %v1541 = vunpack.c.l.b16 %v1277
        %v1542 = vunpack.c.h.b16 %v1277
        %v1543 = vunpack.c.l.b16 %v1278
        %v1544 = vunpack.c.h.b16 %v1278
        %v1545 = vunpack.c.l.b16 %v1279
        %v1546 = vunpack.c.h.b16 %v1279
        %v1547 = vunpack.c.l.b16 %v1280
        %v1548 = vunpack.c.h.b16 %v1280
        %v1549 = vunpack.c.l.b16 %v1281
        %v1550 = vunpack.c.h.b16 %v1281
        %v1551 = vunpack.c.l.b16 %v1282
        %v1552 = vunpack.c.h.b16 %v1282
        %v1553 = vunpack.c.l.b16 %v1283
        %v1554 = vunpack.c.h.b16 %v1283
        %v1555 = vunpack.c.l.b16 %v1284
        %v1556 = vunpack.c.h.b16 %v1284
        %v1557 = vunpack.c.l.b16 %v1285
        %v1558 = vunpack.c.h.b16 %v1285
        %v1559 = vunpack.c.l.b16 %v1286
        %v1560 = vunpack.c.h.b16 %v1286
        %v1561 = vunpack.c.l.b16 %v1287
        %v1562 = vunpack.c.h.b16 %v1287
        %v1563 = vunpack.c.l.b16 %v1288
        %v1564 = vunpack.c.h.b16 %v1288
        %v1565 = vunpack.c.l.b16 %v1289
        %v1566 = vunpack.c.h.b16 %v1289
        %v1567 = vunpack.c.l.b16 %v1290
        %v1568 = vunpack.c.h.b16 %v1290
        %v1569 = vunpack.c.l.b16 %v1291
        %v1570 = vunpack.c.h.b16 %v1291
        %v1571 = vunpack.c.l.b16 %v1292
        %v1572 = vunpack.c.h.b16 %v1292
        %v1573 = vunpack.c.l.b16 %v1293
        %v1574 = vunpack.c.h.b16 %v1293
        %v1575 = vunpack.c.l.b16 %v1294
        %v1576 = vunpack.c.h.b16 %v1294
        %v1577 = vunpack.c.l.b16 %v1295
        %v1578 = vunpack.c.h.b16 %v1295
        %v1579 = vunpack.c.l.b16 %v1296
        %v1580 = vunpack.c.h.b16 %v1296
        %v1581 = vunpack.c.l.b16 %v1297
        %v1582 = vunpack.c.h.b16 %v1297
        %v1583 = vunpack.c.l.b16 %v1298
        %v1584 = vunpack.c.h.b16 %v1298
        %v1585 = vunpack.c.l.b16 %v1299
        %v1586 = vunpack.c.h.b16 %v1299
        %v1587 = vunpack.c.l.b16 %v1300
        %v1588 = vunpack.c.h.b16 %v1300
        %v1589 = vunpack.c.l.b16 %v1301
        %v1590 = vunpack.c.h.b16 %v1301
        %v1591 = vunpack.c.l.b16 %v1302
        %v1592 = vunpack.c.h.b16 %v1302
        %v1593 = vpack.c.b16 %v1531, %v1529
        %v1594 = vpack.c.b16 %v1532, %v1530
        %v1595 = vpack.c.b16 %v1535, %v1533
        %v1596 = vpack.c.b16 %v1536, %v1534
        %v1597 = vpack.c.b16 %v1539, %v1537
        %v1598 = vpack.c.b16 %v1540, %v1538
        %v1599 = vpack.c.b16 %v1543, %v1541
        %v1600 = vpack.c.b16 %v1544, %v1542
        %v1601 = vpack.c.b16 %v1547, %v1545
        %v1602 = vpack.c.b16 %v1548, %v1546
        %v1603 = vpack.c.b16 %v1551, %v1549
        %v1604 = vpack.c.b16 %v1552, %v1550
        %v1605 = vpack.c.b16 %v1555, %v1553
        %v1606 = vpack.c.b16 %v1556, %v1554
        %v1607 = vpack.c.b16 %v1559, %v1557
        %v1608 = vpack.c.b16 %v1560, %v1558
        %v1609 = vpack.c.b16 %v1563, %v1561
        %v1610 = vpack.c.b16 %v1564, %v1562
        %v1611 = vpack.c.b16 %v1567, %v1565
        %v1612 = vpack.c.b16 %v1568, %v1566
        %v1613 = vpack.c.b16 %v1571, %v1569
        %v1614 = vpack.c.b16 %v1572, %v1570
        %v1615 = vpack.c.b16 %v1575, %v1573
        %v1616 = vpack.c.b16 %v1576, %v1574
        %v1617 = vpack.c.b16 %v1579, %v1577
        %v1618 = vpack.c.b16 %v1580, %v1578
        %v1619 = vpack.c.b16 %v1583, %v1581
        %v1620 = vpack.c.b16 %v1584, %v1582
        %v1621 = vpack.c.b16 %v1587, %v1585
        %v1622 = vpack.c.b16 %v1588, %v1586
        %v1623 = vpack.c.b16 %v1591, %v1589
        %v1624 = vpack.c.b16 %v1592, %v1590
        %1657 = vmatprep.subr.bf16.mxu0 %v1238
        %1658 = vmatpush1.bf16.msra.mxu0 %v1237
        %1659 = vmatprep.subr.bf16.mxu0 %v1240
        %1660 = vmatpush1.bf16.msra.mxu0 %v1239
        %1661 = vmatprep.subr.bf16.mxu0 %v1242
        %1662 = vmatpush1.bf16.msra.mxu0 %v1241
        %1663 = vmatprep.subr.bf16.mxu0 %v1244
        %1664 = vmatpush1.bf16.msra.mxu0 %v1243
        %1665 = vmatprep.subr.bf16.mxu0 %v1246
        %1666 = vmatpush1.bf16.msra.mxu0 %v1245
        %1667 = vmatprep.subr.bf16.mxu0 %v1248
        %1668 = vmatpush1.bf16.msra.mxu0 %v1247
        %1669 = vmatprep.subr.bf16.mxu0 %v1250
        %1670 = vmatpush1.bf16.msra.mxu0 %v1249
        %1671 = vmatprep.subr.bf16.mxu0 %v1252
        %1672 = vmatpush1.bf16.msra.mxu0 %v1251
        %1673 = vmatprep.subr.bf16.mxu0 %v1254
        %1674 = vmatpush1.bf16.msra.mxu0 %v1253
        %1675 = vmatprep.subr.bf16.mxu0 %v1256
        %1676 = vmatpush1.bf16.msra.mxu0 %v1255
        %1677 = vmatprep.subr.bf16.mxu0 %v1258
        %1678 = vmatpush1.bf16.msra.mxu0 %v1257
        %1679 = vmatprep.subr.bf16.mxu0 %v1260
        %1680 = vmatpush1.bf16.msra.mxu0 %v1259
        %1681 = vmatprep.subr.bf16.mxu0 %v1262
        %1682 = vmatpush1.bf16.msra.mxu0 %v1261
        %1683 = vmatprep.subr.bf16.mxu0 %v1264
        %1684 = vmatpush1.bf16.msra.mxu0 %v1263
        %1685 = vmatprep.subr.bf16.mxu0 %v1266
        %1686 = vmatpush1.bf16.msra.mxu0 %v1265
        %1687 = vmatprep.subr.bf16.mxu0 %v1268
        %1688 = vmatpush1.bf16.msra.mxu0 %v1267
        %1689 = vmatprep.mubr.bf16.mxu0 %v1594
        %1690 = vmatmul.mubr.bf16.gmra.mrb[0].mxu0 %v1593
        %v1691 = vpop.f32.mrb[0].mxu0
        %v1692 = vadd.f32 %v1340, %v1691
        %v1693 = vpop.f32.mrb[0].mxu0
        %v1694 = vadd.f32 %v1340, %v1693
        %v1695 = vpop.f32.mrb[0].mxu0
        %v1696 = vadd.f32 %v1345, %v1695
        %v1697 = vpop.f32.mrb[0].mxu0
        %v1698 = vadd.f32 %v1345, %v1697
        %1699 = vmatprep.mubr.bf16.mxu0 %v1596
        %1700 = vmatmul.mubr.bf16.gmra.mrb[0].mxu0 %v1595
        %v1701 = vpop.f32.mrb[0].mxu0
        %v1702 = vadd.f32 %v1350, %v1701
        %v1703 = vpop.f32.mrb[0].mxu0
        %v1704 = vadd.f32 %v1350, %v1703
        %v1705 = vpop.f32.mrb[0].mxu0
        %v1706 = vadd.f32 %v1355, %v1705
        %v1707 = vpop.f32.mrb[0].mxu0
        %v1708 = vadd.f32 %v1355, %v1707
        %1709 = vmatprep.mubr.bf16.mxu0 %v1598
        %1710 = vmatmul.mubr.bf16.gmra.mrb[0].mxu0 %v1597
        %v1711 = vpop.f32.mrb[0].mxu0
        %v1712 = vadd.f32 %v1360, %v1711
        %v1713 = vpop.f32.mrb[0].mxu0
        %v1714 = vadd.f32 %v1360, %v1713
        %v1715 = vpop.f32.mrb[0].mxu0
        %v1716 = vadd.f32 %v1365, %v1715
        %v1717 = vpop.f32.mrb[0].mxu0
        %v1718 = vadd.f32 %v1365, %v1717
        %1719 = vmatprep.mubr.bf16.mxu0 %v1600
        %1720 = vmatmul.mubr.bf16.gmra.mrb[0].mxu0 %v1599
        %v1721 = vpop.f32.mrb[0].mxu0
        %v1722 = vadd.f32 %v1370, %v1721
        %v1723 = vpop.f32.mrb[0].mxu0
        %v1724 = vadd.f32 %v1370, %v1723
        %v1725 = vpop.f32.mrb[0].mxu0
        %v1726 = vadd.f32 %v1375, %v1725
        %v1727 = vpop.f32.mrb[0].mxu0
        %v1728 = vadd.f32 %v1375, %v1727
        %1729 = vmatprep.mubr.bf16.mxu0 %v1602
        %1730 = vmatmul.mubr.bf16.gmra.mrb[0].mxu0 %v1601
        %v1731 = vpop.f32.mrb[0].mxu0
        %v1732 = vadd.f32 %v1380, %v1731
        %v1733 = vpop.f32.mrb[0].mxu0
        %v1734 = vadd.f32 %v1380, %v1733
        %v1735 = vpop.f32.mrb[0].mxu0
        %v1736 = vadd.f32 %v1385, %v1735
        %v1737 = vpop.f32.mrb[0].mxu0
        %v1738 = vadd.f32 %v1385, %v1737
        %1739 = vmatprep.mubr.bf16.mxu0 %v1604
        %1740 = vmatmul.mubr.bf16.gmra.mrb[0].mxu0 %v1603
        %v1741 = vpop.f32.mrb[0].mxu0
        %v1742 = vadd.f32 %v1390, %v1741
        %v1743 = vpop.f32.mrb[0].mxu0
        %v1744 = vadd.f32 %v1390, %v1743
        %v1745 = vpop.f32.mrb[0].mxu0
        %v1746 = vadd.f32 %v1395, %v1745
        %v1747 = vpop.f32.mrb[0].mxu0
        %v1748 = vadd.f32 %v1395, %v1747
        %1749 = vmatprep.mubr.bf16.mxu0 %v1606
        %1750 = vmatmul.mubr.bf16.gmra.mrb[0].mxu0 %v1605
        %v1751 = vpop.f32.mrb[0].mxu0
        %v1752 = vadd.f32 %v1400, %v1751
        %v1753 = vpop.f32.mrb[0].mxu0
        %v1754 = vadd.f32 %v1400, %v1753
        %v1755 = vpop.f32.mrb[0].mxu0
        %v1756 = vadd.f32 %v1405, %v1755
        %v1757 = vpop.f32.mrb[0].mxu0
        %v1758 = vadd.f32 %v1405, %v1757
        %1759 = vmatprep.mubr.bf16.mxu0 %v1608
        %1760 = vmatmul.mubr.bf16.gmra.mrb[0].mxu0 %v1607
        %v1761 = vpop.f32.mrb[0].mxu0
        %v1762 = vadd.f32 %v1410, %v1761
        %v1763 = vpop.f32.mrb[0].mxu0
        %v1764 = vadd.f32 %v1410, %v1763
        %v1765 = vpop.f32.mrb[0].mxu0
        %v1766 = vadd.f32 %v1415, %v1765
        %v1767 = vpop.f32.mrb[0].mxu0
        %v1768 = vadd.f32 %v1415, %v1767
        %1769 = vmatprep.mubr.bf16.mxu0 %v1610
        %1770 = vmatmul.mubr.bf16.gmra.mrb[0].mxu0 %v1609
        %v1771 = vpop.f32.mrb[0].mxu0
        %v1772 = vadd.f32 %v1420, %v1771
        %v1773 = vpop.f32.mrb[0].mxu0
        %v1774 = vadd.f32 %v1420, %v1773
        %v1775 = vpop.f32.mrb[0].mxu0
        %v1776 = vadd.f32 %v1425, %v1775
        %v1777 = vpop.f32.mrb[0].mxu0
        %v1778 = vadd.f32 %v1425, %v1777
        %1779 = vmatprep.mubr.bf16.mxu0 %v1612
        %1780 = vmatmul.mubr.bf16.gmra.mrb[0].mxu0 %v1611
        %v1781 = vpop.f32.mrb[0].mxu0
        %v1782 = vadd.f32 %v1430, %v1781
        %v1783 = vpop.f32.mrb[0].mxu0
        %v1784 = vadd.f32 %v1430, %v1783
        %v1785 = vpop.f32.mrb[0].mxu0
        %v1786 = vadd.f32 %v1435, %v1785
        %v1787 = vpop.f32.mrb[0].mxu0
        %v1788 = vadd.f32 %v1435, %v1787
        %1789 = vmatprep.mubr.bf16.mxu0 %v1614
        %1790 = vmatmul.mubr.bf16.gmra.mrb[0].mxu0 %v1613
        %v1791 = vpop.f32.mrb[0].mxu0
        %v1792 = vadd.f32 %v1440, %v1791
        %v1793 = vpop.f32.mrb[0].mxu0
        %v1794 = vadd.f32 %v1440, %v1793
        %v1795 = vpop.f32.mrb[0].mxu0
        %v1796 = vadd.f32 %v1445, %v1795
        %v1797 = vpop.f32.mrb[0].mxu0
        %v1798 = vadd.f32 %v1445, %v1797
        %1799 = vmatprep.mubr.bf16.mxu0 %v1616
        %1800 = vmatmul.mubr.bf16.gmra.mrb[0].mxu0 %v1615
        %v1801 = vpop.f32.mrb[0].mxu0
        %v1802 = vadd.f32 %v1450, %v1801
        %v1803 = vpop.f32.mrb[0].mxu0
        %v1804 = vadd.f32 %v1450, %v1803
        %v1805 = vpop.f32.mrb[0].mxu0
        %v1806 = vadd.f32 %v1455, %v1805
        %v1807 = vpop.f32.mrb[0].mxu0
        %v1808 = vadd.f32 %v1455, %v1807
        %1809 = vmatprep.mubr.bf16.mxu0 %v1618
        %1810 = vmatmul.mubr.bf16.gmra.mrb[0].mxu0 %v1617
        %v1811 = vpop.f32.mrb[0].mxu0
        %v1812 = vadd.f32 %v1460, %v1811
        %v1813 = vpop.f32.mrb[0].mxu0
        %v1814 = vadd.f32 %v1460, %v1813
        %v1815 = vpop.f32.mrb[0].mxu0
        %v1816 = vadd.f32 %v1465, %v1815
        %v1817 = vpop.f32.mrb[0].mxu0
        %v1818 = vadd.f32 %v1465, %v1817
        %1819 = vmatprep.mubr.bf16.mxu0 %v1620
        %1820 = vmatmul.mubr.bf16.gmra.mrb[0].mxu0 %v1619
        %v1821 = vpop.f32.mrb[0].mxu0
        %v1822 = vadd.f32 %v1470, %v1821
        %v1823 = vpop.f32.mrb[0].mxu0
        %v1824 = vadd.f32 %v1470, %v1823
        %v1825 = vpop.f32.mrb[0].mxu0
        %v1826 = vadd.f32 %v1475, %v1825
        %v1827 = vpop.f32.mrb[0].mxu0
        %v1828 = vadd.f32 %v1475, %v1827
        %1829 = vmatprep.mubr.bf16.mxu0 %v1622
        %1830 = vmatmul.mubr.bf16.gmra.mrb[0].mxu0 %v1621
        %v1831 = vpop.f32.mrb[0].mxu0
        %v1832 = vadd.f32 %v1480, %v1831
        %v1833 = vpop.f32.mrb[0].mxu0
        %v1834 = vadd.f32 %v1480, %v1833
        %v1835 = vpop.f32.mrb[0].mxu0
        %v1836 = vadd.f32 %v1485, %v1835
        %v1837 = vpop.f32.mrb[0].mxu0
        %v1838 = vadd.f32 %v1485, %v1837
        %1839 = vmatprep.mubr.bf16.mxu0 %v1624
        %1840 = vmatmul.mubr.bf16.gmra.mrb[0].mxu0 %v1623
        %v1841 = vpop.f32.mrb[0].mxu0
        %v1842 = vadd.f32 %v1490, %v1841
        %v1843 = vpop.f32.mrb[0].mxu0
        %v1844 = vadd.f32 %v1490, %v1843
        %v1845 = vpop.f32.mrb[0].mxu0
        %v1846 = vadd.f32 %v1495, %v1845
        %v1847 = vpop.f32.mrb[0].mxu0
        %v1848 = vadd.f32 %v1495, %v1847
        %1849 = vdwg.mxu0
        %s1850 = smul.u32 %s172, 128
        %s1851 = sld [smem:[#allocation11 + %s1850]]
        %vm1852 = vcmp.ge.f32.partialorder %v1692, 0.0
        %vm1853 = vcmp.ge.f32.partialorder %v1694, 0.0
        %vm1854 = vcmp.ge.f32.partialorder %v1696, 0.0
        %vm1855 = vcmp.ge.f32.partialorder %v1698, 0.0
        %vm1856 = vcmp.ge.f32.partialorder %v1702, 0.0
        %vm1857 = vcmp.ge.f32.partialorder %v1704, 0.0
        %vm1858 = vcmp.ge.f32.partialorder %v1706, 0.0
        %vm1859 = vcmp.ge.f32.partialorder %v1708, 0.0
        %vm1860 = vcmp.ge.f32.partialorder %v1712, 0.0
        %vm1861 = vcmp.ge.f32.partialorder %v1714, 0.0
        %vm1862 = vcmp.ge.f32.partialorder %v1716, 0.0
        %vm1863 = vcmp.ge.f32.partialorder %v1718, 0.0
        %vm1864 = vcmp.ge.f32.partialorder %v1722, 0.0
        %vm1865 = vcmp.ge.f32.partialorder %v1724, 0.0
        %vm1866 = vcmp.ge.f32.partialorder %v1726, 0.0
        %vm1867 = vcmp.ge.f32.partialorder %v1728, 0.0
        %vm1868 = vcmp.ge.f32.partialorder %v1732, 0.0
        %vm1869 = vcmp.ge.f32.partialorder %v1734, 0.0
        %vm1870 = vcmp.ge.f32.partialorder %v1736, 0.0
        %vm1871 = vcmp.ge.f32.partialorder %v1738, 0.0
        %vm1872 = vcmp.ge.f32.partialorder %v1742, 0.0
        %vm1873 = vcmp.ge.f32.partialorder %v1744, 0.0
        %vm1874 = vcmp.ge.f32.partialorder %v1746, 0.0
        %vm1875 = vcmp.ge.f32.partialorder %v1748, 0.0
        %vm1876 = vcmp.ge.f32.partialorder %v1752, 0.0
        %vm1877 = vcmp.ge.f32.partialorder %v1754, 0.0
        %vm1878 = vcmp.ge.f32.partialorder %v1756, 0.0
        %vm1879 = vcmp.ge.f32.partialorder %v1758, 0.0
        %vm1880 = vcmp.ge.f32.partialorder %v1762, 0.0
        %vm1881 = vcmp.ge.f32.partialorder %v1764, 0.0
        %vm1882 = vcmp.ge.f32.partialorder %v1766, 0.0
        %vm1883 = vcmp.ge.f32.partialorder %v1768, 0.0
        %vm1884 = vcmp.ge.f32.partialorder %v1772, 0.0
        %vm1885 = vcmp.ge.f32.partialorder %v1774, 0.0
        %vm1886 = vcmp.ge.f32.partialorder %v1776, 0.0
        %vm1887 = vcmp.ge.f32.partialorder %v1778, 0.0
        %vm1888 = vcmp.ge.f32.partialorder %v1782, 0.0
        %vm1889 = vcmp.ge.f32.partialorder %v1784, 0.0
        %vm1890 = vcmp.ge.f32.partialorder %v1786, 0.0
        %vm1891 = vcmp.ge.f32.partialorder %v1788, 0.0
        %vm1892 = vcmp.ge.f32.partialorder %v1792, 0.0
        %vm1893 = vcmp.ge.f32.partialorder %v1794, 0.0
        %vm1894 = vcmp.ge.f32.partialorder %v1796, 0.0
        %vm1895 = vcmp.ge.f32.partialorder %v1798, 0.0
        %vm1896 = vcmp.ge.f32.partialorder %v1802, 0.0
        %vm1897 = vcmp.ge.f32.partialorder %v1804, 0.0
        %vm1898 = vcmp.ge.f32.partialorder %v1806, 0.0
        %vm1899 = vcmp.ge.f32.partialorder %v1808, 0.0
        %vm1900 = vcmp.ge.f32.partialorder %v1812, 0.0
        %vm1901 = vcmp.ge.f32.partialorder %v1814, 0.0
        %vm1902 = vcmp.ge.f32.partialorder %v1816, 0.0
        %vm1903 = vcmp.ge.f32.partialorder %v1818, 0.0
        %vm1904 = vcmp.ge.f32.partialorder %v1822, 0.0
        %vm1905 = vcmp.ge.f32.partialorder %v1824, 0.0
        %vm1906 = vcmp.ge.f32.partialorder %v1826, 0.0
        %vm1907 = vcmp.ge.f32.partialorder %v1828, 0.0
        %vm1908 = vcmp.ge.f32.partialorder %v1832, 0.0
        %vm1909 = vcmp.ge.f32.partialorder %v1834, 0.0
        %vm1910 = vcmp.ge.f32.partialorder %v1836, 0.0
        %vm1911 = vcmp.ge.f32.partialorder %v1838, 0.0
        %vm1912 = vcmp.ge.f32.partialorder %v1842, 0.0
        %vm1913 = vcmp.ge.f32.partialorder %v1844, 0.0
        %vm1914 = vcmp.ge.f32.partialorder %v1846, 0.0
        %vm1915 = vcmp.ge.f32.partialorder %v1848, 0.0
        %v1916 = vstv %s1851
        %v1917 = vmul.f32 %v1692, %v1916
        %v1918 = vmul.f32 %v1694, %v1916
        %v1919 = vmul.f32 %v1696, %v1916
        %v1920 = vmul.f32 %v1698, %v1916
        %v1921 = vmul.f32 %v1702, %v1916
        %v1922 = vmul.f32 %v1704, %v1916
        %v1923 = vmul.f32 %v1706, %v1916
        %v1924 = vmul.f32 %v1708, %v1916
        %v1925 = vmul.f32 %v1712, %v1916
        %v1926 = vmul.f32 %v1714, %v1916
        %v1927 = vmul.f32 %v1716, %v1916
        %v1928 = vmul.f32 %v1718, %v1916
        %v1929 = vmul.f32 %v1722, %v1916
        %v1930 = vmul.f32 %v1724, %v1916
        %v1931 = vmul.f32 %v1726, %v1916
        %v1932 = vmul.f32 %v1728, %v1916
        %v1933 = vmul.f32 %v1732, %v1916
        %v1934 = vmul.f32 %v1734, %v1916
        %v1935 = vmul.f32 %v1736, %v1916
        %v1936 = vmul.f32 %v1738, %v1916
        %v1937 = vmul.f32 %v1742, %v1916
        %v1938 = vmul.f32 %v1744, %v1916
        %v1939 = vmul.f32 %v1746, %v1916
        %v1940 = vmul.f32 %v1748, %v1916
        %v1941 = vmul.f32 %v1752, %v1916
        %v1942 = vmul.f32 %v1754, %v1916
        %v1943 = vmul.f32 %v1756, %v1916
        %v1944 = vmul.f32 %v1758, %v1916
        %v1945 = vmul.f32 %v1762, %v1916
        %v1946 = vmul.f32 %v1764, %v1916
        %v1947 = vmul.f32 %v1766, %v1916
        %v1948 = vmul.f32 %v1768, %v1916
        %v1949 = vmul.f32 %v1772, %v1916
        %v1950 = vmul.f32 %v1774, %v1916
        %v1951 = vmul.f32 %v1776, %v1916
        %v1952 = vmul.f32 %v1778, %v1916
        %v1953 = vmul.f32 %v1782, %v1916
        %v1954 = vmul.f32 %v1784, %v1916
        %v1955 = vmul.f32 %v1786, %v1916
        %v1956 = vmul.f32 %v1788, %v1916
        %v1957 = vmul.f32 %v1792, %v1916
        %v1958 = vmul.f32 %v1794, %v1916
        %v1959 = vmul.f32 %v1796, %v1916
        %v1960 = vmul.f32 %v1798, %v1916
        %v1961 = vmul.f32 %v1802, %v1916
        %v1962 = vmul.f32 %v1804, %v1916
        %v1963 = vmul.f32 %v1806, %v1916
        %v1964 = vmul.f32 %v1808, %v1916
        %v1965 = vmul.f32 %v1812, %v1916
        %v1966 = vmul.f32 %v1814, %v1916
        %v1967 = vmul.f32 %v1816, %v1916
        %v1968 = vmul.f32 %v1818, %v1916
        %v1969 = vmul.f32 %v1822, %v1916
        %v1970 = vmul.f32 %v1824, %v1916
        %v1971 = vmul.f32 %v1826, %v1916
        %v1972 = vmul.f32 %v1828, %v1916
        %v1973 = vmul.f32 %v1832, %v1916
        %v1974 = vmul.f32 %v1834, %v1916
        %v1975 = vmul.f32 %v1836, %v1916
        %v1976 = vmul.f32 %v1838, %v1916
        %v1977 = vmul.f32 %v1842, %v1916
        %v1978 = vmul.f32 %v1844, %v1916
        %v1979 = vmul.f32 %v1846, %v1916
        %v1980 = vmul.f32 %v1848, %v1916
        %v1981 = vsel %vm1852, %v1692, %v1917
        %v1982 = vsel %vm1853, %v1694, %v1918
        %v1983 = vsel %vm1854, %v1696, %v1919
        %v1984 = vsel %vm1855, %v1698, %v1920
        %v1985 = vsel %vm1856, %v1702, %v1921
        %v1986 = vsel %vm1857, %v1704, %v1922
        %v1987 = vsel %vm1858, %v1706, %v1923
        %v1988 = vsel %vm1859, %v1708, %v1924
        %v1989 = vsel %vm1860, %v1712, %v1925
        %v1990 = vsel %vm1861, %v1714, %v1926
        %v1991 = vsel %vm1862, %v1716, %v1927
        %v1992 = vsel %vm1863, %v1718, %v1928
        %v1993 = vsel %vm1864, %v1722, %v1929
        %v1994 = vsel %vm1865, %v1724, %v1930
        %v1995 = vsel %vm1866, %v1726, %v1931
        %v1996 = vsel %vm1867, %v1728, %v1932
        %v1997 = vsel %vm1868, %v1732, %v1933
        %v1998 = vsel %vm1869, %v1734, %v1934
        %v1999 = vsel %vm1870, %v1736, %v1935
        %v2000 = vsel %vm1871, %v1738, %v1936
        %v2001 = vsel %vm1872, %v1742, %v1937
        %v2002 = vsel %vm1873, %v1744, %v1938
        %v2003 = vsel %vm1874, %v1746, %v1939
        %v2004 = vsel %vm1875, %v1748, %v1940
        %v2005 = vsel %vm1876, %v1752, %v1941
        %v2006 = vsel %vm1877, %v1754, %v1942
        %v2007 = vsel %vm1878, %v1756, %v1943
        %v2008 = vsel %vm1879, %v1758, %v1944
        %v2009 = vsel %vm1880, %v1762, %v1945
        %v2010 = vsel %vm1881, %v1764, %v1946
        %v2011 = vsel %vm1882, %v1766, %v1947
        %v2012 = vsel %vm1883, %v1768, %v1948
        %v2013 = vsel %vm1884, %v1772, %v1949
        %v2014 = vsel %vm1885, %v1774, %v1950
        %v2015 = vsel %vm1886, %v1776, %v1951
        %v2016 = vsel %vm1887, %v1778, %v1952
        %v2017 = vsel %vm1888, %v1782, %v1953
        %v2018 = vsel %vm1889, %v1784, %v1954
        %v2019 = vsel %vm1890, %v1786, %v1955
        %v2020 = vsel %vm1891, %v1788, %v1956
        %v2021 = vsel %vm1892, %v1792, %v1957
        %v2022 = vsel %vm1893, %v1794, %v1958
        %v2023 = vsel %vm1894, %v1796, %v1959
        %v2024 = vsel %vm1895, %v1798, %v1960
        %v2025 = vsel %vm1896, %v1802, %v1961
        %v2026 = vsel %vm1897, %v1804, %v1962
        %v2027 = vsel %vm1898, %v1806, %v1963
        %v2028 = vsel %vm1899, %v1808, %v1964
        %v2029 = vsel %vm1900, %v1812, %v1965
        %v2030 = vsel %vm1901, %v1814, %v1966
        %v2031 = vsel %vm1902, %v1816, %v1967
        %v2032 = vsel %vm1903, %v1818, %v1968
        %v2033 = vsel %vm1904, %v1822, %v1969
        %v2034 = vsel %vm1905, %v1824, %v1970
        %v2035 = vsel %vm1906, %v1826, %v1971
        %v2036 = vsel %vm1907, %v1828, %v1972
        %v2037 = vsel %vm1908, %v1832, %v1973
        %v2038 = vsel %vm1909, %v1834, %v1974
        %v2039 = vsel %vm1910, %v1836, %v1975
        %v2040 = vsel %vm1911, %v1838, %v1976
        %v2041 = vsel %vm1912, %v1842, %v1977
        %v2042 = vsel %vm1913, %v1844, %v1978
        %v2043 = vsel %vm1914, %v1846, %v1979
        %v2044 = vsel %vm1915, %v1848, %v1980
        %s2045 = smul.addr %s241, 4
        %s2046 = scalar_lea.vmem [#allocation8], %s2045
        %v2047 = vld [vmem:[%s2046] sm:$0xff]
        %v2048 = vld [vmem:[%s2046 + $0x8] sm:$0xff]
        %v2049 = vld [vmem:[%s2046 + $0x10] sm:$0xff]
        %v2050 = vld [vmem:[%s2046 + $0x18] sm:$0xff]
        %v2051 = vld [vmem:[%s2046 + $0x20] sm:$0xff]
        %v2052 = vld [vmem:[%s2046 + $0x28] sm:$0xff]
        %v2053 = vld [vmem:[%s2046 + $0x30] sm:$0xff]
        %v2054 = vld [vmem:[%s2046 + $0x38] sm:$0xff]
        %v2055 = vld [vmem:[%s2046 + $0x40] sm:$0xff]
        %v2056 = vld [vmem:[%s2046 + $0x48] sm:$0xff]
        %v2057 = vld [vmem:[%s2046 + $0x50] sm:$0xff]
        %v2058 = vld [vmem:[%s2046 + $0x58] sm:$0xff]
        %v2059 = vld [vmem:[%s2046 + $0x60] sm:$0xff]
        %v2060 = vld [vmem:[%s2046 + $0x68] sm:$0xff]
        %v2061 = vld [vmem:[%s2046 + $0x70] sm:$0xff]
        %v2062 = vld [vmem:[%s2046 + $0x78] sm:$0xff]
        %v2063 = vld [vmem:[%s2046 + $0x80] sm:$0xff]
        %v2064 = vld [vmem:[%s2046 + $0x88] sm:$0xff]
        %v2065 = vld [vmem:[%s2046 + $0x90] sm:$0xff]
        %v2066 = vld [vmem:[%s2046 + $0x98] sm:$0xff]
        %v2067 = vld [vmem:[%s2046 + $0xa0] sm:$0xff]
        %v2068 = vld [vmem:[%s2046 + $0xa8] sm:$0xff]
        %v2069 = vld [vmem:[%s2046 + $0xb0] sm:$0xff]
        %v2070 = vld [vmem:[%s2046 + $0xb8] sm:$0xff]
        %v2071 = vld [vmem:[%s2046 + $0xc0] sm:$0xff]
        %v2072 = vld [vmem:[%s2046 + $0xc8] sm:$0xff]
        %v2073 = vld [vmem:[%s2046 + $0xd0] sm:$0xff]
        %v2074 = vld [vmem:[%s2046 + $0xd8] sm:$0xff]
        %v2075 = vld [vmem:[%s2046 + $0xe0] sm:$0xff]
        %v2076 = vld [vmem:[%s2046 + $0xe8] sm:$0xff]
        %v2077 = vld [vmem:[%s2046 + $0xf0] sm:$0xff]
        %v2078 = vld [vmem:[%s2046 + $0xf8] sm:$0xff]
        %v2079 = vpack.c.bf16 %v1983, %v1981
        %v2080 = vpack.c.bf16 %v1984, %v1982
        %v2081 = vpack.c.bf16 %v1987, %v1985
        %v2082 = vpack.c.bf16 %v1988, %v1986
        %v2083 = vpack.c.bf16 %v1991, %v1989
        %v2084 = vpack.c.bf16 %v1992, %v1990
        %v2085 = vpack.c.bf16 %v1995, %v1993
        %v2086 = vpack.c.bf16 %v1996, %v1994
        %v2087 = vpack.c.bf16 %v1999, %v1997
        %v2088 = vpack.c.bf16 %v2000, %v1998
        %v2089 = vpack.c.bf16 %v2003, %v2001
        %v2090 = vpack.c.bf16 %v2004, %v2002
        %v2091 = vpack.c.bf16 %v2007, %v2005
        %v2092 = vpack.c.bf16 %v2008, %v2006
        %v2093 = vpack.c.bf16 %v2011, %v2009
        %v2094 = vpack.c.bf16 %v2012, %v2010
        %v2095 = vpack.c.bf16 %v2015, %v2013
        %v2096 = vpack.c.bf16 %v2016, %v2014
        %v2097 = vpack.c.bf16 %v2019, %v2017
        %v2098 = vpack.c.bf16 %v2020, %v2018
        %v2099 = vpack.c.bf16 %v2023, %v2021
        %v2100 = vpack.c.bf16 %v2024, %v2022
        %v2101 = vpack.c.bf16 %v2027, %v2025
        %v2102 = vpack.c.bf16 %v2028, %v2026
        %v2103 = vpack.c.bf16 %v2031, %v2029
        %v2104 = vpack.c.bf16 %v2032, %v2030
        %v2105 = vpack.c.bf16 %v2035, %v2033
        %v2106 = vpack.c.bf16 %v2036, %v2034
        %v2107 = vpack.c.bf16 %v2039, %v2037
        %v2108 = vpack.c.bf16 %v2040, %v2038
        %v2109 = vpack.c.bf16 %v2043, %v2041
        %v2110 = vpack.c.bf16 %v2044, %v2042
        %v2143 = vunpack.c.l.b16 %v2047
        %v2144 = vunpack.c.h.b16 %v2047
        %v2145 = vunpack.c.l.b16 %v2048
        %v2146 = vunpack.c.h.b16 %v2048
        %v2147 = vunpack.c.l.b16 %v2049
        %v2148 = vunpack.c.h.b16 %v2049
        %v2149 = vunpack.c.l.b16 %v2050
        %v2150 = vunpack.c.h.b16 %v2050
        %v2151 = vunpack.c.l.b16 %v2051
        %v2152 = vunpack.c.h.b16 %v2051
        %v2153 = vunpack.c.l.b16 %v2052
        %v2154 = vunpack.c.h.b16 %v2052
        %v2155 = vunpack.c.l.b16 %v2053
        %v2156 = vunpack.c.h.b16 %v2053
        %v2157 = vunpack.c.l.b16 %v2054
        %v2158 = vunpack.c.h.b16 %v2054
        %v2159 = vunpack.c.l.b16 %v2055
        %v2160 = vunpack.c.h.b16 %v2055
        %v2161 = vunpack.c.l.b16 %v2056
        %v2162 = vunpack.c.h.b16 %v2056
        %v2163 = vunpack.c.l.b16 %v2057
        %v2164 = vunpack.c.h.b16 %v2057
        %v2165 = vunpack.c.l.b16 %v2058
        %v2166 = vunpack.c.h.b16 %v2058
        %v2167 = vunpack.c.l.b16 %v2059
        %v2168 = vunpack.c.h.b16 %v2059
        %v2169 = vunpack.c.l.b16 %v2060
        %v2170 = vunpack.c.h.b16 %v2060
        %v2171 = vunpack.c.l.b16 %v2061
        %v2172 = vunpack.c.h.b16 %v2061
        %v2173 = vunpack.c.l.b16 %v2062
        %v2174 = vunpack.c.h.b16 %v2062
        %v2175 = vunpack.c.l.b16 %v2063
        %v2176 = vunpack.c.h.b16 %v2063
        %v2177 = vunpack.c.l.b16 %v2064
        %v2178 = vunpack.c.h.b16 %v2064
        %v2179 = vunpack.c.l.b16 %v2065
        %v2180 = vunpack.c.h.b16 %v2065
        %v2181 = vunpack.c.l.b16 %v2066
        %v2182 = vunpack.c.h.b16 %v2066
        %v2183 = vunpack.c.l.b16 %v2067
        %v2184 = vunpack.c.h.b16 %v2067
        %v2185 = vunpack.c.l.b16 %v2068
        %v2186 = vunpack.c.h.b16 %v2068
        %v2187 = vunpack.c.l.b16 %v2069
        %v2188 = vunpack.c.h.b16 %v2069
        %v2189 = vunpack.c.l.b16 %v2070
        %v2190 = vunpack.c.h.b16 %v2070
        %v2191 = vunpack.c.l.b16 %v2071
        %v2192 = vunpack.c.h.b16 %v2071
        %v2193 = vunpack.c.l.b16 %v2072
        %v2194 = vunpack.c.h.b16 %v2072
        %v2195 = vunpack.c.l.b16 %v2073
        %v2196 = vunpack.c.h.b16 %v2073
        %v2197 = vunpack.c.l.b16 %v2074
        %v2198 = vunpack.c.h.b16 %v2074
        %v2199 = vunpack.c.l.b16 %v2075
        %v2200 = vunpack.c.h.b16 %v2075
        %v2201 = vunpack.c.l.b16 %v2076
        %v2202 = vunpack.c.h.b16 %v2076
        %v2203 = vunpack.c.l.b16 %v2077
        %v2204 = vunpack.c.h.b16 %v2077
        %v2205 = vunpack.c.l.b16 %v2078
        %v2206 = vunpack.c.h.b16 %v2078
        %v2207 = vpack.c.b16 %v2145, %v2143
        %v2208 = vpack.c.b16 %v2146, %v2144
        %v2209 = vpack.c.b16 %v2149, %v2147
        %v2210 = vpack.c.b16 %v2150, %v2148
        %v2211 = vpack.c.b16 %v2153, %v2151
        %v2212 = vpack.c.b16 %v2154, %v2152
        %v2213 = vpack.c.b16 %v2157, %v2155
        %v2214 = vpack.c.b16 %v2158, %v2156
        %v2215 = vpack.c.b16 %v2161, %v2159
        %v2216 = vpack.c.b16 %v2162, %v2160
        %v2217 = vpack.c.b16 %v2165, %v2163
        %v2218 = vpack.c.b16 %v2166, %v2164
        %v2219 = vpack.c.b16 %v2169, %v2167
        %v2220 = vpack.c.b16 %v2170, %v2168
        %v2221 = vpack.c.b16 %v2173, %v2171
        %v2222 = vpack.c.b16 %v2174, %v2172
        %v2223 = vpack.c.b16 %v2177, %v2175
        %v2224 = vpack.c.b16 %v2178, %v2176
        %v2225 = vpack.c.b16 %v2181, %v2179
        %v2226 = vpack.c.b16 %v2182, %v2180
        %v2227 = vpack.c.b16 %v2185, %v2183
        %v2228 = vpack.c.b16 %v2186, %v2184
        %v2229 = vpack.c.b16 %v2189, %v2187
        %v2230 = vpack.c.b16 %v2190, %v2188
        %v2231 = vpack.c.b16 %v2193, %v2191
        %v2232 = vpack.c.b16 %v2194, %v2192
        %v2233 = vpack.c.b16 %v2197, %v2195
        %v2234 = vpack.c.b16 %v2198, %v2196
        %v2235 = vpack.c.b16 %v2201, %v2199
        %v2236 = vpack.c.b16 %v2202, %v2200
        %v2237 = vpack.c.b16 %v2205, %v2203
        %v2238 = vpack.c.b16 %v2206, %v2204
        %2271 = vmatprep.subr.bf16.mxu0 %v2080
        %2272 = vmatpush1.bf16.msra.mxu0 %v2079
        %2273 = vmatprep.subr.bf16.mxu0 %v2082
        %2274 = vmatpush1.bf16.msra.mxu0 %v2081
        %2275 = vmatprep.subr.bf16.mxu0 %v2084
        %2276 = vmatpush1.bf16.msra.mxu0 %v2083
        %2277 = vmatprep.subr.bf16.mxu0 %v2086
        %2278 = vmatpush1.bf16.msra.mxu0 %v2085
        %2279 = vmatprep.subr.bf16.mxu0 %v2088
        %2280 = vmatpush1.bf16.msra.mxu0 %v2087
        %2281 = vmatprep.subr.bf16.mxu0 %v2090
        %2282 = vmatpush1.bf16.msra.mxu0 %v2089
        %2283 = vmatprep.subr.bf16.mxu0 %v2092
        %2284 = vmatpush1.bf16.msra.mxu0 %v2091
        %2285 = vmatprep.subr.bf16.mxu0 %v2094
        %2286 = vmatpush1.bf16.msra.mxu0 %v2093
        %2287 = vmatprep.subr.bf16.mxu0 %v2096
        %2288 = vmatpush1.bf16.msra.mxu0 %v2095
        %2289 = vmatprep.subr.bf16.mxu0 %v2098
        %2290 = vmatpush1.bf16.msra.mxu0 %v2097
        %2291 = vmatprep.subr.bf16.mxu0 %v2100
        %2292 = vmatpush1.bf16.msra.mxu0 %v2099
        %2293 = vmatprep.subr.bf16.mxu0 %v2102
        %2294 = vmatpush1.bf16.msra.mxu0 %v2101
        %2295 = vmatprep.subr.bf16.mxu0 %v2104
        %2296 = vmatpush1.bf16.msra.mxu0 %v2103
        %2297 = vmatprep.subr.bf16.mxu0 %v2106
        %2298 = vmatpush1.bf16.msra.mxu0 %v2105
        %2299 = vmatprep.subr.bf16.mxu0 %v2108
        %2300 = vmatpush1.bf16.msra.mxu0 %v2107
        %2301 = vmatprep.subr.bf16.mxu0 %v2110
        %2302 = vmatpush1.bf16.msra.mxu0 %v2109
        %2303 = vmatprep.mubr.bf16.mxu0 %v2208
        %2304 = vmatmul.mubr.bf16.gmra.mrb[0].mxu0 %v2207
        %v2305 = vpop.f32.mrb[0].mxu0
        %v2306 = vadd.f32 0.0, %v2305
        %v2307 = vpop.f32.mrb[0].mxu0
        %v2308 = vadd.f32 0.0, %v2307
        %v2309 = vpop.f32.mrb[0].mxu0
        %v2310 = vadd.f32 0.0, %v2309
        %v2311 = vpop.f32.mrb[0].mxu0
        %v2312 = vadd.f32 0.0, %v2311
        %2313 = vmatprep.mubr.bf16.mxu0 %v2210
        %2314 = vmatmul.mubr.bf16.gmra.mrb[0].mxu0 %v2209
        %v2315 = vpop.f32.mrb[0].mxu0
        %v2316 = vadd.f32 0.0, %v2315
        %v2317 = vpop.f32.mrb[0].mxu0
        %v2318 = vadd.f32 0.0, %v2317
        %v2319 = vpop.f32.mrb[0].mxu0
        %v2320 = vadd.f32 0.0, %v2319
        %v2321 = vpop.f32.mrb[0].mxu0
        %v2322 = vadd.f32 0.0, %v2321
        %2323 = vmatprep.mubr.bf16.mxu0 %v2212
        %2324 = vmatmul.mubr.bf16.gmra.mrb[0].mxu0 %v2211
        %v2325 = vpop.f32.mrb[0].mxu0
        %v2326 = vadd.f32 0.0, %v2325
        %v2327 = vpop.f32.mrb[0].mxu0
        %v2328 = vadd.f32 0.0, %v2327
        %v2329 = vpop.f32.mrb[0].mxu0
        %v2330 = vadd.f32 0.0, %v2329
        %v2331 = vpop.f32.mrb[0].mxu0
        %v2332 = vadd.f32 0.0, %v2331
        %2333 = vmatprep.mubr.bf16.mxu0 %v2214
        %2334 = vmatmul.mubr.bf16.gmra.mrb[0].mxu0 %v2213
        %v2335 = vpop.f32.mrb[0].mxu0
        %v2336 = vadd.f32 0.0, %v2335
        %v2337 = vpop.f32.mrb[0].mxu0
        %v2338 = vadd.f32 0.0, %v2337
        %v2339 = vpop.f32.mrb[0].mxu0
        %v2340 = vadd.f32 0.0, %v2339
        %v2341 = vpop.f32.mrb[0].mxu0
        %v2342 = vadd.f32 0.0, %v2341
        %2343 = vmatprep.mubr.bf16.mxu0 %v2216
        %2344 = vmatmul.mubr.bf16.gmra.mrb[0].mxu0 %v2215
        %v2345 = vpop.f32.mrb[0].mxu0
        %v2346 = vadd.f32 0.0, %v2345
        %v2347 = vpop.f32.mrb[0].mxu0
        %v2348 = vadd.f32 0.0, %v2347
        %v2349 = vpop.f32.mrb[0].mxu0
        %v2350 = vadd.f32 0.0, %v2349
        %v2351 = vpop.f32.mrb[0].mxu0
        %v2352 = vadd.f32 0.0, %v2351
        %2353 = vmatprep.mubr.bf16.mxu0 %v2218
        %2354 = vmatmul.mubr.bf16.gmra.mrb[0].mxu0 %v2217
        %v2355 = vpop.f32.mrb[0].mxu0
        %v2356 = vadd.f32 0.0, %v2355
        %v2357 = vpop.f32.mrb[0].mxu0
        %v2358 = vadd.f32 0.0, %v2357
        %v2359 = vpop.f32.mrb[0].mxu0
        %v2360 = vadd.f32 0.0, %v2359
        %v2361 = vpop.f32.mrb[0].mxu0
        %v2362 = vadd.f32 0.0, %v2361
        %2363 = vmatprep.mubr.bf16.mxu0 %v2220
        %2364 = vmatmul.mubr.bf16.gmra.mrb[0].mxu0 %v2219
        %v2365 = vpop.f32.mrb[0].mxu0
        %v2366 = vadd.f32 0.0, %v2365
        %v2367 = vpop.f32.mrb[0].mxu0
        %v2368 = vadd.f32 0.0, %v2367
        %v2369 = vpop.f32.mrb[0].mxu0
        %v2370 = vadd.f32 0.0, %v2369
        %v2371 = vpop.f32.mrb[0].mxu0
        %v2372 = vadd.f32 0.0, %v2371
        %2373 = vmatprep.mubr.bf16.mxu0 %v2222
        %2374 = vmatmul.mubr.bf16.gmra.mrb[0].mxu0 %v2221
        %v2375 = vpop.f32.mrb[0].mxu0
        %v2376 = vadd.f32 0.0, %v2375
        %v2377 = vpop.f32.mrb[0].mxu0
        %v2378 = vadd.f32 0.0, %v2377
        %v2379 = vpop.f32.mrb[0].mxu0
        %v2380 = vadd.f32 0.0, %v2379
        %v2381 = vpop.f32.mrb[0].mxu0
        %v2382 = vadd.f32 0.0, %v2381
        %2383 = vmatprep.mubr.bf16.mxu0 %v2224
        %2384 = vmatmul.mubr.bf16.gmra.mrb[0].mxu0 %v2223
        %v2385 = vpop.f32.mrb[0].mxu0
        %v2386 = vadd.f32 0.0, %v2385
        %v2387 = vpop.f32.mrb[0].mxu0
        %v2388 = vadd.f32 0.0, %v2387
        %v2389 = vpop.f32.mrb[0].mxu0
        %v2390 = vadd.f32 0.0, %v2389
        %v2391 = vpop.f32.mrb[0].mxu0
        %v2392 = vadd.f32 0.0, %v2391
        %2393 = vmatprep.mubr.bf16.mxu0 %v2226
        %2394 = vmatmul.mubr.bf16.gmra.mrb[0].mxu0 %v2225
        %v2395 = vpop.f32.mrb[0].mxu0
        %v2396 = vadd.f32 0.0, %v2395
        %v2397 = vpop.f32.mrb[0].mxu0
        %v2398 = vadd.f32 0.0, %v2397
        %v2399 = vpop.f32.mrb[0].mxu0
        %v2400 = vadd.f32 0.0, %v2399
        %v2401 = vpop.f32.mrb[0].mxu0
        %v2402 = vadd.f32 0.0, %v2401
        %2403 = vmatprep.mubr.bf16.mxu0 %v2228
        %2404 = vmatmul.mubr.bf16.gmra.mrb[0].mxu0 %v2227
        %v2405 = vpop.f32.mrb[0].mxu0
        %v2406 = vadd.f32 0.0, %v2405
        %v2407 = vpop.f32.mrb[0].mxu0
        %v2408 = vadd.f32 0.0, %v2407
        %v2409 = vpop.f32.mrb[0].mxu0
        %v2410 = vadd.f32 0.0, %v2409
        %v2411 = vpop.f32.mrb[0].mxu0
        %v2412 = vadd.f32 0.0, %v2411
        %2413 = vmatprep.mubr.bf16.mxu0 %v2230
        %2414 = vmatmul.mubr.bf16.gmra.mrb[0].mxu0 %v2229
        %v2415 = vpop.f32.mrb[0].mxu0
        %v2416 = vadd.f32 0.0, %v2415
        %v2417 = vpop.f32.mrb[0].mxu0
        %v2418 = vadd.f32 0.0, %v2417
        %v2419 = vpop.f32.mrb[0].mxu0
        %v2420 = vadd.f32 0.0, %v2419
        %v2421 = vpop.f32.mrb[0].mxu0
        %v2422 = vadd.f32 0.0, %v2421
        %2423 = vmatprep.mubr.bf16.mxu0 %v2232
        %2424 = vmatmul.mubr.bf16.gmra.mrb[0].mxu0 %v2231
        %v2425 = vpop.f32.mrb[0].mxu0
        %v2426 = vadd.f32 0.0, %v2425
        %v2427 = vpop.f32.mrb[0].mxu0
        %v2428 = vadd.f32 0.0, %v2427
        %v2429 = vpop.f32.mrb[0].mxu0
        %v2430 = vadd.f32 0.0, %v2429
        %v2431 = vpop.f32.mrb[0].mxu0
        %v2432 = vadd.f32 0.0, %v2431
        %2433 = vmatprep.mubr.bf16.mxu0 %v2234
        %2434 = vmatmul.mubr.bf16.gmra.mrb[0].mxu0 %v2233
        %v2435 = vpop.f32.mrb[0].mxu0
        %v2436 = vadd.f32 0.0, %v2435
        %v2437 = vpop.f32.mrb[0].mxu0
        %v2438 = vadd.f32 0.0, %v2437
        %v2439 = vpop.f32.mrb[0].mxu0
        %v2440 = vadd.f32 0.0, %v2439
        %v2441 = vpop.f32.mrb[0].mxu0
        %v2442 = vadd.f32 0.0, %v2441
        %2443 = vmatprep.mubr.bf16.mxu0 %v2236
        %2444 = vmatmul.mubr.bf16.gmra.mrb[0].mxu0 %v2235
        %v2445 = vpop.f32.mrb[0].mxu0
        %v2446 = vadd.f32 0.0, %v2445
        %v2447 = vpop.f32.mrb[0].mxu0
        %v2448 = vadd.f32 0.0, %v2447
        %v2449 = vpop.f32.mrb[0].mxu0
        %v2450 = vadd.f32 0.0, %v2449
        %v2451 = vpop.f32.mrb[0].mxu0
        %v2452 = vadd.f32 0.0, %v2451
        %2453 = vmatprep.mubr.bf16.mxu0 %v2238
        %2454 = vmatmul.mubr.bf16.gmra.mrb[0].mxu0 %v2237
        %v2455 = vpop.f32.mrb[0].mxu0
        %v2456 = vadd.f32 0.0, %v2455
        %v2457 = vpop.f32.mrb[0].mxu0
        %v2458 = vadd.f32 0.0, %v2457
        %v2459 = vpop.f32.mrb[0].mxu0
        %v2460 = vadd.f32 0.0, %v2459
        %v2461 = vpop.f32.mrb[0].mxu0
        %v2462 = vadd.f32 0.0, %v2461
        %2463 = vdwg.mxu0
        %v2464 = vadd.f32 %v2306, %v2308
        %2465 = vadd.xlane.f32.xlu0 %v2464
        %v2466 = vpop.xlane.xlu0 %2465
        %v2467 = vadd.f32 %v2310, %v2312
        %2468 = vadd.xlane.f32.xlu0 %v2467
        %v2469 = vpop.xlane.xlu0 %2468
        %v2470 = vadd.f32 %v2316, %v2318
        %2471 = vadd.xlane.f32.xlu0 %v2470
        %v2472 = vpop.xlane.xlu0 %2471
        %v2473 = vadd.f32 %v2320, %v2322
        %2474 = vadd.xlane.f32.xlu0 %v2473
        %v2475 = vpop.xlane.xlu0 %2474
        %v2476 = vadd.f32 %v2326, %v2328
        %2477 = vadd.xlane.f32.xlu0 %v2476
        %v2478 = vpop.xlane.xlu0 %2477
        %v2479 = vadd.f32 %v2330, %v2332
        %2480 = vadd.xlane.f32.xlu0 %v2479
        %v2481 = vpop.xlane.xlu0 %2480
        %v2482 = vadd.f32 %v2336, %v2338
        %2483 = vadd.xlane.f32.xlu0 %v2482
        %v2484 = vpop.xlane.xlu0 %2483
        %v2485 = vadd.f32 %v2340, %v2342
        %2486 = vadd.xlane.f32.xlu0 %v2485
        %v2487 = vpop.xlane.xlu0 %2486
        %v2488 = vadd.f32 %v2346, %v2348
        %2489 = vadd.xlane.f32.xlu0 %v2488
        %v2490 = vpop.xlane.xlu0 %2489
        %v2491 = vadd.f32 %v2350, %v2352
        %2492 = vadd.xlane.f32.xlu0 %v2491
        %v2493 = vpop.xlane.xlu0 %2492
        %v2494 = vadd.f32 %v2356, %v2358
        %2495 = vadd.xlane.f32.xlu0 %v2494
        %v2496 = vpop.xlane.xlu0 %2495
        %v2497 = vadd.f32 %v2360, %v2362
        %2498 = vadd.xlane.f32.xlu0 %v2497
        %v2499 = vpop.xlane.xlu0 %2498
        %v2500 = vadd.f32 %v2366, %v2368
        %2501 = vadd.xlane.f32.xlu0 %v2500
        %v2502 = vpop.xlane.xlu0 %2501
        %v2503 = vadd.f32 %v2370, %v2372
        %2504 = vadd.xlane.f32.xlu0 %v2503
        %v2505 = vpop.xlane.xlu0 %2504
        %v2506 = vadd.f32 %v2376, %v2378
        %2507 = vadd.xlane.f32.xlu0 %v2506
        %v2508 = vpop.xlane.xlu0 %2507
        %v2509 = vadd.f32 %v2380, %v2382
        %2510 = vadd.xlane.f32.xlu0 %v2509
        %v2511 = vpop.xlane.xlu0 %2510
        %v2512 = vadd.f32 %v2386, %v2388
        %2513 = vadd.xlane.f32.xlu0 %v2512
        %v2514 = vpop.xlane.xlu0 %2513
        %v2515 = vadd.f32 %v2390, %v2392
        %2516 = vadd.xlane.f32.xlu0 %v2515
        %v2517 = vpop.xlane.xlu0 %2516
        %v2518 = vadd.f32 %v2396, %v2398
        %2519 = vadd.xlane.f32.xlu0 %v2518
        %v2520 = vpop.xlane.xlu0 %2519
        %v2521 = vadd.f32 %v2400, %v2402
        %2522 = vadd.xlane.f32.xlu0 %v2521
        %v2523 = vpop.xlane.xlu0 %2522
        %v2524 = vadd.f32 %v2406, %v2408
        %2525 = vadd.xlane.f32.xlu0 %v2524
        %v2526 = vpop.xlane.xlu0 %2525
        %v2527 = vadd.f32 %v2410, %v2412
        %2528 = vadd.xlane.f32.xlu0 %v2527
        %v2529 = vpop.xlane.xlu0 %2528
        %v2530 = vadd.f32 %v2416, %v2418
        %2531 = vadd.xlane.f32.xlu0 %v2530
        %v2532 = vpop.xlane.xlu0 %2531
        %v2533 = vadd.f32 %v2420, %v2422
        %2534 = vadd.xlane.f32.xlu0 %v2533
        %v2535 = vpop.xlane.xlu0 %2534
        %v2536 = vadd.f32 %v2426, %v2428
        %2537 = vadd.xlane.f32.xlu0 %v2536
        %v2538 = vpop.xlane.xlu0 %2537
        %v2539 = vadd.f32 %v2430, %v2432
        %2540 = vadd.xlane.f32.xlu0 %v2539
        %v2541 = vpop.xlane.xlu0 %2540
        %v2542 = vadd.f32 %v2436, %v2438
        %2543 = vadd.xlane.f32.xlu0 %v2542
        %v2544 = vpop.xlane.xlu0 %2543
        %v2545 = vadd.f32 %v2440, %v2442
        %2546 = vadd.xlane.f32.xlu0 %v2545
        %v2547 = vpop.xlane.xlu0 %2546
        %v2548 = vadd.f32 %v2446, %v2448
        %2549 = vadd.xlane.f32.xlu0 %v2548
        %v2550 = vpop.xlane.xlu0 %2549
        %v2551 = vadd.f32 %v2450, %v2452
        %2552 = vadd.xlane.f32.xlu0 %v2551
        %v2553 = vpop.xlane.xlu0 %2552
        %v2554 = vadd.f32 %v2456, %v2458
        %2555 = vadd.xlane.f32.xlu0 %v2554
        %v2556 = vpop.xlane.xlu0 %2555
        %v2557 = vadd.f32 %v2460, %v2462
        %2558 = vadd.xlane.f32.xlu0 %v2557
        %v2559 = vpop.xlane.xlu0 %2558
        %v2560 = vmul.f32 %v2466, 0.00390625
        %v2561 = vmul.f32 %v2469, 0.00390625
        %v2562 = vmul.f32 %v2472, 0.00390625
        %v2563 = vmul.f32 %v2475, 0.00390625
        %v2564 = vmul.f32 %v2478, 0.00390625
        %v2565 = vmul.f32 %v2481, 0.00390625
        %v2566 = vmul.f32 %v2484, 0.00390625
        %v2567 = vmul.f32 %v2487, 0.00390625
        %v2568 = vmul.f32 %v2490, 0.00390625
        %v2569 = vmul.f32 %v2493, 0.00390625
        %v2570 = vmul.f32 %v2496, 0.00390625
        %v2571 = vmul.f32 %v2499, 0.00390625
        %v2572 = vmul.f32 %v2502, 0.00390625
        %v2573 = vmul.f32 %v2505, 0.00390625
        %v2574 = vmul.f32 %v2508, 0.00390625
        %v2575 = vmul.f32 %v2511, 0.00390625
        %v2576 = vmul.f32 %v2514, 0.00390625
        %v2577 = vmul.f32 %v2517, 0.00390625
        %v2578 = vmul.f32 %v2520, 0.00390625
        %v2579 = vmul.f32 %v2523, 0.00390625
        %v2580 = vmul.f32 %v2526, 0.00390625
        %v2581 = vmul.f32 %v2529, 0.00390625
        %v2582 = vmul.f32 %v2532, 0.00390625
        %v2583 = vmul.f32 %v2535, 0.00390625
        %v2584 = vmul.f32 %v2538, 0.00390625
        %v2585 = vmul.f32 %v2541, 0.00390625
        %v2586 = vmul.f32 %v2544, 0.00390625
        %v2587 = vmul.f32 %v2547, 0.00390625
        %v2588 = vmul.f32 %v2550, 0.00390625
        %v2589 = vmul.f32 %v2553, 0.00390625
        %v2590 = vmul.f32 %v2556, 0.00390625
        %v2591 = vmul.f32 %v2559, 0.00390625
        %v2592 = vsub.f32 %v2306, %v2560
        %v2593 = vsub.f32 %v2308, %v2560
        %v2594 = vsub.f32 %v2310, %v2561
        %v2595 = vsub.f32 %v2312, %v2561
        %v2596 = vsub.f32 %v2316, %v2562
        %v2597 = vsub.f32 %v2318, %v2562
        %v2598 = vsub.f32 %v2320, %v2563
        %v2599 = vsub.f32 %v2322, %v2563
        %v2600 = vsub.f32 %v2326, %v2564
        %v2601 = vsub.f32 %v2328, %v2564
        %v2602 = vsub.f32 %v2330, %v2565
        %v2603 = vsub.f32 %v2332, %v2565
        %v2604 = vsub.f32 %v2336, %v2566
        %v2605 = vsub.f32 %v2338, %v2566
        %v2606 = vsub.f32 %v2340, %v2567
        %v2607 = vsub.f32 %v2342, %v2567
        %v2608 = vsub.f32 %v2346, %v2568
        %v2609 = vsub.f32 %v2348, %v2568
        %v2610 = vsub.f32 %v2350, %v2569
        %v2611 = vsub.f32 %v2352, %v2569
        %v2612 = vsub.f32 %v2356, %v2570
        %v2613 = vsub.f32 %v2358, %v2570
        %v2614 = vsub.f32 %v2360, %v2571
        %v2615 = vsub.f32 %v2362, %v2571
        %v2616 = vsub.f32 %v2366, %v2572
        %v2617 = vsub.f32 %v2368, %v2572
        %v2618 = vsub.f32 %v2370, %v2573
        %v2619 = vsub.f32 %v2372, %v2573
        %v2620 = vsub.f32 %v2376, %v2574
        %v2621 = vsub.f32 %v2378, %v2574
        %v2622 = vsub.f32 %v2380, %v2575
        %v2623 = vsub.f32 %v2382, %v2575
        %v2624 = vsub.f32 %v2386, %v2576
        %v2625 = vsub.f32 %v2388, %v2576
        %v2626 = vsub.f32 %v2390, %v2577
        %v2627 = vsub.f32 %v2392, %v2577
        %v2628 = vsub.f32 %v2396, %v2578
        %v2629 = vsub.f32 %v2398, %v2578
        %v2630 = vsub.f32 %v2400, %v2579
        %v2631 = vsub.f32 %v2402, %v2579
        %v2632 = vsub.f32 %v2406, %v2580
        %v2633 = vsub.f32 %v2408, %v2580
        %v2634 = vsub.f32 %v2410, %v2581
        %v2635 = vsub.f32 %v2412, %v2581
        %v2636 = vsub.f32 %v2416, %v2582
        %v2637 = vsub.f32 %v2418, %v2582
        %v2638 = vsub.f32 %v2420, %v2583
        %v2639 = vsub.f32 %v2422, %v2583
        %v2640 = vsub.f32 %v2426, %v2584
        %v2641 = vsub.f32 %v2428, %v2584
        %v2642 = vsub.f32 %v2430, %v2585
        %v2643 = vsub.f32 %v2432, %v2585
        %v2644 = vsub.f32 %v2436, %v2586
        %v2645 = vsub.f32 %v2438, %v2586
        %v2646 = vsub.f32 %v2440, %v2587
        %v2647 = vsub.f32 %v2442, %v2587
        %v2648 = vsub.f32 %v2446, %v2588
        %v2649 = vsub.f32 %v2448, %v2588
        %v2650 = vsub.f32 %v2450, %v2589
        %v2651 = vsub.f32 %v2452, %v2589
        %v2652 = vsub.f32 %v2456, %v2590
        %v2653 = vsub.f32 %v2458, %v2590
        %v2654 = vsub.f32 %v2460, %v2591
        %v2655 = vsub.f32 %v2462, %v2591
        %v2656 = vmul.f32 %v2592, %v2592
        %v2657 = vmul.f32 %v2593, %v2593
        %v2658 = vmul.f32 %v2594, %v2594
        %v2659 = vmul.f32 %v2595, %v2595
        %v2660 = vmul.f32 %v2596, %v2596
        %v2661 = vmul.f32 %v2597, %v2597
        %v2662 = vmul.f32 %v2598, %v2598
        %v2663 = vmul.f32 %v2599, %v2599
        %v2664 = vmul.f32 %v2600, %v2600
        %v2665 = vmul.f32 %v2601, %v2601
        %v2666 = vmul.f32 %v2602, %v2602
        %v2667 = vmul.f32 %v2603, %v2603
        %v2668 = vmul.f32 %v2604, %v2604
        %v2669 = vmul.f32 %v2605, %v2605
        %v2670 = vmul.f32 %v2606, %v2606
        %v2671 = vmul.f32 %v2607, %v2607
        %v2672 = vmul.f32 %v2608, %v2608
        %v2673 = vmul.f32 %v2609, %v2609
        %v2674 = vmul.f32 %v2610, %v2610
        %v2675 = vmul.f32 %v2611, %v2611
        %v2676 = vmul.f32 %v2612, %v2612
        %v2677 = vmul.f32 %v2613, %v2613
        %v2678 = vmul.f32 %v2614, %v2614
        %v2679 = vmul.f32 %v2615, %v2615
        %v2680 = vmul.f32 %v2616, %v2616
        %v2681 = vmul.f32 %v2617, %v2617
        %v2682 = vmul.f32 %v2618, %v2618
        %v2683 = vmul.f32 %v2619, %v2619
        %v2684 = vmul.f32 %v2620, %v2620
        %v2685 = vmul.f32 %v2621, %v2621
        %v2686 = vmul.f32 %v2622, %v2622
        %v2687 = vmul.f32 %v2623, %v2623
        %v2688 = vmul.f32 %v2624, %v2624
        %v2689 = vmul.f32 %v2625, %v2625
        %v2690 = vmul.f32 %v2626, %v2626
        %v2691 = vmul.f32 %v2627, %v2627
        %v2692 = vmul.f32 %v2628, %v2628
        %v2693 = vmul.f32 %v2629, %v2629
        %v2694 = vmul.f32 %v2630, %v2630
        %v2695 = vmul.f32 %v2631, %v2631
        %v2696 = vmul.f32 %v2632, %v2632
        %v2697 = vmul.f32 %v2633, %v2633
        %v2698 = vmul.f32 %v2634, %v2634
        %v2699 = vmul.f32 %v2635, %v2635
        %v2700 = vmul.f32 %v2636, %v2636
        %v2701 = vmul.f32 %v2637, %v2637
        %v2702 = vmul.f32 %v2638, %v2638
        %v2703 = vmul.f32 %v2639, %v2639
        %v2704 = vmul.f32 %v2640, %v2640
        %v2705 = vmul.f32 %v2641, %v2641
        %v2706 = vmul.f32 %v2642, %v2642
        %v2707 = vmul.f32 %v2643, %v2643
        %v2708 = vmul.f32 %v2644, %v2644
        %v2709 = vmul.f32 %v2645, %v2645
        %v2710 = vmul.f32 %v2646, %v2646
        %v2711 = vmul.f32 %v2647, %v2647
        %v2712 = vmul.f32 %v2648, %v2648
        %v2713 = vmul.f32 %v2649, %v2649
        %v2714 = vmul.f32 %v2650, %v2650
        %v2715 = vmul.f32 %v2651, %v2651
        %v2716 = vmul.f32 %v2652, %v2652
        %v2717 = vmul.f32 %v2653, %v2653
        %v2718 = vmul.f32 %v2654, %v2654
        %v2719 = vmul.f32 %v2655, %v2655
        %v2720 = vadd.f32 %v2656, %v2657
        %2721 = vadd.xlane.f32.xlu0 %v2720
        %v2722 = vpop.xlane.xlu0 %2721
        %v2723 = vadd.f32 %v2658, %v2659
        %2724 = vadd.xlane.f32.xlu0 %v2723
        %v2725 = vpop.xlane.xlu0 %2724
        %v2726 = vadd.f32 %v2660, %v2661
        %2727 = vadd.xlane.f32.xlu0 %v2726
        %v2728 = vpop.xlane.xlu0 %2727
        %v2729 = vadd.f32 %v2662, %v2663
        %2730 = vadd.xlane.f32.xlu0 %v2729
        %v2731 = vpop.xlane.xlu0 %2730
        %v2732 = vadd.f32 %v2664, %v2665
        %2733 = vadd.xlane.f32.xlu0 %v2732
        %v2734 = vpop.xlane.xlu0 %2733
        %v2735 = vadd.f32 %v2666, %v2667
        %2736 = vadd.xlane.f32.xlu0 %v2735
        %v2737 = vpop.xlane.xlu0 %2736
        %v2738 = vadd.f32 %v2668, %v2669
        %2739 = vadd.xlane.f32.xlu0 %v2738
        %v2740 = vpop.xlane.xlu0 %2739
        %v2741 = vadd.f32 %v2670, %v2671
        %2742 = vadd.xlane.f32.xlu0 %v2741
        %v2743 = vpop.xlane.xlu0 %2742
        %v2744 = vadd.f32 %v2672, %v2673
        %2745 = vadd.xlane.f32.xlu0 %v2744
        %v2746 = vpop.xlane.xlu0 %2745
        %v2747 = vadd.f32 %v2674, %v2675
        %2748 = vadd.xlane.f32.xlu0 %v2747
        %v2749 = vpop.xlane.xlu0 %2748
        %v2750 = vadd.f32 %v2676, %v2677
        %2751 = vadd.xlane.f32.xlu0 %v2750
        %v2752 = vpop.xlane.xlu0 %2751
        %v2753 = vadd.f32 %v2678, %v2679
        %2754 = vadd.xlane.f32.xlu0 %v2753
        %v2755 = vpop.xlane.xlu0 %2754
        %v2756 = vadd.f32 %v2680, %v2681
        %2757 = vadd.xlane.f32.xlu0 %v2756
        %v2758 = vpop.xlane.xlu0 %2757
        %v2759 = vadd.f32 %v2682, %v2683
        %2760 = vadd.xlane.f32.xlu0 %v2759
        %v2761 = vpop.xlane.xlu0 %2760
        %v2762 = vadd.f32 %v2684, %v2685
        %2763 = vadd.xlane.f32.xlu0 %v2762
        %v2764 = vpop.xlane.xlu0 %2763
        %v2765 = vadd.f32 %v2686, %v2687
        %2766 = vadd.xlane.f32.xlu0 %v2765
        %v2767 = vpop.xlane.xlu0 %2766
        %v2768 = vadd.f32 %v2688, %v2689
        %2769 = vadd.xlane.f32.xlu0 %v2768
        %v2770 = vpop.xlane.xlu0 %2769
        %v2771 = vadd.f32 %v2690, %v2691
        %2772 = vadd.xlane.f32.xlu0 %v2771
        %v2773 = vpop.xlane.xlu0 %2772
        %v2774 = vadd.f32 %v2692, %v2693
        %2775 = vadd.xlane.f32.xlu0 %v2774
        %v2776 = vpop.xlane.xlu0 %2775
        %v2777 = vadd.f32 %v2694, %v2695
        %2778 = vadd.xlane.f32.xlu0 %v2777
        %v2779 = vpop.xlane.xlu0 %2778
        %v2780 = vadd.f32 %v2696, %v2697
        %2781 = vadd.xlane.f32.xlu0 %v2780
        %v2782 = vpop.xlane.xlu0 %2781
        %v2783 = vadd.f32 %v2698, %v2699
        %2784 = vadd.xlane.f32.xlu0 %v2783
        %v2785 = vpop.xlane.xlu0 %2784
        %v2786 = vadd.f32 %v2700, %v2701
        %2787 = vadd.xlane.f32.xlu0 %v2786
        %v2788 = vpop.xlane.xlu0 %2787
        %v2789 = vadd.f32 %v2702, %v2703
        %2790 = vadd.xlane.f32.xlu0 %v2789
        %v2791 = vpop.xlane.xlu0 %2790
        %v2792 = vadd.f32 %v2704, %v2705
        %2793 = vadd.xlane.f32.xlu0 %v2792
        %v2794 = vpop.xlane.xlu0 %2793
        %v2795 = vadd.f32 %v2706, %v2707
        %2796 = vadd.xlane.f32.xlu0 %v2795
        %v2797 = vpop.xlane.xlu0 %2796
        %v2798 = vadd.f32 %v2708, %v2709
        %2799 = vadd.xlane.f32.xlu0 %v2798
        %v2800 = vpop.xlane.xlu0 %2799
        %v2801 = vadd.f32 %v2710, %v2711
        %2802 = vadd.xlane.f32.xlu0 %v2801
        %v2803 = vpop.xlane.xlu0 %2802
        %v2804 = vadd.f32 %v2712, %v2713
        %2805 = vadd.xlane.f32.xlu0 %v2804
        %v2806 = vpop.xlane.xlu0 %2805
        %v2807 = vadd.f32 %v2714, %v2715
        %2808 = vadd.xlane.f32.xlu0 %v2807
        %v2809 = vpop.xlane.xlu0 %2808
        %v2810 = vadd.f32 %v2716, %v2717
        %2811 = vadd.xlane.f32.xlu0 %v2810
        %v2812 = vpop.xlane.xlu0 %2811
        %v2813 = vadd.f32 %v2718, %v2719
        %2814 = vadd.xlane.f32.xlu0 %v2813
        %v2815 = vpop.xlane.xlu0 %2814
        %v2816 = vmul.f32 %v2722, 0.00390625
        %v2817 = vmul.f32 %v2725, 0.00390625
        %v2818 = vmul.f32 %v2728, 0.00390625
        %v2819 = vmul.f32 %v2731, 0.00390625
        %v2820 = vmul.f32 %v2734, 0.00390625
        %v2821 = vmul.f32 %v2737, 0.00390625
        %v2822 = vmul.f32 %v2740, 0.00390625
        %v2823 = vmul.f32 %v2743, 0.00390625
        %v2824 = vmul.f32 %v2746, 0.00390625
        %v2825 = vmul.f32 %v2749, 0.00390625
        %v2826 = vmul.f32 %v2752, 0.00390625
        %v2827 = vmul.f32 %v2755, 0.00390625
        %v2828 = vmul.f32 %v2758, 0.00390625
        %v2829 = vmul.f32 %v2761, 0.00390625
        %v2830 = vmul.f32 %v2764, 0.00390625
        %v2831 = vmul.f32 %v2767, 0.00390625
        %v2832 = vmul.f32 %v2770, 0.00390625
        %v2833 = vmul.f32 %v2773, 0.00390625
        %v2834 = vmul.f32 %v2776, 0.00390625
        %v2835 = vmul.f32 %v2779, 0.00390625
        %v2836 = vmul.f32 %v2782, 0.00390625
        %v2837 = vmul.f32 %v2785, 0.00390625
        %v2838 = vmul.f32 %v2788, 0.00390625
        %v2839 = vmul.f32 %v2791, 0.00390625
        %v2840 = vmul.f32 %v2794, 0.00390625
        %v2841 = vmul.f32 %v2797, 0.00390625
        %v2842 = vmul.f32 %v2800, 0.00390625
        %v2843 = vmul.f32 %v2803, 0.00390625
        %v2844 = vmul.f32 %v2806, 0.00390625
        %v2845 = vmul.f32 %v2809, 0.00390625
        %v2846 = vmul.f32 %v2812, 0.00390625
        %v2847 = vmul.f32 %v2815, 0.00390625
        %v2848 = vadd.f32 %v2816, 1e-05
        %v2849 = vadd.f32 %v2817, 1e-05
        %v2850 = vadd.f32 %v2818, 1e-05
        %v2851 = vadd.f32 %v2819, 1e-05
        %v2852 = vadd.f32 %v2820, 1e-05
        %v2853 = vadd.f32 %v2821, 1e-05
        %v2854 = vadd.f32 %v2822, 1e-05
        %v2855 = vadd.f32 %v2823, 1e-05
        %v2856 = vadd.f32 %v2824, 1e-05
        %v2857 = vadd.f32 %v2825, 1e-05
        %v2858 = vadd.f32 %v2826, 1e-05
        %v2859 = vadd.f32 %v2827, 1e-05
        %v2860 = vadd.f32 %v2828, 1e-05
        %v2861 = vadd.f32 %v2829, 1e-05
        %v2862 = vadd.f32 %v2830, 1e-05
        %v2863 = vadd.f32 %v2831, 1e-05
        %v2864 = vadd.f32 %v2832, 1e-05
        %v2865 = vadd.f32 %v2833, 1e-05
        %v2866 = vadd.f32 %v2834, 1e-05
        %v2867 = vadd.f32 %v2835, 1e-05
        %v2868 = vadd.f32 %v2836, 1e-05
        %v2869 = vadd.f32 %v2837, 1e-05
        %v2870 = vadd.f32 %v2838, 1e-05
        %v2871 = vadd.f32 %v2839, 1e-05
        %v2872 = vadd.f32 %v2840, 1e-05
        %v2873 = vadd.f32 %v2841, 1e-05
        %v2874 = vadd.f32 %v2842, 1e-05
        %v2875 = vadd.f32 %v2843, 1e-05
        %v2876 = vadd.f32 %v2844, 1e-05
        %v2877 = vadd.f32 %v2845, 1e-05
        %v2878 = vadd.f32 %v2846, 1e-05
        %v2879 = vadd.f32 %v2847, 1e-05
        %v2880 = vrsqrt.pop %v2848
        %v2881 = vrsqrt.pop %v2849
        %v2882 = vrsqrt.pop %v2850
        %v2883 = vrsqrt.pop %v2851
        %v2884 = vrsqrt.pop %v2852
        %v2885 = vrsqrt.pop %v2853
        %v2886 = vrsqrt.pop %v2854
        %v2887 = vrsqrt.pop %v2855
        %v2888 = vrsqrt.pop %v2856
        %v2889 = vrsqrt.pop %v2857
        %v2890 = vrsqrt.pop %v2858
        %v2891 = vrsqrt.pop %v2859
        %v2892 = vrsqrt.pop %v2860
        %v2893 = vrsqrt.pop %v2861
        %v2894 = vrsqrt.pop %v2862
        %v2895 = vrsqrt.pop %v2863
        %v2896 = vrsqrt.pop %v2864
        %v2897 = vrsqrt.pop %v2865
        %v2898 = vrsqrt.pop %v2866
        %v2899 = vrsqrt.pop %v2867
        %v2900 = vrsqrt.pop %v2868
        %v2901 = vrsqrt.pop %v2869
        %v2902 = vrsqrt.pop %v2870
        %v2903 = vrsqrt.pop %v2871
        %v2904 = vrsqrt.pop %v2872
        %v2905 = vrsqrt.pop %v2873
        %v2906 = vrsqrt.pop %v2874
        %v2907 = vrsqrt.pop %v2875
        %v2908 = vrsqrt.pop %v2876
        %v2909 = vrsqrt.pop %v2877
        %v2910 = vrsqrt.pop %v2878
        %v2911 = vrsqrt.pop %v2879
        %v2912 = vmul.f32 %v2592, %v2880
        %v2913 = vmul.f32 %v2593, %v2880
        %v2914 = vmul.f32 %v2594, %v2881
        %v2915 = vmul.f32 %v2595, %v2881
        %v2916 = vmul.f32 %v2596, %v2882
        %v2917 = vmul.f32 %v2597, %v2882
        %v2918 = vmul.f32 %v2598, %v2883
        %v2919 = vmul.f32 %v2599, %v2883
        %v2920 = vmul.f32 %v2600, %v2884
        %v2921 = vmul.f32 %v2601, %v2884
        %v2922 = vmul.f32 %v2602, %v2885
        %v2923 = vmul.f32 %v2603, %v2885
        %v2924 = vmul.f32 %v2604, %v2886
        %v2925 = vmul.f32 %v2605, %v2886
        %v2926 = vmul.f32 %v2606, %v2887
        %v2927 = vmul.f32 %v2607, %v2887
        %v2928 = vmul.f32 %v2608, %v2888
        %v2929 = vmul.f32 %v2609, %v2888
        %v2930 = vmul.f32 %v2610, %v2889
        %v2931 = vmul.f32 %v2611, %v2889
        %v2932 = vmul.f32 %v2612, %v2890
        %v2933 = vmul.f32 %v2613, %v2890
        %v2934 = vmul.f32 %v2614, %v2891
        %v2935 = vmul.f32 %v2615, %v2891
        %v2936 = vmul.f32 %v2616, %v2892
        %v2937 = vmul.f32 %v2617, %v2892
        %v2938 = vmul.f32 %v2618, %v2893
        %v2939 = vmul.f32 %v2619, %v2893
        %v2940 = vmul.f32 %v2620, %v2894
        %v2941 = vmul.f32 %v2621, %v2894
        %v2942 = vmul.f32 %v2622, %v2895
        %v2943 = vmul.f32 %v2623, %v2895
        %v2944 = vmul.f32 %v2624, %v2896
        %v2945 = vmul.f32 %v2625, %v2896
        %v2946 = vmul.f32 %v2626, %v2897
        %v2947 = vmul.f32 %v2627, %v2897
        %v2948 = vmul.f32 %v2628, %v2898
        %v2949 = vmul.f32 %v2629, %v2898
        %v2950 = vmul.f32 %v2630, %v2899
        %v2951 = vmul.f32 %v2631, %v2899
        %v2952 = vmul.f32 %v2632, %v2900
        %v2953 = vmul.f32 %v2633, %v2900
        %v2954 = vmul.f32 %v2634, %v2901
        %v2955 = vmul.f32 %v2635, %v2901
        %v2956 = vmul.f32 %v2636, %v2902
        %v2957 = vmul.f32 %v2637, %v2902
        %v2958 = vmul.f32 %v2638, %v2903
        %v2959 = vmul.f32 %v2639, %v2903
        %v2960 = vmul.f32 %v2640, %v2904
        %v2961 = vmul.f32 %v2641, %v2904
        %v2962 = vmul.f32 %v2642, %v2905
        %v2963 = vmul.f32 %v2643, %v2905
        %v2964 = vmul.f32 %v2644, %v2906
        %v2965 = vmul.f32 %v2645, %v2906
        %v2966 = vmul.f32 %v2646, %v2907
        %v2967 = vmul.f32 %v2647, %v2907
        %v2968 = vmul.f32 %v2648, %v2908
        %v2969 = vmul.f32 %v2649, %v2908
        %v2970 = vmul.f32 %v2650, %v2909
        %v2971 = vmul.f32 %v2651, %v2909
        %v2972 = vmul.f32 %v2652, %v2910
        %v2973 = vmul.f32 %v2653, %v2910
        %v2974 = vmul.f32 %v2654, %v2911
        %v2975 = vmul.f32 %v2655, %v2911
        %v2976 = vpack.c.bf16 %v2914, %v2912
        %v2977 = vpack.c.bf16 %v2915, %v2913
        %v2978 = vpack.c.bf16 %v2918, %v2916
        %v2979 = vpack.c.bf16 %v2919, %v2917
        %v2980 = vpack.c.bf16 %v2922, %v2920
        %v2981 = vpack.c.bf16 %v2923, %v2921
        %v2982 = vpack.c.bf16 %v2926, %v2924
        %v2983 = vpack.c.bf16 %v2927, %v2925
        %v2984 = vpack.c.bf16 %v2930, %v2928
        %v2985 = vpack.c.bf16 %v2931, %v2929
        %v2986 = vpack.c.bf16 %v2934, %v2932
        %v2987 = vpack.c.bf16 %v2935, %v2933
        %v2988 = vpack.c.bf16 %v2938, %v2936
        %v2989 = vpack.c.bf16 %v2939, %v2937
        %v2990 = vpack.c.bf16 %v2942, %v2940
        %v2991 = vpack.c.bf16 %v2943, %v2941
        %v2992 = vpack.c.bf16 %v2946, %v2944
        %v2993 = vpack.c.bf16 %v2947, %v2945
        %v2994 = vpack.c.bf16 %v2950, %v2948
        %v2995 = vpack.c.bf16 %v2951, %v2949
        %v2996 = vpack.c.bf16 %v2954, %v2952
        %v2997 = vpack.c.bf16 %v2955, %v2953
        %v2998 = vpack.c.bf16 %v2958, %v2956
        %v2999 = vpack.c.bf16 %v2959, %v2957
        %v3000 = vpack.c.bf16 %v2962, %v2960
        %v3001 = vpack.c.bf16 %v2963, %v2961
        %v3002 = vpack.c.bf16 %v2966, %v2964
        %v3003 = vpack.c.bf16 %v2967, %v2965
        %v3004 = vpack.c.bf16 %v2970, %v2968
        %v3005 = vpack.c.bf16 %v2971, %v2969
        %v3006 = vpack.c.bf16 %v2974, %v2972
        %v3007 = vpack.c.bf16 %v2975, %v2973
        %s3008 = smul.addr %s241, 4
        %s3009 = scalar_lea.vmem [#allocation9], %s3008
        %v3010 = vld [vmem:[%s3009] sm:$0xff]
        %v3011 = vld [vmem:[%s3009 + $0x8] sm:$0xff]
        %v3012 = vld [vmem:[%s3009 + $0x10] sm:$0xff]
        %v3013 = vld [vmem:[%s3009 + $0x18] sm:$0xff]
        %v3014 = vld [vmem:[%s3009 + $0x20] sm:$0xff]
        %v3015 = vld [vmem:[%s3009 + $0x28] sm:$0xff]
        %v3016 = vld [vmem:[%s3009 + $0x30] sm:$0xff]
        %v3017 = vld [vmem:[%s3009 + $0x38] sm:$0xff]
        %v3018 = vld [vmem:[%s3009 + $0x40] sm:$0xff]
        %v3019 = vld [vmem:[%s3009 + $0x48] sm:$0xff]
        %v3020 = vld [vmem:[%s3009 + $0x50] sm:$0xff]
        %v3021 = vld [vmem:[%s3009 + $0x58] sm:$0xff]
        %v3022 = vld [vmem:[%s3009 + $0x60] sm:$0xff]
        %v3023 = vld [vmem:[%s3009 + $0x68] sm:$0xff]
        %v3024 = vld [vmem:[%s3009 + $0x70] sm:$0xff]
        %v3025 = vld [vmem:[%s3009 + $0x78] sm:$0xff]
        %v3026 = vld [vmem:[%s3009 + $0x80] sm:$0xff]
        %v3027 = vld [vmem:[%s3009 + $0x88] sm:$0xff]
        %v3028 = vld [vmem:[%s3009 + $0x90] sm:$0xff]
        %v3029 = vld [vmem:[%s3009 + $0x98] sm:$0xff]
        %v3030 = vld [vmem:[%s3009 + $0xa0] sm:$0xff]
        %v3031 = vld [vmem:[%s3009 + $0xa8] sm:$0xff]
        %v3032 = vld [vmem:[%s3009 + $0xb0] sm:$0xff]
        %v3033 = vld [vmem:[%s3009 + $0xb8] sm:$0xff]
        %v3034 = vld [vmem:[%s3009 + $0xc0] sm:$0xff]
        %v3035 = vld [vmem:[%s3009 + $0xc8] sm:$0xff]
        %v3036 = vld [vmem:[%s3009 + $0xd0] sm:$0xff]
        %v3037 = vld [vmem:[%s3009 + $0xd8] sm:$0xff]
        %v3038 = vld [vmem:[%s3009 + $0xe0] sm:$0xff]
        %v3039 = vld [vmem:[%s3009 + $0xe8] sm:$0xff]
        %v3040 = vld [vmem:[%s3009 + $0xf0] sm:$0xff]
        %v3041 = vld [vmem:[%s3009 + $0xf8] sm:$0xff]
        %s3042 = scalar_lea.vmem %s6, %s1303
        %v3043 = vld [vmem:[%s3042] sm:$0xff]
        %v3044 = vld [vmem:[%s3042 + $0x8] sm:$0xff]
        %v3045 = vld [vmem:[%s3042 + $0x10] sm:$0xff]
        %v3046 = vld [vmem:[%s3042 + $0x18] sm:$0xff]
        %v3047 = vld [vmem:[%s3042 + $0x20] sm:$0xff]
        %v3048 = vld [vmem:[%s3042 + $0x28] sm:$0xff]
        %v3049 = vld [vmem:[%s3042 + $0x30] sm:$0xff]
        %v3050 = vld [vmem:[%s3042 + $0x38] sm:$0xff]
        %v3051 = vld [vmem:[%s3042 + $0x40] sm:$0xff]
        %v3052 = vld [vmem:[%s3042 + $0x48] sm:$0xff]
        %v3053 = vld [vmem:[%s3042 + $0x50] sm:$0xff]
        %v3054 = vld [vmem:[%s3042 + $0x58] sm:$0xff]
        %v3055 = vld [vmem:[%s3042 + $0x60] sm:$0xff]
        %v3056 = vld [vmem:[%s3042 + $0x68] sm:$0xff]
        %v3057 = vld [vmem:[%s3042 + $0x70] sm:$0xff]
        %v3058 = vld [vmem:[%s3042 + $0x78] sm:$0xff]
        %v3059 = vld [vmem:[%s3042 + $0x80] sm:$0xff]
        %v3060 = vld [vmem:[%s3042 + $0x88] sm:$0xff]
        %v3061 = vld [vmem:[%s3042 + $0x90] sm:$0xff]
        %v3062 = vld [vmem:[%s3042 + $0x98] sm:$0xff]
        %v3063 = vld [vmem:[%s3042 + $0xa0] sm:$0xff]
        %v3064 = vld [vmem:[%s3042 + $0xa8] sm:$0xff]
        %v3065 = vld [vmem:[%s3042 + $0xb0] sm:$0xff]
        %v3066 = vld [vmem:[%s3042 + $0xb8] sm:$0xff]
        %v3067 = vld [vmem:[%s3042 + $0xc0] sm:$0xff]
        %v3068 = vld [vmem:[%s3042 + $0xc8] sm:$0xff]
        %v3069 = vld [vmem:[%s3042 + $0xd0] sm:$0xff]
        %v3070 = vld [vmem:[%s3042 + $0xd8] sm:$0xff]
        %v3071 = vld [vmem:[%s3042 + $0xe0] sm:$0xff]
        %v3072 = vld [vmem:[%s3042 + $0xe8] sm:$0xff]
        %v3073 = vld [vmem:[%s3042 + $0xf0] sm:$0xff]
        %v3074 = vld [vmem:[%s3042 + $0xf8] sm:$0xff]
        %3076 = vset.pattern.permute.xlu0 0
        %3077 = vperm.xlu0 %3076, %v3043
        %v3078 = vpop.permute.xlu0 %3077
        %3081 = vset.pattern.permute.xlu0 0
        %3082 = vperm.xlu0 %3081, %v3044
        %v3083 = vpop.permute.xlu0 %3082
        %3086 = vset.pattern.permute.xlu0 0
        %3087 = vperm.xlu0 %3086, %v3045
        %v3088 = vpop.permute.xlu0 %3087
        %3091 = vset.pattern.permute.xlu0 0
        %3092 = vperm.xlu0 %3091, %v3046
        %v3093 = vpop.permute.xlu0 %3092
        %3096 = vset.pattern.permute.xlu0 0
        %3097 = vperm.xlu0 %3096, %v3047
        %v3098 = vpop.permute.xlu0 %3097
        %3101 = vset.pattern.permute.xlu0 0
        %3102 = vperm.xlu0 %3101, %v3048
        %v3103 = vpop.permute.xlu0 %3102
        %3106 = vset.pattern.permute.xlu0 0
        %3107 = vperm.xlu0 %3106, %v3049
        %v3108 = vpop.permute.xlu0 %3107
        %3111 = vset.pattern.permute.xlu0 0
        %3112 = vperm.xlu0 %3111, %v3050
        %v3113 = vpop.permute.xlu0 %3112
        %3116 = vset.pattern.permute.xlu0 0
        %3117 = vperm.xlu0 %3116, %v3051
        %v3118 = vpop.permute.xlu0 %3117
        %3121 = vset.pattern.permute.xlu0 0
        %3122 = vperm.xlu0 %3121, %v3052
        %v3123 = vpop.permute.xlu0 %3122
        %3126 = vset.pattern.permute.xlu0 0
        %3127 = vperm.xlu0 %3126, %v3053
        %v3128 = vpop.permute.xlu0 %3127
        %3131 = vset.pattern.permute.xlu0 0
        %3132 = vperm.xlu0 %3131, %v3054
        %v3133 = vpop.permute.xlu0 %3132
        %3136 = vset.pattern.permute.xlu0 0
        %3137 = vperm.xlu0 %3136, %v3055
        %v3138 = vpop.permute.xlu0 %3137
        %3141 = vset.pattern.permute.xlu0 0
        %3142 = vperm.xlu0 %3141, %v3056
        %v3143 = vpop.permute.xlu0 %3142
        %3146 = vset.pattern.permute.xlu0 0
        %3147 = vperm.xlu0 %3146, %v3057
        %v3148 = vpop.permute.xlu0 %3147
        %3151 = vset.pattern.permute.xlu0 0
        %3152 = vperm.xlu0 %3151, %v3058
        %v3153 = vpop.permute.xlu0 %3152
        %3156 = vset.pattern.permute.xlu0 0
        %3157 = vperm.xlu0 %3156, %v3059
        %v3158 = vpop.permute.xlu0 %3157
        %3161 = vset.pattern.permute.xlu0 0
        %3162 = vperm.xlu0 %3161, %v3060
        %v3163 = vpop.permute.xlu0 %3162
        %3166 = vset.pattern.permute.xlu0 0
        %3167 = vperm.xlu0 %3166, %v3061
        %v3168 = vpop.permute.xlu0 %3167
        %3171 = vset.pattern.permute.xlu0 0
        %3172 = vperm.xlu0 %3171, %v3062
        %v3173 = vpop.permute.xlu0 %3172
        %3176 = vset.pattern.permute.xlu0 0
        %3177 = vperm.xlu0 %3176, %v3063
        %v3178 = vpop.permute.xlu0 %3177
        %3181 = vset.pattern.permute.xlu0 0
        %3182 = vperm.xlu0 %3181, %v3064
        %v3183 = vpop.permute.xlu0 %3182
        %3186 = vset.pattern.permute.xlu0 0
        %3187 = vperm.xlu0 %3186, %v3065
        %v3188 = vpop.permute.xlu0 %3187
        %3191 = vset.pattern.permute.xlu0 0
        %3192 = vperm.xlu0 %3191, %v3066
        %v3193 = vpop.permute.xlu0 %3192
        %3196 = vset.pattern.permute.xlu0 0
        %3197 = vperm.xlu0 %3196, %v3067
        %v3198 = vpop.permute.xlu0 %3197
        %3201 = vset.pattern.permute.xlu0 0
        %3202 = vperm.xlu0 %3201, %v3068
        %v3203 = vpop.permute.xlu0 %3202
        %3206 = vset.pattern.permute.xlu0 0
        %3207 = vperm.xlu0 %3206, %v3069
        %v3208 = vpop.permute.xlu0 %3207
        %3211 = vset.pattern.permute.xlu0 0
        %3212 = vperm.xlu0 %3211, %v3070
        %v3213 = vpop.permute.xlu0 %3212
        %3216 = vset.pattern.permute.xlu0 0
        %3217 = vperm.xlu0 %3216, %v3071
        %v3218 = vpop.permute.xlu0 %3217
        %3221 = vset.pattern.permute.xlu0 0
        %3222 = vperm.xlu0 %3221, %v3072
        %v3223 = vpop.permute.xlu0 %3222
        %3226 = vset.pattern.permute.xlu0 0
        %3227 = vperm.xlu0 %3226, %v3073
        %v3228 = vpop.permute.xlu0 %3227
        %3231 = vset.pattern.permute.xlu0 0
        %3232 = vperm.xlu0 %3231, %v3074
        %v3233 = vpop.permute.xlu0 %3232
        %v3267 = vunpack.c.l.b16 %v3010
        %v3268 = vunpack.c.h.b16 %v3010
        %v3269 = vunpack.c.l.b16 %v3011
        %v3270 = vunpack.c.h.b16 %v3011
        %v3271 = vunpack.c.l.b16 %v3012
        %v3272 = vunpack.c.h.b16 %v3012
        %v3273 = vunpack.c.l.b16 %v3013
        %v3274 = vunpack.c.h.b16 %v3013
        %v3275 = vunpack.c.l.b16 %v3014
        %v3276 = vunpack.c.h.b16 %v3014
        %v3277 = vunpack.c.l.b16 %v3015
        %v3278 = vunpack.c.h.b16 %v3015
        %v3279 = vunpack.c.l.b16 %v3016
        %v3280 = vunpack.c.h.b16 %v3016
        %v3281 = vunpack.c.l.b16 %v3017
        %v3282 = vunpack.c.h.b16 %v3017
        %v3283 = vunpack.c.l.b16 %v3018
        %v3284 = vunpack.c.h.b16 %v3018
        %v3285 = vunpack.c.l.b16 %v3019
        %v3286 = vunpack.c.h.b16 %v3019
        %v3287 = vunpack.c.l.b16 %v3020
        %v3288 = vunpack.c.h.b16 %v3020
        %v3289 = vunpack.c.l.b16 %v3021
        %v3290 = vunpack.c.h.b16 %v3021
        %v3291 = vunpack.c.l.b16 %v3022
        %v3292 = vunpack.c.h.b16 %v3022
        %v3293 = vunpack.c.l.b16 %v3023
        %v3294 = vunpack.c.h.b16 %v3023
        %v3295 = vunpack.c.l.b16 %v3024
        %v3296 = vunpack.c.h.b16 %v3024
        %v3297 = vunpack.c.l.b16 %v3025
        %v3298 = vunpack.c.h.b16 %v3025
        %v3299 = vunpack.c.l.b16 %v3026
        %v3300 = vunpack.c.h.b16 %v3026
        %v3301 = vunpack.c.l.b16 %v3027
        %v3302 = vunpack.c.h.b16 %v3027
        %v3303 = vunpack.c.l.b16 %v3028
        %v3304 = vunpack.c.h.b16 %v3028
        %v3305 = vunpack.c.l.b16 %v3029
        %v3306 = vunpack.c.h.b16 %v3029
        %v3307 = vunpack.c.l.b16 %v3030
        %v3308 = vunpack.c.h.b16 %v3030
        %v3309 = vunpack.c.l.b16 %v3031
        %v3310 = vunpack.c.h.b16 %v3031
        %v3311 = vunpack.c.l.b16 %v3032
        %v3312 = vunpack.c.h.b16 %v3032
        %v3313 = vunpack.c.l.b16 %v3033
        %v3314 = vunpack.c.h.b16 %v3033
        %v3315 = vunpack.c.l.b16 %v3034
        %v3316 = vunpack.c.h.b16 %v3034
        %v3317 = vunpack.c.l.b16 %v3035
        %v3318 = vunpack.c.h.b16 %v3035
        %v3319 = vunpack.c.l.b16 %v3036
        %v3320 = vunpack.c.h.b16 %v3036
        %v3321 = vunpack.c.l.b16 %v3037
        %v3322 = vunpack.c.h.b16 %v3037
        %v3323 = vunpack.c.l.b16 %v3038
        %v3324 = vunpack.c.h.b16 %v3038
        %v3325 = vunpack.c.l.b16 %v3039
        %v3326 = vunpack.c.h.b16 %v3039
        %v3327 = vunpack.c.l.b16 %v3040
        %v3328 = vunpack.c.h.b16 %v3040
        %v3329 = vunpack.c.l.b16 %v3041
        %v3330 = vunpack.c.h.b16 %v3041
        %v3331 = vpack.c.b16 %v3269, %v3267
        %v3332 = vpack.c.b16 %v3270, %v3268
        %v3333 = vpack.c.b16 %v3273, %v3271
        %v3334 = vpack.c.b16 %v3274, %v3272
        %v3335 = vpack.c.b16 %v3277, %v3275
        %v3336 = vpack.c.b16 %v3278, %v3276
        %v3337 = vpack.c.b16 %v3281, %v3279
        %v3338 = vpack.c.b16 %v3282, %v3280
        %v3339 = vpack.c.b16 %v3285, %v3283
        %v3340 = vpack.c.b16 %v3286, %v3284
        %v3341 = vpack.c.b16 %v3289, %v3287
        %v3342 = vpack.c.b16 %v3290, %v3288
        %v3343 = vpack.c.b16 %v3293, %v3291
        %v3344 = vpack.c.b16 %v3294, %v3292
        %v3345 = vpack.c.b16 %v3297, %v3295
        %v3346 = vpack.c.b16 %v3298, %v3296
        %v3347 = vpack.c.b16 %v3301, %v3299
        %v3348 = vpack.c.b16 %v3302, %v3300
        %v3349 = vpack.c.b16 %v3305, %v3303
        %v3350 = vpack.c.b16 %v3306, %v3304
        %v3351 = vpack.c.b16 %v3309, %v3307
        %v3352 = vpack.c.b16 %v3310, %v3308
        %v3353 = vpack.c.b16 %v3313, %v3311
        %v3354 = vpack.c.b16 %v3314, %v3312
        %v3355 = vpack.c.b16 %v3317, %v3315
        %v3356 = vpack.c.b16 %v3318, %v3316
        %v3357 = vpack.c.b16 %v3321, %v3319
        %v3358 = vpack.c.b16 %v3322, %v3320
        %v3359 = vpack.c.b16 %v3325, %v3323
        %v3360 = vpack.c.b16 %v3326, %v3324
        %v3361 = vpack.c.b16 %v3329, %v3327
        %v3362 = vpack.c.b16 %v3330, %v3328
        %3395 = vmatprep.subr.bf16.mxu0 %v2977
        %3396 = vmatpush1.bf16.msra.mxu0 %v2976
        %3397 = vmatprep.subr.bf16.mxu0 %v2979
        %3398 = vmatpush1.bf16.msra.mxu0 %v2978
        %3399 = vmatprep.subr.bf16.mxu0 %v2981
        %3400 = vmatpush1.bf16.msra.mxu0 %v2980
        %3401 = vmatprep.subr.bf16.mxu0 %v2983
        %3402 = vmatpush1.bf16.msra.mxu0 %v2982
        %3403 = vmatprep.subr.bf16.mxu0 %v2985
        %3404 = vmatpush1.bf16.msra.mxu0 %v2984
        %3405 = vmatprep.subr.bf16.mxu0 %v2987
        %3406 = vmatpush1.bf16.msra.mxu0 %v2986
        %3407 = vmatprep.subr.bf16.mxu0 %v2989
        %3408 = vmatpush1.bf16.msra.mxu0 %v2988
        %3409 = vmatprep.subr.bf16.mxu0 %v2991
        %3410 = vmatpush1.bf16.msra.mxu0 %v2990
        %3411 = vmatprep.subr.bf16.mxu0 %v2993
        %3412 = vmatpush1.bf16.msra.mxu0 %v2992
        %3413 = vmatprep.subr.bf16.mxu0 %v2995
        %3414 = vmatpush1.bf16.msra.mxu0 %v2994
        %3415 = vmatprep.subr.bf16.mxu0 %v2997
        %3416 = vmatpush1.bf16.msra.mxu0 %v2996
        %3417 = vmatprep.subr.bf16.mxu0 %v2999
        %3418 = vmatpush1.bf16.msra.mxu0 %v2998
        %3419 = vmatprep.subr.bf16.mxu0 %v3001
        %3420 = vmatpush1.bf16.msra.mxu0 %v3000
        %3421 = vmatprep.subr.bf16.mxu0 %v3003
        %3422 = vmatpush1.bf16.msra.mxu0 %v3002
        %3423 = vmatprep.subr.bf16.mxu0 %v3005
        %3424 = vmatpush1.bf16.msra.mxu0 %v3004
        %3425 = vmatprep.subr.bf16.mxu0 %v3007
        %3426 = vmatpush1.bf16.msra.mxu0 %v3006
        %3427 = vmatprep.mubr.bf16.mxu0 %v3332
        %3428 = vmatmul.mubr.bf16.gmra.mrb[0].mxu0 %v3331
        %v3429 = vpop.f32.mrb[0].mxu0
        %v3430 = vadd.f32 %v3078, %v3429
        %v3431 = vpop.f32.mrb[0].mxu0
        %v3432 = vadd.f32 %v3078, %v3431
        %v3433 = vpop.f32.mrb[0].mxu0
        %v3434 = vadd.f32 %v3083, %v3433
        %v3435 = vpop.f32.mrb[0].mxu0
        %v3436 = vadd.f32 %v3083, %v3435
        %3437 = vmatprep.mubr.bf16.mxu0 %v3334
        %3438 = vmatmul.mubr.bf16.gmra.mrb[0].mxu0 %v3333
        %v3439 = vpop.f32.mrb[0].mxu0
        %v3440 = vadd.f32 %v3088, %v3439
        %v3441 = vpop.f32.mrb[0].mxu0
        %v3442 = vadd.f32 %v3088, %v3441
        %v3443 = vpop.f32.mrb[0].mxu0
        %v3444 = vadd.f32 %v3093, %v3443
        %v3445 = vpop.f32.mrb[0].mxu0
        %v3446 = vadd.f32 %v3093, %v3445
        %3447 = vmatprep.mubr.bf16.mxu0 %v3336
        %3448 = vmatmul.mubr.bf16.gmra.mrb[0].mxu0 %v3335
        %v3449 = vpop.f32.mrb[0].mxu0
        %v3450 = vadd.f32 %v3098, %v3449
        %v3451 = vpop.f32.mrb[0].mxu0
        %v3452 = vadd.f32 %v3098, %v3451
        %v3453 = vpop.f32.mrb[0].mxu0
        %v3454 = vadd.f32 %v3103, %v3453
        %v3455 = vpop.f32.mrb[0].mxu0
        %v3456 = vadd.f32 %v3103, %v3455
        %3457 = vmatprep.mubr.bf16.mxu0 %v3338
        %3458 = vmatmul.mubr.bf16.gmra.mrb[0].mxu0 %v3337
        %v3459 = vpop.f32.mrb[0].mxu0
        %v3460 = vadd.f32 %v3108, %v3459
        %v3461 = vpop.f32.mrb[0].mxu0
        %v3462 = vadd.f32 %v3108, %v3461
        %v3463 = vpop.f32.mrb[0].mxu0
        %v3464 = vadd.f32 %v3113, %v3463
        %v3465 = vpop.f32.mrb[0].mxu0
        %v3466 = vadd.f32 %v3113, %v3465
        %3467 = vmatprep.mubr.bf16.mxu0 %v3340
        %3468 = vmatmul.mubr.bf16.gmra.mrb[0].mxu0 %v3339
        %v3469 = vpop.f32.mrb[0].mxu0
        %v3470 = vadd.f32 %v3118, %v3469
        %v3471 = vpop.f32.mrb[0].mxu0
        %v3472 = vadd.f32 %v3118, %v3471
        %v3473 = vpop.f32.mrb[0].mxu0
        %v3474 = vadd.f32 %v3123, %v3473
        %v3475 = vpop.f32.mrb[0].mxu0
        %v3476 = vadd.f32 %v3123, %v3475
        %3477 = vmatprep.mubr.bf16.mxu0 %v3342
        %3478 = vmatmul.mubr.bf16.gmra.mrb[0].mxu0 %v3341
        %v3479 = vpop.f32.mrb[0].mxu0
        %v3480 = vadd.f32 %v3128, %v3479
        %v3481 = vpop.f32.mrb[0].mxu0
        %v3482 = vadd.f32 %v3128, %v3481
        %v3483 = vpop.f32.mrb[0].mxu0
        %v3484 = vadd.f32 %v3133, %v3483
        %v3485 = vpop.f32.mrb[0].mxu0
        %v3486 = vadd.f32 %v3133, %v3485
        %3487 = vmatprep.mubr.bf16.mxu0 %v3344
        %3488 = vmatmul.mubr.bf16.gmra.mrb[0].mxu0 %v3343
        %v3489 = vpop.f32.mrb[0].mxu0
        %v3490 = vadd.f32 %v3138, %v3489
        %v3491 = vpop.f32.mrb[0].mxu0
        %v3492 = vadd.f32 %v3138, %v3491
        %v3493 = vpop.f32.mrb[0].mxu0
        %v3494 = vadd.f32 %v3143, %v3493
        %v3495 = vpop.f32.mrb[0].mxu0
        %v3496 = vadd.f32 %v3143, %v3495
        %3497 = vmatprep.mubr.bf16.mxu0 %v3346
        %3498 = vmatmul.mubr.bf16.gmra.mrb[0].mxu0 %v3345
        %v3499 = vpop.f32.mrb[0].mxu0
        %v3500 = vadd.f32 %v3148, %v3499
        %v3501 = vpop.f32.mrb[0].mxu0
        %v3502 = vadd.f32 %v3148, %v3501
        %v3503 = vpop.f32.mrb[0].mxu0
        %v3504 = vadd.f32 %v3153, %v3503
        %v3505 = vpop.f32.mrb[0].mxu0
        %v3506 = vadd.f32 %v3153, %v3505
        %3507 = vmatprep.mubr.bf16.mxu0 %v3348
        %3508 = vmatmul.mubr.bf16.gmra.mrb[0].mxu0 %v3347
        %v3509 = vpop.f32.mrb[0].mxu0
        %v3510 = vadd.f32 %v3158, %v3509
        %v3511 = vpop.f32.mrb[0].mxu0
        %v3512 = vadd.f32 %v3158, %v3511
        %v3513 = vpop.f32.mrb[0].mxu0
        %v3514 = vadd.f32 %v3163, %v3513
        %v3515 = vpop.f32.mrb[0].mxu0
        %v3516 = vadd.f32 %v3163, %v3515
        %3517 = vmatprep.mubr.bf16.mxu0 %v3350
        %3518 = vmatmul.mubr.bf16.gmra.mrb[0].mxu0 %v3349
        %v3519 = vpop.f32.mrb[0].mxu0
        %v3520 = vadd.f32 %v3168, %v3519
        %v3521 = vpop.f32.mrb[0].mxu0
        %v3522 = vadd.f32 %v3168, %v3521
        %v3523 = vpop.f32.mrb[0].mxu0
        %v3524 = vadd.f32 %v3173, %v3523
        %v3525 = vpop.f32.mrb[0].mxu0
        %v3526 = vadd.f32 %v3173, %v3525
        %3527 = vmatprep.mubr.bf16.mxu0 %v3352
        %3528 = vmatmul.mubr.bf16.gmra.mrb[0].mxu0 %v3351
        %v3529 = vpop.f32.mrb[0].mxu0
        %v3530 = vadd.f32 %v3178, %v3529
        %v3531 = vpop.f32.mrb[0].mxu0
        %v3532 = vadd.f32 %v3178, %v3531
        %v3533 = vpop.f32.mrb[0].mxu0
        %v3534 = vadd.f32 %v3183, %v3533
        %v3535 = vpop.f32.mrb[0].mxu0
        %v3536 = vadd.f32 %v3183, %v3535
        %3537 = vmatprep.mubr.bf16.mxu0 %v3354
        %3538 = vmatmul.mubr.bf16.gmra.mrb[0].mxu0 %v3353
        %v3539 = vpop.f32.mrb[0].mxu0
        %v3540 = vadd.f32 %v3188, %v3539
        %v3541 = vpop.f32.mrb[0].mxu0
        %v3542 = vadd.f32 %v3188, %v3541
        %v3543 = vpop.f32.mrb[0].mxu0
        %v3544 = vadd.f32 %v3193, %v3543
        %v3545 = vpop.f32.mrb[0].mxu0
        %v3546 = vadd.f32 %v3193, %v3545
        %3547 = vmatprep.mubr.bf16.mxu0 %v3356
        %3548 = vmatmul.mubr.bf16.gmra.mrb[0].mxu0 %v3355
        %v3549 = vpop.f32.mrb[0].mxu0
        %v3550 = vadd.f32 %v3198, %v3549
        %v3551 = vpop.f32.mrb[0].mxu0
        %v3552 = vadd.f32 %v3198, %v3551
        %v3553 = vpop.f32.mrb[0].mxu0
        %v3554 = vadd.f32 %v3203, %v3553
        %v3555 = vpop.f32.mrb[0].mxu0
        %v3556 = vadd.f32 %v3203, %v3555
        %3557 = vmatprep.mubr.bf16.mxu0 %v3358
        %3558 = vmatmul.mubr.bf16.gmra.mrb[0].mxu0 %v3357
        %v3559 = vpop.f32.mrb[0].mxu0
        %v3560 = vadd.f32 %v3208, %v3559
        %v3561 = vpop.f32.mrb[0].mxu0
        %v3562 = vadd.f32 %v3208, %v3561
        %v3563 = vpop.f32.mrb[0].mxu0
        %v3564 = vadd.f32 %v3213, %v3563
        %v3565 = vpop.f32.mrb[0].mxu0
        %v3566 = vadd.f32 %v3213, %v3565
        %3567 = vmatprep.mubr.bf16.mxu0 %v3360
        %3568 = vmatmul.mubr.bf16.gmra.mrb[0].mxu0 %v3359
        %v3569 = vpop.f32.mrb[0].mxu0
        %v3570 = vadd.f32 %v3218, %v3569
        %v3571 = vpop.f32.mrb[0].mxu0
        %v3572 = vadd.f32 %v3218, %v3571
        %v3573 = vpop.f32.mrb[0].mxu0
        %v3574 = vadd.f32 %v3223, %v3573
        %v3575 = vpop.f32.mrb[0].mxu0
        %v3576 = vadd.f32 %v3223, %v3575
        %3577 = vmatprep.mubr.bf16.mxu0 %v3362
        %3578 = vmatmul.mubr.bf16.gmra.mrb[0].mxu0 %v3361
        %v3579 = vpop.f32.mrb[0].mxu0
        %v3580 = vadd.f32 %v3228, %v3579
        %v3581 = vpop.f32.mrb[0].mxu0
        %v3582 = vadd.f32 %v3228, %v3581
        %v3583 = vpop.f32.mrb[0].mxu0
        %v3584 = vadd.f32 %v3233, %v3583
        %v3585 = vpop.f32.mrb[0].mxu0
        %v3586 = vadd.f32 %v3233, %v3585
        %3587 = vdwg.mxu0
        %s3588 = sadd.s32 %s1850, 1
        %s3589 = sld [smem:[#allocation11 + %s3588]]
        %vm3590 = vcmp.ge.f32.partialorder %v3430, 0.0
        %vm3591 = vcmp.ge.f32.partialorder %v3432, 0.0
        %vm3592 = vcmp.ge.f32.partialorder %v3434, 0.0
        %vm3593 = vcmp.ge.f32.partialorder %v3436, 0.0
        %vm3594 = vcmp.ge.f32.partialorder %v3440, 0.0
        %vm3595 = vcmp.ge.f32.partialorder %v3442, 0.0
        %vm3596 = vcmp.ge.f32.partialorder %v3444, 0.0
        %vm3597 = vcmp.ge.f32.partialorder %v3446, 0.0
        %vm3598 = vcmp.ge.f32.partialorder %v3450, 0.0
        %vm3599 = vcmp.ge.f32.partialorder %v3452, 0.0
        %vm3600 = vcmp.ge.f32.partialorder %v3454, 0.0
        %vm3601 = vcmp.ge.f32.partialorder %v3456, 0.0
        %vm3602 = vcmp.ge.f32.partialorder %v3460, 0.0
        %vm3603 = vcmp.ge.f32.partialorder %v3462, 0.0
        %vm3604 = vcmp.ge.f32.partialorder %v3464, 0.0
        %vm3605 = vcmp.ge.f32.partialorder %v3466, 0.0
        %vm3606 = vcmp.ge.f32.partialorder %v3470, 0.0
        %vm3607 = vcmp.ge.f32.partialorder %v3472, 0.0
        %vm3608 = vcmp.ge.f32.partialorder %v3474, 0.0
        %vm3609 = vcmp.ge.f32.partialorder %v3476, 0.0
        %vm3610 = vcmp.ge.f32.partialorder %v3480, 0.0
        %vm3611 = vcmp.ge.f32.partialorder %v3482, 0.0
        %vm3612 = vcmp.ge.f32.partialorder %v3484, 0.0
        %vm3613 = vcmp.ge.f32.partialorder %v3486, 0.0
        %vm3614 = vcmp.ge.f32.partialorder %v3490, 0.0
        %vm3615 = vcmp.ge.f32.partialorder %v3492, 0.0
        %vm3616 = vcmp.ge.f32.partialorder %v3494, 0.0
        %vm3617 = vcmp.ge.f32.partialorder %v3496, 0.0
        %vm3618 = vcmp.ge.f32.partialorder %v3500, 0.0
        %vm3619 = vcmp.ge.f32.partialorder %v3502, 0.0
        %vm3620 = vcmp.ge.f32.partialorder %v3504, 0.0
        %vm3621 = vcmp.ge.f32.partialorder %v3506, 0.0
        %vm3622 = vcmp.ge.f32.partialorder %v3510, 0.0
        %vm3623 = vcmp.ge.f32.partialorder %v3512, 0.0
        %vm3624 = vcmp.ge.f32.partialorder %v3514, 0.0
        %vm3625 = vcmp.ge.f32.partialorder %v3516, 0.0
        %vm3626 = vcmp.ge.f32.partialorder %v3520, 0.0
        %vm3627 = vcmp.ge.f32.partialorder %v3522, 0.0
        %vm3628 = vcmp.ge.f32.partialorder %v3524, 0.0
        %vm3629 = vcmp.ge.f32.partialorder %v3526, 0.0
        %vm3630 = vcmp.ge.f32.partialorder %v3530, 0.0
        %vm3631 = vcmp.ge.f32.partialorder %v3532, 0.0
        %vm3632 = vcmp.ge.f32.partialorder %v3534, 0.0
        %vm3633 = vcmp.ge.f32.partialorder %v3536, 0.0
        %vm3634 = vcmp.ge.f32.partialorder %v3540, 0.0
        %vm3635 = vcmp.ge.f32.partialorder %v3542, 0.0
        %vm3636 = vcmp.ge.f32.partialorder %v3544, 0.0
        %vm3637 = vcmp.ge.f32.partialorder %v3546, 0.0
        %vm3638 = vcmp.ge.f32.partialorder %v3550, 0.0
        %vm3639 = vcmp.ge.f32.partialorder %v3552, 0.0
        %vm3640 = vcmp.ge.f32.partialorder %v3554, 0.0
        %vm3641 = vcmp.ge.f32.partialorder %v3556, 0.0
        %vm3642 = vcmp.ge.f32.partialorder %v3560, 0.0
        %vm3643 = vcmp.ge.f32.partialorder %v3562, 0.0
        %vm3644 = vcmp.ge.f32.partialorder %v3564, 0.0
        %vm3645 = vcmp.ge.f32.partialorder %v3566, 0.0
        %vm3646 = vcmp.ge.f32.partialorder %v3570, 0.0
        %vm3647 = vcmp.ge.f32.partialorder %v3572, 0.0
        %vm3648 = vcmp.ge.f32.partialorder %v3574, 0.0
        %vm3649 = vcmp.ge.f32.partialorder %v3576, 0.0
        %vm3650 = vcmp.ge.f32.partialorder %v3580, 0.0
        %vm3651 = vcmp.ge.f32.partialorder %v3582, 0.0
        %vm3652 = vcmp.ge.f32.partialorder %v3584, 0.0
        %vm3653 = vcmp.ge.f32.partialorder %v3586, 0.0
        %v3654 = vstv %s3589
        %v3655 = vmul.f32 %v3430, %v3654
        %v3656 = vmul.f32 %v3432, %v3654
        %v3657 = vmul.f32 %v3434, %v3654
        %v3658 = vmul.f32 %v3436, %v3654
        %v3659 = vmul.f32 %v3440, %v3654
        %v3660 = vmul.f32 %v3442, %v3654
        %v3661 = vmul.f32 %v3444, %v3654
        %v3662 = vmul.f32 %v3446, %v3654
        %v3663 = vmul.f32 %v3450, %v3654
        %v3664 = vmul.f32 %v3452, %v3654
        %v3665 = vmul.f32 %v3454, %v3654
        %v3666 = vmul.f32 %v3456, %v3654
        %v3667 = vmul.f32 %v3460, %v3654
        %v3668 = vmul.f32 %v3462, %v3654
        %v3669 = vmul.f32 %v3464, %v3654
        %v3670 = vmul.f32 %v3466, %v3654
        %v3671 = vmul.f32 %v3470, %v3654
        %v3672 = vmul.f32 %v3472, %v3654
        %v3673 = vmul.f32 %v3474, %v3654
        %v3674 = vmul.f32 %v3476, %v3654
        %v3675 = vmul.f32 %v3480, %v3654
        %v3676 = vmul.f32 %v3482, %v3654
        %v3677 = vmul.f32 %v3484, %v3654
        %v3678 = vmul.f32 %v3486, %v3654
        %v3679 = vmul.f32 %v3490, %v3654
        %v3680 = vmul.f32 %v3492, %v3654
        %v3681 = vmul.f32 %v3494, %v3654
        %v3682 = vmul.f32 %v3496, %v3654
        %v3683 = vmul.f32 %v3500, %v3654
        %v3684 = vmul.f32 %v3502, %v3654
        %v3685 = vmul.f32 %v3504, %v3654
        %v3686 = vmul.f32 %v3506, %v3654
        %v3687 = vmul.f32 %v3510, %v3654
        %v3688 = vmul.f32 %v3512, %v3654
        %v3689 = vmul.f32 %v3514, %v3654
        %v3690 = vmul.f32 %v3516, %v3654
        %v3691 = vmul.f32 %v3520, %v3654
        %v3692 = vmul.f32 %v3522, %v3654
        %v3693 = vmul.f32 %v3524, %v3654
        %v3694 = vmul.f32 %v3526, %v3654
        %v3695 = vmul.f32 %v3530, %v3654
        %v3696 = vmul.f32 %v3532, %v3654
        %v3697 = vmul.f32 %v3534, %v3654
        %v3698 = vmul.f32 %v3536, %v3654
        %v3699 = vmul.f32 %v3540, %v3654
        %v3700 = vmul.f32 %v3542, %v3654
        %v3701 = vmul.f32 %v3544, %v3654
        %v3702 = vmul.f32 %v3546, %v3654
        %v3703 = vmul.f32 %v3550, %v3654
        %v3704 = vmul.f32 %v3552, %v3654
        %v3705 = vmul.f32 %v3554, %v3654
        %v3706 = vmul.f32 %v3556, %v3654
        %v3707 = vmul.f32 %v3560, %v3654
        %v3708 = vmul.f32 %v3562, %v3654
        %v3709 = vmul.f32 %v3564, %v3654
        %v3710 = vmul.f32 %v3566, %v3654
        %v3711 = vmul.f32 %v3570, %v3654
        %v3712 = vmul.f32 %v3572, %v3654
        %v3713 = vmul.f32 %v3574, %v3654
        %v3714 = vmul.f32 %v3576, %v3654
        %v3715 = vmul.f32 %v3580, %v3654
        %v3716 = vmul.f32 %v3582, %v3654
        %v3717 = vmul.f32 %v3584, %v3654
        %v3718 = vmul.f32 %v3586, %v3654
        %v3719 = vsel %vm3590, %v3430, %v3655
        %v3720 = vsel %vm3591, %v3432, %v3656
        %v3721 = vsel %vm3592, %v3434, %v3657
        %v3722 = vsel %vm3593, %v3436, %v3658
        %v3723 = vsel %vm3594, %v3440, %v3659
        %v3724 = vsel %vm3595, %v3442, %v3660
        %v3725 = vsel %vm3596, %v3444, %v3661
        %v3726 = vsel %vm3597, %v3446, %v3662
        %v3727 = vsel %vm3598, %v3450, %v3663
        %v3728 = vsel %vm3599, %v3452, %v3664
        %v3729 = vsel %vm3600, %v3454, %v3665
        %v3730 = vsel %vm3601, %v3456, %v3666
        %v3731 = vsel %vm3602, %v3460, %v3667
        %v3732 = vsel %vm3603, %v3462, %v3668
        %v3733 = vsel %vm3604, %v3464, %v3669
        %v3734 = vsel %vm3605, %v3466, %v3670
        %v3735 = vsel %vm3606, %v3470, %v3671
        %v3736 = vsel %vm3607, %v3472, %v3672
        %v3737 = vsel %vm3608, %v3474, %v3673
        %v3738 = vsel %vm3609, %v3476, %v3674
        %v3739 = vsel %vm3610, %v3480, %v3675
        %v3740 = vsel %vm3611, %v3482, %v3676
        %v3741 = vsel %vm3612, %v3484, %v3677
        %v3742 = vsel %vm3613, %v3486, %v3678
        %v3743 = vsel %vm3614, %v3490, %v3679
        %v3744 = vsel %vm3615, %v3492, %v3680
        %v3745 = vsel %vm3616, %v3494, %v3681
        %v3746 = vsel %vm3617, %v3496, %v3682
        %v3747 = vsel %vm3618, %v3500, %v3683
        %v3748 = vsel %vm3619, %v3502, %v3684
        %v3749 = vsel %vm3620, %v3504, %v3685
        %v3750 = vsel %vm3621, %v3506, %v3686
        %v3751 = vsel %vm3622, %v3510, %v3687
        %v3752 = vsel %vm3623, %v3512, %v3688
        %v3753 = vsel %vm3624, %v3514, %v3689
        %v3754 = vsel %vm3625, %v3516, %v3690
        %v3755 = vsel %vm3626, %v3520, %v3691
        %v3756 = vsel %vm3627, %v3522, %v3692
        %v3757 = vsel %vm3628, %v3524, %v3693
        %v3758 = vsel %vm3629, %v3526, %v3694
        %v3759 = vsel %vm3630, %v3530, %v3695
        %v3760 = vsel %vm3631, %v3532, %v3696
        %v3761 = vsel %vm3632, %v3534, %v3697
        %v3762 = vsel %vm3633, %v3536, %v3698
        %v3763 = vsel %vm3634, %v3540, %v3699
        %v3764 = vsel %vm3635, %v3542, %v3700
        %v3765 = vsel %vm3636, %v3544, %v3701
        %v3766 = vsel %vm3637, %v3546, %v3702
        %v3767 = vsel %vm3638, %v3550, %v3703
        %v3768 = vsel %vm3639, %v3552, %v3704
        %v3769 = vsel %vm3640, %v3554, %v3705
        %v3770 = vsel %vm3641, %v3556, %v3706
        %v3771 = vsel %vm3642, %v3560, %v3707
        %v3772 = vsel %vm3643, %v3562, %v3708
        %v3773 = vsel %vm3644, %v3564, %v3709
        %v3774 = vsel %vm3645, %v3566, %v3710
        %v3775 = vsel %vm3646, %v3570, %v3711
        %v3776 = vsel %vm3647, %v3572, %v3712
        %v3777 = vsel %vm3648, %v3574, %v3713
        %v3778 = vsel %vm3649, %v3576, %v3714
        %v3779 = vsel %vm3650, %v3580, %v3715
        %v3780 = vsel %vm3651, %v3582, %v3716
        %v3781 = vsel %vm3652, %v3584, %v3717
        %v3782 = vsel %vm3653, %v3586, %v3718
        %v3783 = vadd.f32 %v177, %v3719
        %v3784 = vadd.f32 %v178, %v3720
        %v3785 = vadd.f32 %v179, %v3721
        %v3786 = vadd.f32 %v180, %v3722
        %v3787 = vadd.f32 %v181, %v3723
        %v3788 = vadd.f32 %v182, %v3724
        %v3789 = vadd.f32 %v183, %v3725
        %v3790 = vadd.f32 %v184, %v3726
        %v3791 = vadd.f32 %v185, %v3727
        %v3792 = vadd.f32 %v186, %v3728
        %v3793 = vadd.f32 %v187, %v3729
        %v3794 = vadd.f32 %v188, %v3730
        %v3795 = vadd.f32 %v189, %v3731
        %v3796 = vadd.f32 %v190, %v3732
        %v3797 = vadd.f32 %v191, %v3733
        %v3798 = vadd.f32 %v192, %v3734
        %v3799 = vadd.f32 %v193, %v3735
        %v3800 = vadd.f32 %v194, %v3736
        %v3801 = vadd.f32 %v195, %v3737
        %v3802 = vadd.f32 %v196, %v3738
        %v3803 = vadd.f32 %v197, %v3739
        %v3804 = vadd.f32 %v198, %v3740
        %v3805 = vadd.f32 %v199, %v3741
        %v3806 = vadd.f32 %v200, %v3742
        %v3807 = vadd.f32 %v201, %v3743
        %v3808 = vadd.f32 %v202, %v3744
        %v3809 = vadd.f32 %v203, %v3745
        %v3810 = vadd.f32 %v204, %v3746
        %v3811 = vadd.f32 %v205, %v3747
        %v3812 = vadd.f32 %v206, %v3748
        %v3813 = vadd.f32 %v207, %v3749
        %v3814 = vadd.f32 %v208, %v3750
        %v3815 = vadd.f32 %v209, %v3751
        %v3816 = vadd.f32 %v210, %v3752
        %v3817 = vadd.f32 %v211, %v3753
        %v3818 = vadd.f32 %v212, %v3754
        %v3819 = vadd.f32 %v213, %v3755
        %v3820 = vadd.f32 %v214, %v3756
        %v3821 = vadd.f32 %v215, %v3757
        %v3822 = vadd.f32 %v216, %v3758
        %v3823 = vadd.f32 %v217, %v3759
        %v3824 = vadd.f32 %v218, %v3760
        %v3825 = vadd.f32 %v219, %v3761
        %v3826 = vadd.f32 %v220, %v3762
        %v3827 = vadd.f32 %v221, %v3763
        %v3828 = vadd.f32 %v222, %v3764
        %v3829 = vadd.f32 %v223, %v3765
        %v3830 = vadd.f32 %v224, %v3766
        %v3831 = vadd.f32 %v225, %v3767
        %v3832 = vadd.f32 %v226, %v3768
        %v3833 = vadd.f32 %v227, %v3769
        %v3834 = vadd.f32 %v228, %v3770
        %v3835 = vadd.f32 %v229, %v3771
        %v3836 = vadd.f32 %v230, %v3772
        %v3837 = vadd.f32 %v231, %v3773
        %v3838 = vadd.f32 %v232, %v3774
        %v3839 = vadd.f32 %v233, %v3775
        %v3840 = vadd.f32 %v234, %v3776
        %v3841 = vadd.f32 %v235, %v3777
        %v3842 = vadd.f32 %v236, %v3778
        %v3843 = vadd.f32 %v237, %v3779
        %v3844 = vadd.f32 %v238, %v3780
        %v3845 = vadd.f32 %v239, %v3781
        %v3846 = vadd.f32 %v240, %v3782
      $region65: #{tpu_custom_call.1} parent=57 // loop_footer
        %s176 = sadd.s32 1, %s172
      $region66: #{tpu_custom_call.1} parent=57 // loop_footer_branch
        %171 = sbr.rel target = $region62
      $region67: #{tpu_custom_call.1} parent=57 // loop_exit
        _
      %s3847 = smul.addr %s104, 8
      %s3848 = scalar_lea.vmem [#allocation12], %s3847
      %3849 = vst [vmem:[%s3848] sm:$0xff] %v177
      %3850 = vst [vmem:[%s3848 + $0x8] sm:$0xff] %v178
      %3851 = vst [vmem:[%s3848 + $0x10] sm:$0xff] %v179
      %3852 = vst [vmem:[%s3848 + $0x18] sm:$0xff] %v180
      %3853 = vst [vmem:[%s3848 + $0x20] sm:$0xff] %v181
      %3854 = vst [vmem:[%s3848 + $0x28] sm:$0xff] %v182
      %3855 = vst [vmem:[%s3848 + $0x30] sm:$0xff] %v183
      %3856 = vst [vmem:[%s3848 + $0x38] sm:$0xff] %v184
      %3857 = vst [vmem:[%s3848 + $0x40] sm:$0xff] %v185
      %3858 = vst [vmem:[%s3848 + $0x48] sm:$0xff] %v186
      %3859 = vst [vmem:[%s3848 + $0x50] sm:$0xff] %v187
      %3860 = vst [vmem:[%s3848 + $0x58] sm:$0xff] %v188
      %3861 = vst [vmem:[%s3848 + $0x60] sm:$0xff] %v189
      %3862 = vst [vmem:[%s3848 + $0x68] sm:$0xff] %v190
      %3863 = vst [vmem:[%s3848 + $0x70] sm:$0xff] %v191
      %3864 = vst [vmem:[%s3848 + $0x78] sm:$0xff] %v192
      %3865 = vst [vmem:[%s3848 + $0x80] sm:$0xff] %v193
      %3866 = vst [vmem:[%s3848 + $0x88] sm:$0xff] %v194
      %3867 = vst [vmem:[%s3848 + $0x90] sm:$0xff] %v195
      %3868 = vst [vmem:[%s3848 + $0x98] sm:$0xff] %v196
      %3869 = vst [vmem:[%s3848 + $0xa0] sm:$0xff] %v197
      %3870 = vst [vmem:[%s3848 + $0xa8] sm:$0xff] %v198
      %3871 = vst [vmem:[%s3848 + $0xb0] sm:$0xff] %v199
      %3872 = vst [vmem:[%s3848 + $0xb8] sm:$0xff] %v200
      %3873 = vst [vmem:[%s3848 + $0xc0] sm:$0xff] %v201
      %3874 = vst [vmem:[%s3848 + $0xc8] sm:$0xff] %v202
      %3875 = vst [vmem:[%s3848 + $0xd0] sm:$0xff] %v203
      %3876 = vst [vmem:[%s3848 + $0xd8] sm:$0xff] %v204
      %3877 = vst [vmem:[%s3848 + $0xe0] sm:$0xff] %v205
      %3878 = vst [vmem:[%s3848 + $0xe8] sm:$0xff] %v206
      %3879 = vst [vmem:[%s3848 + $0xf0] sm:$0xff] %v207
      %3880 = vst [vmem:[%s3848 + $0xf8] sm:$0xff] %v208
      %3881 = vst [vmem:[%s3848 + $0x100] sm:$0xff] %v209
      %3882 = vst [vmem:[%s3848 + $0x108] sm:$0xff] %v210
      %3883 = vst [vmem:[%s3848 + $0x110] sm:$0xff] %v211
      %3884 = vst [vmem:[%s3848 + $0x118] sm:$0xff] %v212
      %3885 = vst [vmem:[%s3848 + $0x120] sm:$0xff] %v213
      %3886 = vst [vmem:[%s3848 + $0x128] sm:$0xff] %v214
      %3887 = vst [vmem:[%s3848 + $0x130] sm:$0xff] %v215
      %3888 = vst [vmem:[%s3848 + $0x138] sm:$0xff] %v216
      %3889 = vst [vmem:[%s3848 + $0x140] sm:$0xff] %v217
      %3890 = vst [vmem:[%s3848 + $0x148] sm:$0xff] %v218
      %3891 = vst [vmem:[%s3848 + $0x150] sm:$0xff] %v219
      %3892 = vst [vmem:[%s3848 + $0x158] sm:$0xff] %v220
      %3893 = vst [vmem:[%s3848 + $0x160] sm:$0xff] %v221
      %3894 = vst [vmem:[%s3848 + $0x168] sm:$0xff] %v222
      %3895 = vst [vmem:[%s3848 + $0x170] sm:$0xff] %v223
      %3896 = vst [vmem:[%s3848 + $0x178] sm:$0xff] %v224
      %3897 = vst [vmem:[%s3848 + $0x180] sm:$0xff] %v225
      %3898 = vst [vmem:[%s3848 + $0x188] sm:$0xff] %v226
      %3899 = vst [vmem:[%s3848 + $0x190] sm:$0xff] %v227
      %3900 = vst [vmem:[%s3848 + $0x198] sm:$0xff] %v228
      %3901 = vst [vmem:[%s3848 + $0x1a0] sm:$0xff] %v229
      %3902 = vst [vmem:[%s3848 + $0x1a8] sm:$0xff] %v230
      %3903 = vst [vmem:[%s3848 + $0x1b0] sm:$0xff] %v231
      %3904 = vst [vmem:[%s3848 + $0x1b8] sm:$0xff] %v232
      %3905 = vst [vmem:[%s3848 + $0x1c0] sm:$0xff] %v233
      %3906 = vst [vmem:[%s3848 + $0x1c8] sm:$0xff] %v234
      %3907 = vst [vmem:[%s3848 + $0x1d0] sm:$0xff] %v235
      %3908 = vst [vmem:[%s3848 + $0x1d8] sm:$0xff] %v236
      %3909 = vst [vmem:[%s3848 + $0x1e0] sm:$0xff] %v237
      %3910 = vst [vmem:[%s3848 + $0x1e8] sm:$0xff] %v238
      %3911 = vst [vmem:[%s3848 + $0x1f0] sm:$0xff] %v239
      %3912 = vst [vmem:[%s3848 + $0x1f8] sm:$0xff] %v240
    $region58: #{tpu_custom_call.1} parent=1 // loop_footer
      %s103 = sadd.s32 1, %s99
    $region59: #{tpu_custom_call.1} parent=1 // loop_footer_branch
      %98 = sbr.rel target = $region55
    $region60: #{tpu_custom_call.1} parent=1 // loop_exit
      _
    // Predicated region
    $region68: #{tpu_custom_call.1} parent=1 // pred_check
      _
    $region69: #{tpu_custom_call.1} parent=1 // pred_check_branch
      %3914 = sbr.rel (0) target = $region71
    $region70: #{tpu_custom_call.1} parent=1 // pred_region
      %s3916 = ssub.s32 16384, 16384
      %3917 = vsyncadd [#allocation4], %s3916
      %s3918 = sshll.u32 [#allocation12], 4
      %s3919 = int_to_ptr.vmem [resolvable:$true] %s3918
      %3924 = dma.vmem_to_hbm [thread:$0]  %s3919, 16384, %s8, [#allocation4], 256, 256, 16
    $region71: #{tpu_custom_call.1} parent=1 // pred_fallthru
      _
    // Predicated region
    $region72: #{tpu_custom_call.1} parent=1 // pred_check
      _
    $region73: #{tpu_custom_call.1} parent=1 // pred_check_branch
      %3926 = sbr.rel (0) target = $region75
    $region74: #{tpu_custom_call.1} parent=1 // pred_region
      %3927 = dma.done [#allocation4], 16384
    $region75: #{tpu_custom_call.1} parent=1 // pred_fallthru
      _
    %3928 = vsyncpa [#allocation3], 1
    %3929 = vsyncpa [#allocation7], 1
    %3930 = vsyncpa [#allocation10], 1
    %3931 = vsyncpa [#allocation4], 1
    %3932 = vsyncpa [#allocation5], 1

</llo_original>
